<compile_context>
chip_gen: v7x
topology: tpu7x:2x2x1
jax: 0.10.0
libtpu: 0.0.40
codegen_flags: <defaults>
</compile_context>

<pallas_src>
import jax
import jax.numpy as jnp
from jax.experimental import pallas as pl
from jax.experimental.pallas import tpu as pltpu


def _round_up(x, m):
    return ((x + m - 1) // m) * m


def _pick_row_tile(n_pad):
    """Row tile: prefer an even number of row blocks (v7x megacore balance),
    as large as comfortably fits VMEM double-buffered."""
    cands = (512, 384, 256, 192, 128)
    for tm in cands:
        if tm <= n_pad and n_pad % tm == 0 and (n_pad // tm) % 2 == 0:
            return tm
    for tm in cands:
        if tm <= n_pad and n_pad % tm == 0:
            return tm
    return n_pad


def _pick_k_tile(n_pad):
    """Neighbor (reduction) tile: as deep as possible — the kernel is
    HBM-bound on the adjacency stream and per-step overhead is ~0.35us."""
    for tk in (1024, 896, 768, 640, 512, 384, 256, 128):
        if tk <= n_pad and n_pad % tk == 0:
            return tk
    return n_pad


# ----------------------------- Pallas kernel ------------------------------- #
def sage_layer_kernel(a_ref, xk_ref, xi_ref, wl_ref, wr_ref, b_ref,
                      invdeg_ref, mask_ref, o_ref, acc_ref):
    """One fused GraphSAGE layer, tiled over (row blocks, neighbor blocks).

    a_ref      : (TM, TK)   int8  neighbor-count block (exact integers)
    xk_ref     : (TK, Fin)  bf16  features of the neighbor block
    xi_ref     : (TM, Fin)  bf16  features of the row block (root branch)
    wl_ref     : (Fin, Fp)  bf16  neighbor weight W_l
    wr_ref     : (Fin, Fp)  bf16  root weight W_r
    b_ref      : (1,  Fp)   f32   bias (lin_l bias)
    invdeg_ref : (TM, 1)    f32   1 / in-degree (0 for isolated / padded rows)
    mask_ref   : (TM, 1)    f32   1 for real rows, 0 for padding
    o_ref      : (TM, Fp)   bf16  output block (post-ReLU)
    acc_ref    : (TM, Fin)  f32   VMEM accumulator for sum_j count_ij * x_j
    """
    k = pl.program_id(1)

    @pl.when(k == 0)
    def _():
        acc_ref[...] = jnp.zeros_like(acc_ref)

    # int8 counts -> bf16 (storage-only compression; MXU always sees bf16).
    a = a_ref[...].astype(jnp.bfloat16)
    acc_ref[...] += jnp.dot(a, xk_ref[...], preferred_element_type=jnp.float32)

    @pl.when(k == pl.num_programs(1) - 1)
    def _():
        agg = acc_ref[...] * invdeg_ref[...]            # exact f32 mean
        h = jnp.dot(agg.astype(wl_ref.dtype), wl_ref[...],
                    preferred_element_type=jnp.float32)
        h += jnp.dot(xi_ref[...], wr_ref[...],
                     preferred_element_type=jnp.float32)
        h += b_ref[...]
        h = jnp.maximum(h, 0.0) * mask_ref[...]         # ReLU; zero pad rows
        o_ref[...] = h.astype(o_ref.dtype)


# ------------------------------ wrapper ------------------------------------ #
def sage_layer(a_i8, x_pad, wl_p, wr_p, b_p, inv_deg, mask, fp):
    n_pad, fin_p = x_pad.shape
    tm = _pick_row_tile(n_pad)
    tk = _pick_k_tile(n_pad)
    grid = (n_pad // tm, n_pad // tk)

    cost = pl.CostEstimate(
        flops=2 * n_pad * n_pad * fin_p + 4 * n_pad * fin_p * fp,
        transcendentals=0,
        bytes_accessed=int(
            n_pad * n_pad                               # A (int8)
            + (n_pad // tm) * n_pad * fin_p * 2         # x_k re-stream / row blk
            + n_pad * fin_p * 2                         # x_i
            + 2 * fin_p * fp * 2 + 4 * fp               # weights + bias
            + 2 * n_pad * 4                             # 1/deg + mask
            + n_pad * fp * 2))                          # out (bf16)

    # VMEM footprint (double-buffered A/xk/out + resident rest) is well under
    # the 32 MiB scoped default on every generation (incl. v7x's 64 MiB phys).
    return pl.pallas_call(
        sage_layer_kernel,
        out_shape=jax.ShapeDtypeStruct((n_pad, fp), jnp.bfloat16),
        grid=grid,
        in_specs=[
            pl.BlockSpec((tm, tk), lambda i, k: (i, k)),      # A counts (int8)
            pl.BlockSpec((tk, fin_p), lambda i, k: (k, 0)),   # x (neighbors)
            pl.BlockSpec((tm, fin_p), lambda i, k: (i, 0)),   # x (root)
            pl.BlockSpec((fin_p, fp), lambda i, k: (0, 0)),   # W_l
            pl.BlockSpec((fin_p, fp), lambda i, k: (0, 0)),   # W_r
            pl.BlockSpec((1, fp), lambda i, k: (0, 0)),       # bias
            pl.BlockSpec((tm, 1), lambda i, k: (i, 0)),       # 1/deg
            pl.BlockSpec((tm, 1), lambda i, k: (i, 0)),       # row mask
        ],
        out_specs=pl.BlockSpec((tm, fp), lambda i, k: (i, 0)),
        scratch_shapes=[pltpu.VMEM((tm, fin_p), jnp.float32)],
        compiler_params=pltpu.CompilerParams(
            dimension_semantics=("parallel", "arbitrary")),
        cost_estimate=cost,
    )(a_i8, x_pad, x_pad, wl_p, wr_p, b_p, inv_deg, mask)


# ------------------------------- glue (JAX) -------------------------------- #
def build_count_adjacency(edge_index, num_nodes):
    """A[i, j] = #edges j->i (multi-edges counted, matching scatter-mean)."""
    src, dst = edge_index[0], edge_index[1]
    return jnp.zeros((num_nodes, num_nodes), jnp.int32).at[dst, src].add(1)


def init_graphsage_params(key, in_channels, hidden_channels, out_channels,
                          num_layers=2):
    """Synthetic init mirroring SAGEConv parameter shapes:
       lin_l: Linear(in, out, bias=True), lin_r: Linear(in, out, bias=False)."""
    dims = [in_channels] + [hidden_channels] * (num_layers - 1) + [out_channels]
    params = []
    for layer in range(num_layers):
        f_in, f_out = dims[layer], dims[layer + 1]
        key, k1, k2, k3 = jax.random.split(key, 4)
        scale = 1.0 / jnp.sqrt(jnp.float32(f_in))
        wl = jax.random.uniform(k1, (f_in, f_out), jnp.float32, -scale, scale)
        wr = jax.random.uniform(k2, (f_in, f_out), jnp.float32, -scale, scale)
        b = jax.random.uniform(k3, (1, f_out), jnp.float32, -scale, scale)
        params.append((wl, wr, b))
    return params


@jax.jit
def graphsage_forward(params, x, edge_index):
    num_nodes, _ = x.shape
    n_pad = _round_up(num_nodes, 128)
    pad_n = n_pad - num_nodes

    counts = build_count_adjacency(edge_index, num_nodes)
    deg = counts.sum(axis=1, keepdims=True).astype(jnp.float32)
    inv_deg = jnp.where(deg > 0, 1.0 / deg, 0.0)
    inv_deg = jnp.pad(inv_deg, ((0, pad_n), (0, 0)))

    # int8 storage halves the dominant HBM stream; integer counts are exact.
    # TODO(synk): widen / clip if a node pair can carry >127 parallel edges.
    a_i8 = jnp.pad(counts, ((0, pad_n), (0, pad_n))).astype(jnp.int8)

    mask = jnp.pad(jnp.ones((num_nodes, 1), jnp.float32), ((0, pad_n), (0, 0)))

    xp = x.astype(jnp.bfloat16)

    for wl, wr, b in params:
        f_in, f_out = wl.shape
        fin_p = _round_up(f_in, 16)     # contraction dim: sublane pad only
        fp = _round_up(f_out, 128)      # output: lane-dense for unmasked vst

        # Slice off previous layer's lane padding, pad rows + contraction dim.
        xl = jnp.zeros((n_pad, fin_p), jnp.bfloat16)
        xl = xl.at[:xp.shape[0], :f_in].set(xp[:, :f_in])

        wl_p = jnp.zeros((fin_p, fp), jnp.bfloat16).at[:f_in, :f_out].set(
            wl.astype(jnp.bfloat16))
        wr_p = jnp.zeros((fin_p, fp), jnp.bfloat16).at[:f_in, :f_out].set(
            wr.astype(jnp.bfloat16))
        b_p = jnp.zeros((1, fp), jnp.float32).at[:, :f_out].set(b)

        xp = sage_layer(a_i8, xl, wl_p, wr_p, b_p, inv_deg, mask, fp)

    out_channels = params[-1][0].shape[1]
    return xp[:num_nodes, :out_channels].astype(jnp.float32)


# --------------------------------- main ------------------------------------ #
if __name__ == "__main__":
    N = 300           # nodes (padded to 384 -> 2 row blocks x 1 k block)
    E = 3000          # edges
    IN_C, HID_C, OUT_C = 16, 32, 8
    NUM_LAYERS = 2

    key = jax.random.PRNGKey(0)
    k_x, k_e, k_p = jax.random.split(key, 3)

    x = jax.random.normal(k_x, (N, IN_C), jnp.float32)
    edge_index = jax.random.randint(k_e, (2, E), 0, N, jnp.int32)

    params = init_graphsage_params(k_p, IN_C, HID_C, OUT_C, NUM_LAYERS)

    out = graphsage_forward(params, x, edge_index)
    out = jax.block_until_ready(out)

    assert out.shape == (N, OUT_C)
    assert bool(jnp.all(jnp.isfinite(out)))
    print("KERNEL_OK")
</pallas_src>

<mosaic_0001>
module attributes {stable_mosaic.version = 11 : i64} {
  func.func @sage_layer_kernel(%arg0: i32, %arg1: i32, %arg2: memref<192x384xi8, #tpu.memory_space<vmem>>, %arg3: memref<384x16xbf16, #tpu.memory_space<vmem>>, %arg4: memref<192x16xbf16, #tpu.memory_space<vmem>>, %arg5: memref<16x128xbf16, #tpu.memory_space<vmem>>, %arg6: memref<16x128xbf16, #tpu.memory_space<vmem>>, %arg7: memref<1x128xf32, #tpu.memory_space<vmem>>, %arg8: memref<192x1xf32, #tpu.memory_space<vmem>>, %arg9: memref<192x1xf32, #tpu.memory_space<vmem>>, %arg10: memref<192x128xbf16, #tpu.memory_space<vmem>>, %arg11: memref<192x16xf32, #tpu.memory_space<vmem>>) attributes {dimension_semantics = [#tpu.dimension_semantics<parallel>, #tpu.dimension_semantics<arbitrary>], iteration_bounds = array<i64: 2, 1>, scalar_prefetch = 0 : i64, scratch_operands = 1 : i64, tpu.core_type = #tpu.core_type<tc>, window_params = [{transform_indices = @transform_0, window_bounds = array<i64: 192, 384>}, {transform_indices = @transform_1, window_bounds = array<i64: 384, 16>}, {transform_indices = @transform_2, window_bounds = array<i64: 192, 16>}, {pipeline_mode = #tpu.pipeline_mode<synchronous>, transform_indices = @transform_3, window_bounds = array<i64: 16, 128>}, {pipeline_mode = #tpu.pipeline_mode<synchronous>, transform_indices = @transform_4, window_bounds = array<i64: 16, 128>}, {pipeline_mode = #tpu.pipeline_mode<synchronous>, transform_indices = @transform_5, window_bounds = array<i64: 1, 128>}, {transform_indices = @transform_6, window_bounds = array<i64: 192, 1>}, {transform_indices = @transform_7, window_bounds = array<i64: 192, 1>}, {transform_indices = @transform_8, window_bounds = array<i64: 192, 128>}]} {
    %c0_i32 = arith.constant 0 : i32
    %0 = arith.cmpi eq, %arg1, %c0_i32 : i32
    %1 = arith.extui %0 : i1 to i32
    %c0_i32_0 = arith.constant 0 : i32
    %2 = arith.cmpi ne, %1, %c0_i32_0 : i32
    scf.if %2 {
      %cst_10 = arith.constant 0.000000e+00 : f32
      %13 = vector.broadcast %cst_10 : f32 to vector<192x16xf32>
      %c0_11 = arith.constant 0 : index
      %c0_12 = arith.constant 0 : index
      %14 = vector.load %arg11[%c0_11, %c0_12] : memref<192x16xf32, #tpu.memory_space<vmem>>, vector<192x16xf32>
      tpu.vector_store %arg11[%c0_11, %c0_12], %13 {strides = array<i32>} : memref<192x16xf32, #tpu.memory_space<vmem>>, vector<192x16xf32>,
    } else {
    }
    %c0 = arith.constant 0 : index
    %c0_1 = arith.constant 0 : index
    %3 = vector.load %arg2[%c0, %c0_1] : memref<192x384xi8, #tpu.memory_space<vmem>>, vector<192x384xi8>
    %4 = arith.sitofp %3 : vector<192x384xi8> to vector<192x384xbf16>
    %c0_2 = arith.constant 0 : index
    %c0_3 = arith.constant 0 : index
    %5 = vector.load %arg11[%c0_2, %c0_3] : memref<192x16xf32, #tpu.memory_space<vmem>>, vector<192x16xf32>
    %c0_4 = arith.constant 0 : index
    %c0_5 = arith.constant 0 : index
    %6 = vector.load %arg3[%c0_4, %c0_5] : memref<384x16xbf16, #tpu.memory_space<vmem>>, vector<384x16xbf16>
    %cst = arith.constant dense<0.000000e+00> : vector<192x16xf32>
    %7 = tpu.matmul %4, %6, %cst {dimension_numbers = #tpu.dot_dimension_numbers<[1], [0], [0], [1], [0, 0, 1, 1], [], []>} : vector<192x384xbf16>, vector<384x16xbf16>, vector<192x16xf32> -> vector<192x16xf32>
    %8 = arith.addf %5, %7 : vector<192x16xf32>
    %c0_6 = arith.constant 0 : index
    %c0_7 = arith.constant 0 : index
    %9 = vector.load %arg11[%c0_6, %c0_7] : memref<192x16xf32, #tpu.memory_space<vmem>>, vector<192x16xf32>
    tpu.vector_store %arg11[%c0_6, %c0_7], %8 {strides = array<i32>} : memref<192x16xf32, #tpu.memory_space<vmem>>, vector<192x16xf32>,
    %c0_i32_8 = arith.constant 0 : i32
    %10 = arith.cmpi eq, %arg1, %c0_i32_8 : i32
    %11 = arith.extui %10 : i1 to i32
    %c0_i32_9 = arith.constant 0 : i32
    %12 = arith.cmpi ne, %11, %c0_i32_9 : i32
    scf.if %12 {
      %c0_10 = arith.constant 0 : index
      %c0_11 = arith.constant 0 : index
      %13 = vector.load %arg11[%c0_10, %c0_11] : memref<192x16xf32, #tpu.memory_space<vmem>>, vector<192x16xf32>
      %c0_12 = arith.constant 0 : index
      %c0_13 = arith.constant 0 : index
      %14 = vector.load %arg8[%c0_12, %c0_13] : memref<192x1xf32, #tpu.memory_space<vmem>>, vector<192x1xf32>
      %15 = vector.broadcast %14 : vector<192x1xf32> to vector<192x16xf32>
      %16 = arith.mulf %13, %15 : vector<192x16xf32>
      %17 = arith.truncf %16 : vector<192x16xf32> to vector<192x16xbf16>
      %c0_14 = arith.constant 0 : index
      %c0_15 = arith.constant 0 : index
      %18 = vector.load %arg5[%c0_14, %c0_15] : memref<16x128xbf16, #tpu.memory_space<vmem>>, vector<16x128xbf16>
      %cst_16 = arith.constant dense<0.000000e+00> : vector<192x128xf32>
      %19 = tpu.matmul %17, %18, %cst_16 {dimension_numbers = #tpu.dot_dimension_numbers<[1], [0], [0], [1], [0, 0, 1, 1], [], []>} : vector<192x16xbf16>, vector<16x128xbf16>, vector<192x128xf32> -> vector<192x128xf32>
      %c0_17 = arith.constant 0 : index
      %c0_18 = arith.constant 0 : index
      %20 = vector.load %arg4[%c0_17, %c0_18] : memref<192x16xbf16, #tpu.memory_space<vmem>>, vector<192x16xbf16>
      %c0_19 = arith.constant 0 : index
      %c0_20 = arith.constant 0 : index
      %21 = vector.load %arg6[%c0_19, %c0_20] : memref<16x128xbf16, #tpu.memory_space<vmem>>, vector<16x128xbf16>
      %cst_21 = arith.constant dense<0.000000e+00> : vector<192x128xf32>
      %22 = tpu.matmul %20, %21, %cst_21 {dimension_numbers = #tpu.dot_dimension_numbers<[1], [0], [0], [1], [0, 0, 1, 1], [], []>} : vector<192x16xbf16>, vector<16x128xbf16>, vector<192x128xf32> -> vector<192x128xf32>
      %23 = arith.addf %19, %22 : vector<192x128xf32>
      %c0_22 = arith.constant 0 : index
      %c0_23 = arith.constant 0 : index
      %24 = vector.load %arg7[%c0_22, %c0_23] : memref<1x128xf32, #tpu.memory_space<vmem>>, vector<1x128xf32>
      %25 = vector.broadcast %24 : vector<1x128xf32> to vector<192x128xf32>
      %26 = arith.addf %23, %25 : vector<192x128xf32>
      %cst_24 = arith.constant 0.000000e+00 : f32
      %27 = vector.broadcast %cst_24 : f32 to vector<192x128xf32>
      %28 = arith.maximumf %26, %27 : vector<192x128xf32>
      %c0_25 = arith.constant 0 : index
      %c0_26 = arith.constant 0 : index
      %29 = vector.load %arg9[%c0_25, %c0_26] : memref<192x1xf32, #tpu.memory_space<vmem>>, vector<192x1xf32>
      %30 = vector.broadcast %29 : vector<192x1xf32> to vector<192x128xf32>
      %31 = arith.mulf %28, %30 : vector<192x128xf32>
      %32 = arith.truncf %31 : vector<192x128xf32> to vector<192x128xbf16>
      %c0_27 = arith.constant 0 : index
      %c0_28 = arith.constant 0 : index
      %33 = vector.load %arg10[%c0_27, %c0_28] : memref<192x128xbf16, #tpu.memory_space<vmem>>, vector<192x128xbf16>
      tpu.vector_store %arg10[%c0_27, %c0_28], %32 {strides = array<i32>} : memref<192x128xbf16, #tpu.memory_space<vmem>>, vector<192x128xbf16>,
    } else {
    }
    return
  }
  func.func @transform_0(%arg0: i32, %arg1: i32) -> (i32, i32) {
    %c0_i32 = arith.constant 0 : i32
    return %arg0, %arg1 : i32, i32
  }
  func.func @transform_1(%arg0: i32, %arg1: i32) -> (i32, i32) {
    %c0_i32 = arith.constant 0 : i32
    %c0_i32_0 = arith.constant 0 : i32
    return %arg1, %c0_i32 : i32, i32
  }
  func.func @transform_2(%arg0: i32, %arg1: i32) -> (i32, i32) {
    %c0_i32 = arith.constant 0 : i32
    %c0_i32_0 = arith.constant 0 : i32
    return %arg0, %c0_i32 : i32, i32
  }
  func.func @transform_3(%arg0: i32, %arg1: i32) -> (i32, i32) {
    %c0_i32 = arith.constant 0 : i32
    %c0_i32_0 = arith.constant 0 : i32
    %c0_i32_1 = arith.constant 0 : i32
    return %c0_i32, %c0_i32_0 : i32, i32
  }
  func.func @transform_4(%arg0: i32, %arg1: i32) -> (i32, i32) {
    %c0_i32 = arith.constant 0 : i32
    %c0_i32_0 = arith.constant 0 : i32
    %c0_i32_1 = arith.constant 0 : i32
    return %c0_i32, %c0_i32_0 : i32, i32
  }
  func.func @transform_5(%arg0: i32, %arg1: i32) -> (i32, i32) {
    %c0_i32 = arith.constant 0 : i32
    %c0_i32_0 = arith.constant 0 : i32
    %c0_i32_1 = arith.constant 0 : i32
    return %c0_i32, %c0_i32_0 : i32, i32
  }
  func.func @transform_6(%arg0: i32, %arg1: i32) -> (i32, i32) {
    %c0_i32 = arith.constant 0 : i32
    %c0_i32_0 = arith.constant 0 : i32
    return %arg0, %c0_i32 : i32, i32
  }
  func.func @transform_7(%arg0: i32, %arg1: i32) -> (i32, i32) {
    %c0_i32 = arith.constant 0 : i32
    %c0_i32_0 = arith.constant 0 : i32
    return %arg0, %c0_i32 : i32, i32
  }
  func.func @transform_8(%arg0: i32, %arg1: i32) -> (i32, i32) {
    %c0_i32 = arith.constant 0 : i32
    %c0_i32_0 = arith.constant 0 : i32
    return %arg0, %c0_i32 : i32, i32
  }
}

module attributes {stable_mosaic.version = 11 : i64} {
  func.func @sage_layer_kernel(%arg0: i32, %arg1: i32, %arg2: memref<192x384xi8, #tpu.memory_space<vmem>>, %arg3: memref<384x32xbf16, #tpu.memory_space<vmem>>, %arg4: memref<192x32xbf16, #tpu.memory_space<vmem>>, %arg5: memref<32x128xbf16, #tpu.memory_space<vmem>>, %arg6: memref<32x128xbf16, #tpu.memory_space<vmem>>, %arg7: memref<1x128xf32, #tpu.memory_space<vmem>>, %arg8: memref<192x1xf32, #tpu.memory_space<vmem>>, %arg9: memref<192x1xf32, #tpu.memory_space<vmem>>, %arg10: memref<192x128xbf16, #tpu.memory_space<vmem>>, %arg11: memref<192x32xf32, #tpu.memory_space<vmem>>) attributes {dimension_semantics = [#tpu.dimension_semantics<parallel>, #tpu.dimension_semantics<arbitrary>], iteration_bounds = array<i64: 2, 1>, scalar_prefetch = 0 : i64, scratch_operands = 1 : i64, tpu.core_type = #tpu.core_type<tc>, window_params = [{transform_indices = @transform_0, window_bounds = array<i64: 192, 384>}, {transform_indices = @transform_1, window_bounds = array<i64: 384, 32>}, {transform_indices = @transform_2, window_bounds = array<i64: 192, 32>}, {pipeline_mode = #tpu.pipeline_mode<synchronous>, transform_indices = @transform_3, window_bounds = array<i64: 32, 128>}, {pipeline_mode = #tpu.pipeline_mode<synchronous>, transform_indices = @transform_4, window_bounds = array<i64: 32, 128>}, {pipeline_mode = #tpu.pipeline_mode<synchronous>, transform_indices = @transform_5, window_bounds = array<i64: 1, 128>}, {transform_indices = @transform_6, window_bounds = array<i64: 192, 1>}, {transform_indices = @transform_7, window_bounds = array<i64: 192, 1>}, {transform_indices = @transform_8, window_bounds = array<i64: 192, 128>}]} {
    %c0_i32 = arith.constant 0 : i32
    %0 = arith.cmpi eq, %arg1, %c0_i32 : i32
    %1 = arith.extui %0 : i1 to i32
    %c0_i32_0 = arith.constant 0 : i32
    %2 = arith.cmpi ne, %1, %c0_i32_0 : i32
    scf.if %2 {
      %cst_10 = arith.constant 0.000000e+00 : f32
      %13 = vector.broadcast %cst_10 : f32 to vector<192x32xf32>
      %c0_11 = arith.constant 0 : index
      %c0_12 = arith.constant 0 : index
      %14 = vector.load %arg11[%c0_11, %c0_12] : memref<192x32xf32, #tpu.memory_space<vmem>>, vector<192x32xf32>
      tpu.vector_store %arg11[%c0_11, %c0_12], %13 {strides = array<i32>} : memref<192x32xf32, #tpu.memory_space<vmem>>, vector<192x32xf32>,
    } else {
    }
    %c0 = arith.constant 0 : index
    %c0_1 = arith.constant 0 : index
    %3 = vector.load %arg2[%c0, %c0_1] : memref<192x384xi8, #tpu.memory_space<vmem>>, vector<192x384xi8>
    %4 = arith.sitofp %3 : vector<192x384xi8> to vector<192x384xbf16>
    %c0_2 = arith.constant 0 : index
    %c0_3 = arith.constant 0 : index
    %5 = vector.load %arg11[%c0_2, %c0_3] : memref<192x32xf32, #tpu.memory_space<vmem>>, vector<192x32xf32>
    %c0_4 = arith.constant 0 : index
    %c0_5 = arith.constant 0 : index
    %6 = vector.load %arg3[%c0_4, %c0_5] : memref<384x32xbf16, #tpu.memory_space<vmem>>, vector<384x32xbf16>
    %cst = arith.constant dense<0.000000e+00> : vector<192x32xf32>
    %7 = tpu.matmul %4, %6, %cst {dimension_numbers = #tpu.dot_dimension_numbers<[1], [0], [0], [1], [0, 0, 1, 1], [], []>} : vector<192x384xbf16>, vector<384x32xbf16>, vector<192x32xf32> -> vector<192x32xf32>
    %8 = arith.addf %5, %7 : vector<192x32xf32>
    %c0_6 = arith.constant 0 : index
    %c0_7 = arith.constant 0 : index
    %9 = vector.load %arg11[%c0_6, %c0_7] : memref<192x32xf32, #tpu.memory_space<vmem>>, vector<192x32xf32>
    tpu.vector_store %arg11[%c0_6, %c0_7], %8 {strides = array<i32>} : memref<192x32xf32, #tpu.memory_space<vmem>>, vector<192x32xf32>,
    %c0_i32_8 = arith.constant 0 : i32
    %10 = arith.cmpi eq, %arg1, %c0_i32_8 : i32
    %11 = arith.extui %10 : i1 to i32
    %c0_i32_9 = arith.constant 0 : i32
    %12 = arith.cmpi ne, %11, %c0_i32_9 : i32
    scf.if %12 {
      %c0_10 = arith.constant 0 : index
      %c0_11 = arith.constant 0 : index
      %13 = vector.load %arg11[%c0_10, %c0_11] : memref<192x32xf32, #tpu.memory_space<vmem>>, vector<192x32xf32>
      %c0_12 = arith.constant 0 : index
      %c0_13 = arith.constant 0 : index
      %14 = vector.load %arg8[%c0_12, %c0_13] : memref<192x1xf32, #tpu.memory_space<vmem>>, vector<192x1xf32>
      %15 = vector.broadcast %14 : vector<192x1xf32> to vector<192x32xf32>
      %16 = arith.mulf %13, %15 : vector<192x32xf32>
      %17 = arith.truncf %16 : vector<192x32xf32> to vector<192x32xbf16>
      %c0_14 = arith.constant 0 : index
      %c0_15 = arith.constant 0 : index
      %18 = vector.load %arg5[%c0_14, %c0_15] : memref<32x128xbf16, #tpu.memory_space<vmem>>, vector<32x128xbf16>
      %cst_16 = arith.constant dense<0.000000e+00> : vector<192x128xf32>
      %19 = tpu.matmul %17, %18, %cst_16 {dimension_numbers = #tpu.dot_dimension_numbers<[1], [0], [0], [1], [0, 0, 1, 1], [], []>} : vector<192x32xbf16>, vector<32x128xbf16>, vector<192x128xf32> -> vector<192x128xf32>
      %c0_17 = arith.constant 0 : index
      %c0_18 = arith.constant 0 : index
      %20 = vector.load %arg4[%c0_17, %c0_18] : memref<192x32xbf16, #tpu.memory_space<vmem>>, vector<192x32xbf16>
      %c0_19 = arith.constant 0 : index
      %c0_20 = arith.constant 0 : index
      %21 = vector.load %arg6[%c0_19, %c0_20] : memref<32x128xbf16, #tpu.memory_space<vmem>>, vector<32x128xbf16>
      %cst_21 = arith.constant dense<0.000000e+00> : vector<192x128xf32>
      %22 = tpu.matmul %20, %21, %cst_21 {dimension_numbers = #tpu.dot_dimension_numbers<[1], [0], [0], [1], [0, 0, 1, 1], [], []>} : vector<192x32xbf16>, vector<32x128xbf16>, vector<192x128xf32> -> vector<192x128xf32>
      %23 = arith.addf %19, %22 : vector<192x128xf32>
      %c0_22 = arith.constant 0 : index
      %c0_23 = arith.constant 0 : index
      %24 = vector.load %arg7[%c0_22, %c0_23] : memref<1x128xf32, #tpu.memory_space<vmem>>, vector<1x128xf32>
      %25 = vector.broadcast %24 : vector<1x128xf32> to vector<192x128xf32>
      %26 = arith.addf %23, %25 : vector<192x128xf32>
      %cst_24 = arith.constant 0.000000e+00 : f32
      %27 = vector.broadcast %cst_24 : f32 to vector<192x128xf32>
      %28 = arith.maximumf %26, %27 : vector<192x128xf32>
      %c0_25 = arith.constant 0 : index
      %c0_26 = arith.constant 0 : index
      %29 = vector.load %arg9[%c0_25, %c0_26] : memref<192x1xf32, #tpu.memory_space<vmem>>, vector<192x1xf32>
      %30 = vector.broadcast %29 : vector<192x1xf32> to vector<192x128xf32>
      %31 = arith.mulf %28, %30 : vector<192x128xf32>
      %32 = arith.truncf %31 : vector<192x128xf32> to vector<192x128xbf16>
      %c0_27 = arith.constant 0 : index
      %c0_28 = arith.constant 0 : index
      %33 = vector.load %arg10[%c0_27, %c0_28] : memref<192x128xbf16, #tpu.memory_space<vmem>>, vector<192x128xbf16>
      tpu.vector_store %arg10[%c0_27, %c0_28], %32 {strides = array<i32>} : memref<192x128xbf16, #tpu.memory_space<vmem>>, vector<192x128xbf16>,
    } else {
    }
    return
  }
  func.func @transform_0(%arg0: i32, %arg1: i32) -> (i32, i32) {
    %c0_i32 = arith.constant 0 : i32
    return %arg0, %arg1 : i32, i32
  }
  func.func @transform_1(%arg0: i32, %arg1: i32) -> (i32, i32) {
    %c0_i32 = arith.constant 0 : i32
    %c0_i32_0 = arith.constant 0 : i32
    return %arg1, %c0_i32 : i32, i32
  }
  func.func @transform_2(%arg0: i32, %arg1: i32) -> (i32, i32) {
    %c0_i32 = arith.constant 0 : i32
    %c0_i32_0 = arith.constant 0 : i32
    return %arg0, %c0_i32 : i32, i32
  }
  func.func @transform_3(%arg0: i32, %arg1: i32) -> (i32, i32) {
    %c0_i32 = arith.constant 0 : i32
    %c0_i32_0 = arith.constant 0 : i32
    %c0_i32_1 = arith.constant 0 : i32
    return %c0_i32, %c0_i32_0 : i32, i32
  }
  func.func @transform_4(%arg0: i32, %arg1: i32) -> (i32, i32) {
    %c0_i32 = arith.constant 0 : i32
    %c0_i32_0 = arith.constant 0 : i32
    %c0_i32_1 = arith.constant 0 : i32
    return %c0_i32, %c0_i32_0 : i32, i32
  }
  func.func @transform_5(%arg0: i32, %arg1: i32) -> (i32, i32) {
    %c0_i32 = arith.constant 0 : i32
    %c0_i32_0 = arith.constant 0 : i32
    %c0_i32_1 = arith.constant 0 : i32
    return %c0_i32, %c0_i32_0 : i32, i32
  }
  func.func @transform_6(%arg0: i32, %arg1: i32) -> (i32, i32) {
    %c0_i32 = arith.constant 0 : i32
    %c0_i32_0 = arith.constant 0 : i32
    return %arg0, %c0_i32 : i32, i32
  }
  func.func @transform_7(%arg0: i32, %arg1: i32) -> (i32, i32) {
    %c0_i32 = arith.constant 0 : i32
    %c0_i32_0 = arith.constant 0 : i32
    return %arg0, %c0_i32 : i32, i32
  }
  func.func @transform_8(%arg0: i32, %arg1: i32) -> (i32, i32) {
    %c0_i32 = arith.constant 0 : i32
    %c0_i32_0 = arith.constant 0 : i32
    return %arg0, %c0_i32 : i32, i32
  }
}

</mosaic_0001>

<llo_original>
// kernel: graphsage_forward.2
$region0: #{graphsage_forward.2}
  #allocation0 [shape = 'u32[]', space=smem, size = 0x4, offset = 0x4, fixed_abs, tag = 'smem constant byte address 0x4 - core index']
  #allocation1 [shape = 'u32[144,128]{1,0:T(1,128)}', space=vmem, size = 0x12000, scoped, tag = 'internal scratch']
  #allocation2 [shape = 'f32[192,16]{1,0:T(8,128)}', space=vmem, size = 0x18000, scoped, tag = 'scratch operand']
  %s0 = inlined_call_operand.vmem [shape: s8[384,384], index: 0, kind: input, shape index: {}]
  %s1 = inlined_call_operand.vmem [shape: bf16[384,16], index: 1, kind: input, shape index: {}, may-alias: {1,2}]
  %s2 = inlined_call_operand.vmem [shape: bf16[384,16], index: 2, kind: input, shape index: {}, may-alias: {1,2}]
  %s3 = inlined_call_operand.vmem [shape: bf16[16,128], index: 3, kind: input, shape index: {}]
  %s4 = inlined_call_operand.vmem [shape: bf16[16,128], index: 4, kind: input, shape index: {}]
  %s5 = inlined_call_operand.vmem [shape: f32[1,128], index: 5, kind: input, shape index: {}]
  %s6 = inlined_call_operand.vmem [shape: f32[384,1], index: 6, kind: input, shape index: {}]
  %s7 = inlined_call_operand.vmem [shape: f32[384,1], index: 7, kind: input, shape index: {}]
  %s8 = inlined_call_operand.vmem [shape: bf16[384,128], index: 8, kind: output, shape index: {}]
  %s9 = sld [smem:[#allocation0]]
  $region73: #{graphsage_forward.2} parent=0
    _
  %s11 = ssub.s32 1, %s9
  %s12 = scalar_select 0, %s11, %s9
  loop: start=0, step=1, limit=4
  $region2: #{graphsage_forward.2} parent=0 // loop_pre_header
    _
  $region3: #{graphsage_forward.2} parent=0 // loop_header
    %s14 = sphi 0, %s18
    %p15 = scmp.ge.s32.totalorder %s14, 4
    %s21 = sphi 0, %s33
    %s22 = sphi 0, %s29
    %s23 = sphi 0, %s21
    %s24 = sphi 0, %s22
    %s25 = sphi 0, %s23
    %s26 = sphi 0, %s24
    %s38 = sphi 0, %s40
    %s41 = sphi 0, %s38
    %s42 = sphi 0, %s41
    %s58 = sphi 0, %s42
    %s64 = sphi 0, %s66
    %s67 = sphi 0, %s64
    %s68 = sphi 0, %s67
    %s84 = sphi 0, %s68
    %s90 = sphi 0, %s92
    %s93 = sphi 0, %s90
    %s94 = sphi 0, %s93
    %s110 = sphi 0, %s94
    %s114 = sphi 0, %s114
    %s116 = sphi 0, %s114
    %s117 = sphi 0, %s116
    %s131 = sphi 0, %s117
    %s135 = sphi 0, %s135
    %s137 = sphi 0, %s135
    %s138 = sphi 0, %s137
    %s152 = sphi 0, %s138
    %s156 = sphi 0, %s156
    %s158 = sphi 0, %s156
    %s159 = sphi 0, %s158
    %s173 = sphi 0, %s159
    %s179 = sphi 0, %s181
    %s182 = sphi 0, %s179
    %s183 = sphi 0, %s182
    %s199 = sphi 0, %s183
    %s205 = sphi 0, %s207
    %s208 = sphi 0, %s205
    %s209 = sphi 0, %s208
    %s225 = sphi 0, %s209
    %s231 = sphi 0, %s233
    %s234 = sphi 0, %s231
    %s235 = sphi 0, %s234
    %s251 = sphi 0, %s235
  $region4: #{graphsage_forward.2} parent=0 // loop_header_branch
    %17 = sbr.rel (%p15) target = $region8
  $region5: #{graphsage_forward.2} parent=0 // loop_body
    %s19 = ssub.s32 %s14, 1
    %s20 = ssub.s32 %s14, 2
    %s27 = sadd.s32 1, %s22
    %p28 = scmp.ge.s32.totalorder %s27, 1
    %s29 = scalar_select %p28, 0, %s27
    %s30 = sadd.s32 1, %s21
    %s31 = scalar_select %p28, %s30, %s21
    %p32 = scmp.ge.s32.totalorder %s31, 2
    %s33 = scalar_select %p32, 0, %s31
    %s34 = ssub.s32 %s21, %s33
    %s35 = ssub.s32 %s22, %s29
    %s36 = sor.u32 %s34, %s35
    %p37 = scmp.eq.s32.totalorder %s36, 0
    %s39 = sadd.s32 %s38, 1
    %s40 = scalar_select %p37, %s38, %s39
    %p43 = pneg %p37
    %p44 = scmp.eq.s32.totalorder %s14, 1
    %p45 = por %p43, %p44
    %p46 = scmp.ne.s32.totalorder %s38, %s41
    %p47 = scmp.eq.s32.totalorder %s14, 0
    %p48 = por %p46, %p47
    %p49 = scmp.ne.s32.totalorder %s38, %s41
    %p50 = scmp.eq.s32.totalorder %s19, 1
    %p51 = por %p49, %p50
    %p52 = scmp.ne.s32.totalorder %s41, %s42
    %p53 = scmp.eq.s32.totalorder %s19, 0
    %p54 = por %p52, %p53
    %p55 = scmp.ne.s32.totalorder %s41, %s42
    %p56 = scmp.eq.s32.totalorder %s20, 1
    %p57 = por %p55, %p56
    %p59 = scmp.ne.s32.totalorder %s42, %s58
    %p60 = scmp.eq.s32.totalorder %s20, 0
    %p61 = por %p59, %p60
    %s62 = ssub.s32 %s22, %s29
    %p63 = scmp.eq.s32.totalorder %s62, 0
    %s65 = sadd.s32 %s64, 1
    %s66 = scalar_select %p63, %s64, %s65
    %p69 = pneg %p63
    %p70 = scmp.eq.s32.totalorder %s14, 1
    %p71 = por %p69, %p70
    %p72 = scmp.ne.s32.totalorder %s64, %s67
    %p73 = scmp.eq.s32.totalorder %s14, 0
    %p74 = por %p72, %p73
    %p75 = scmp.ne.s32.totalorder %s64, %s67
    %p76 = scmp.eq.s32.totalorder %s19, 1
    %p77 = por %p75, %p76
    %p78 = scmp.ne.s32.totalorder %s67, %s68
    %p79 = scmp.eq.s32.totalorder %s19, 0
    %p80 = por %p78, %p79
    %p81 = scmp.ne.s32.totalorder %s67, %s68
    %p82 = scmp.eq.s32.totalorder %s20, 1
    %p83 = por %p81, %p82
    %p85 = scmp.ne.s32.totalorder %s68, %s84
    %p86 = scmp.eq.s32.totalorder %s20, 0
    %p87 = por %p85, %p86
    %s88 = ssub.s32 %s21, %s33
    %p89 = scmp.eq.s32.totalorder %s88, 0
    %s91 = sadd.s32 %s90, 1
    %s92 = scalar_select %p89, %s90, %s91
    %p95 = pneg %p89
    %p96 = scmp.eq.s32.totalorder %s14, 1
    %p97 = por %p95, %p96
    %p98 = scmp.ne.s32.totalorder %s90, %s93
    %p99 = scmp.eq.s32.totalorder %s14, 0
    %p100 = por %p98, %p99
    %p101 = scmp.ne.s32.totalorder %s90, %s93
    %p102 = scmp.eq.s32.totalorder %s19, 1
    %p103 = por %p101, %p102
    %p104 = scmp.ne.s32.totalorder %s93, %s94
    %p105 = scmp.eq.s32.totalorder %s19, 0
    %p106 = por %p104, %p105
    %p107 = scmp.ne.s32.totalorder %s93, %s94
    %p108 = scmp.eq.s32.totalorder %s20, 1
    %p109 = por %p107, %p108
    %p111 = scmp.ne.s32.totalorder %s94, %s110
    %p112 = scmp.eq.s32.totalorder %s20, 0
    %p113 = por %p111, %p112
    %s115 = sadd.s32 %s114, 1
    %p118 = scmp.eq.s32.totalorder %s14, 1
    %p119 = scmp.ne.s32.totalorder %s114, %s116
    %p120 = scmp.eq.s32.totalorder %s14, 0
    %p121 = por %p119, %p120
    %p122 = scmp.ne.s32.totalorder %s114, %s116
    %p123 = scmp.eq.s32.totalorder %s19, 1
    %p124 = por %p122, %p123
    %p125 = scmp.ne.s32.totalorder %s116, %s117
    %p126 = scmp.eq.s32.totalorder %s19, 0
    %p127 = por %p125, %p126
    %p128 = scmp.ne.s32.totalorder %s116, %s117
    %p129 = scmp.eq.s32.totalorder %s20, 1
    %p130 = por %p128, %p129
    %p132 = scmp.ne.s32.totalorder %s117, %s131
    %p133 = scmp.eq.s32.totalorder %s20, 0
    %p134 = por %p132, %p133
    %s136 = sadd.s32 %s135, 1
    %p139 = scmp.eq.s32.totalorder %s14, 1
    %p140 = scmp.ne.s32.totalorder %s135, %s137
    %p141 = scmp.eq.s32.totalorder %s14, 0
    %p142 = por %p140, %p141
    %p143 = scmp.ne.s32.totalorder %s135, %s137
    %p144 = scmp.eq.s32.totalorder %s19, 1
    %p145 = por %p143, %p144
    %p146 = scmp.ne.s32.totalorder %s137, %s138
    %p147 = scmp.eq.s32.totalorder %s19, 0
    %p148 = por %p146, %p147
    %p149 = scmp.ne.s32.totalorder %s137, %s138
    %p150 = scmp.eq.s32.totalorder %s20, 1
    %p151 = por %p149, %p150
    %p153 = scmp.ne.s32.totalorder %s138, %s152
    %p154 = scmp.eq.s32.totalorder %s20, 0
    %p155 = por %p153, %p154
    %s157 = sadd.s32 %s156, 1
    %p160 = scmp.eq.s32.totalorder %s14, 1
    %p161 = scmp.ne.s32.totalorder %s156, %s158
    %p162 = scmp.eq.s32.totalorder %s14, 0
    %p163 = por %p161, %p162
    %p164 = scmp.ne.s32.totalorder %s156, %s158
    %p165 = scmp.eq.s32.totalorder %s19, 1
    %p166 = por %p164, %p165
    %p167 = scmp.ne.s32.totalorder %s158, %s159
    %p168 = scmp.eq.s32.totalorder %s19, 0
    %p169 = por %p167, %p168
    %p170 = scmp.ne.s32.totalorder %s158, %s159
    %p171 = scmp.eq.s32.totalorder %s20, 1
    %p172 = por %p170, %p171
    %p174 = scmp.ne.s32.totalorder %s159, %s173
    %p175 = scmp.eq.s32.totalorder %s20, 0
    %p176 = por %p174, %p175
    %s177 = ssub.s32 %s21, %s33
    %p178 = scmp.eq.s32.totalorder %s177, 0
    %s180 = sadd.s32 %s179, 1
    %s181 = scalar_select %p178, %s179, %s180
    %p184 = pneg %p178
    %p185 = scmp.eq.s32.totalorder %s14, 1
    %p186 = por %p184, %p185
    %p187 = scmp.ne.s32.totalorder %s179, %s182
    %p188 = scmp.eq.s32.totalorder %s14, 0
    %p189 = por %p187, %p188
    %p190 = scmp.ne.s32.totalorder %s179, %s182
    %p191 = scmp.eq.s32.totalorder %s19, 1
    %p192 = por %p190, %p191
    %p193 = scmp.ne.s32.totalorder %s182, %s183
    %p194 = scmp.eq.s32.totalorder %s19, 0
    %p195 = por %p193, %p194
    %p196 = scmp.ne.s32.totalorder %s182, %s183
    %p197 = scmp.eq.s32.totalorder %s20, 1
    %p198 = por %p196, %p197
    %p200 = scmp.ne.s32.totalorder %s183, %s199
    %p201 = scmp.eq.s32.totalorder %s20, 0
    %p202 = por %p200, %p201
    %s203 = ssub.s32 %s21, %s33
    %p204 = scmp.eq.s32.totalorder %s203, 0
    %s206 = sadd.s32 %s205, 1
    %s207 = scalar_select %p204, %s205, %s206
    %p210 = pneg %p204
    %p211 = scmp.eq.s32.totalorder %s14, 1
    %p212 = por %p210, %p211
    %p213 = scmp.ne.s32.totalorder %s205, %s208
    %p214 = scmp.eq.s32.totalorder %s14, 0
    %p215 = por %p213, %p214
    %p216 = scmp.ne.s32.totalorder %s205, %s208
    %p217 = scmp.eq.s32.totalorder %s19, 1
    %p218 = por %p216, %p217
    %p219 = scmp.ne.s32.totalorder %s208, %s209
    %p220 = scmp.eq.s32.totalorder %s19, 0
    %p221 = por %p219, %p220
    %p222 = scmp.ne.s32.totalorder %s208, %s209
    %p223 = scmp.eq.s32.totalorder %s20, 1
    %p224 = por %p222, %p223
    %p226 = scmp.ne.s32.totalorder %s209, %s225
    %p227 = scmp.eq.s32.totalorder %s20, 0
    %p228 = por %p226, %p227
    %s229 = ssub.s32 %s21, %s33
    %p230 = scmp.eq.s32.totalorder %s229, 0
    %s232 = sadd.s32 %s231, 1
    %s233 = scalar_select %p230, %s231, %s232
    %p236 = pneg %p230
    %p237 = scmp.eq.s32.totalorder %s14, 1
    %p238 = por %p236, %p237
    %p239 = scmp.ne.s32.totalorder %s231, %s234
    %p240 = scmp.eq.s32.totalorder %s14, 0
    %p241 = por %p239, %p240
    %p242 = scmp.ne.s32.totalorder %s231, %s234
    %p243 = scmp.eq.s32.totalorder %s19, 1
    %p244 = por %p242, %p243
    %p245 = scmp.ne.s32.totalorder %s234, %s235
    %p246 = scmp.eq.s32.totalorder %s19, 0
    %p247 = por %p245, %p246
    %p248 = scmp.ne.s32.totalorder %s234, %s235
    %p249 = scmp.eq.s32.totalorder %s20, 1
    %p250 = por %p248, %p249
    %p252 = scmp.ne.s32.totalorder %s235, %s251
    %p253 = scmp.eq.s32.totalorder %s20, 0
    %p254 = por %p252, %p253
    %p255 = scmp.le.s32.totalorder 1, %s14
    %p256 = scmp.lt.s32.totalorder %s14, 3
    %p257 = pnand %p255, %p256
    %p258 = pneg %p257
    // Predicated region
    $region9: #{graphsage_forward.2} parent=5 // pred_check
      _
    $region10: #{graphsage_forward.2} parent=5 // pred_check_branch
      %260 = sbr.rel (%p257) target = $region12
    $region11: #{graphsage_forward.2} parent=5 // pred_region
      %s261 = ssub.s32 %s14, 1
      // Predicated region
      $region13: #{graphsage_forward.2} parent=11 // pred_check
        %p262 = pneg %p80
      $region14: #{graphsage_forward.2} parent=11 // pred_check_branch
        %264 = sbr.rel (%p262) target = $region16
      $region15: #{graphsage_forward.2} parent=11 // pred_region
        %s265 = smul.u32 48, %s24
        %p266 = scmp.lt.s32.totalorder %s265, 47
        %s267 = scalar_select %p266, %s265, 47
        %s268 = smul.addr %s267, 4
        %s269 = scalar_lea.vmem %s1, %s268
        %s270 = smul.u32 48, %s24
      $region16: #{graphsage_forward.2} parent=11 // pred_fallthru
        _
      // Predicated region
      $region17: #{graphsage_forward.2} parent=11 // pred_check
        %p271 = pneg %p127
      $region18: #{graphsage_forward.2} parent=11 // pred_check_branch
        %273 = sbr.rel (%p271) target = $region20
      $region19: #{graphsage_forward.2} parent=11 // pred_region
        _
      $region20: #{graphsage_forward.2} parent=11 // pred_fallthru
        _
      // Predicated region
      $region21: #{graphsage_forward.2} parent=11 // pred_check
        %p274 = pneg %p148
      $region22: #{graphsage_forward.2} parent=11 // pred_check_branch
        %276 = sbr.rel (%p274) target = $region24
      $region23: #{graphsage_forward.2} parent=11 // pred_region
        _
      $region24: #{graphsage_forward.2} parent=11 // pred_fallthru
        _
      // Predicated region
      $region25: #{graphsage_forward.2} parent=11 // pred_check
        %p277 = pneg %p169
      $region26: #{graphsage_forward.2} parent=11 // pred_check_branch
        %279 = sbr.rel (%p277) target = $region28
      $region27: #{graphsage_forward.2} parent=11 // pred_region
        _
      $region28: #{graphsage_forward.2} parent=11 // pred_fallthru
        _
    $region12: #{graphsage_forward.2} parent=5 // pred_fallthru
      _
    %p280 = scmp.lt.s32.totalorder %s14, 2
    // Predicated region
    $region29: #{graphsage_forward.2} parent=5 // pred_check
      %p281 = pneg %p280
    $region30: #{graphsage_forward.2} parent=5 // pred_check_branch
      %283 = sbr.rel (%p281) target = $region32
    $region31: #{graphsage_forward.2} parent=5 // pred_region
      // Predicated region
      $region33: #{graphsage_forward.2} parent=31 // pred_check
        %p284 = pneg %p48
      $region34: #{graphsage_forward.2} parent=31 // pred_check_branch
        %286 = sbr.rel (%p284) target = $region36
      $region35: #{graphsage_forward.2} parent=31 // pred_region
        %s287 = smul.u32 6, %s21
        %s288 = smul.u32 3, %s22
        %p289 = scmp.lt.s32.totalorder %s287, 11
        %s290 = scalar_select %p289, %s287, 11
        %p291 = scmp.lt.s32.totalorder %s288, 2
        %s292 = scalar_select %p291, %s288, 2
        %s293 = smul.addr %s290, 3
        %s294 = sadd.s32 %s292, %s293
        %s295 = smul.addr %s294, 8
        %s296 = scalar_lea.vmem %s0, %s295
        %s297 = smul.u32 6, %s21
        %s298 = smul.u32 3, %s22
      $region36: #{graphsage_forward.2} parent=31 // pred_fallthru
        _
      // Predicated region
      $region37: #{graphsage_forward.2} parent=31 // pred_check
        %p299 = pneg %p100
      $region38: #{graphsage_forward.2} parent=31 // pred_check_branch
        %301 = sbr.rel (%p299) target = $region40
      $region39: #{graphsage_forward.2} parent=31 // pred_region
        %s302 = smul.u32 24, %s21
        %p303 = scmp.lt.s32.totalorder %s302, 47
        %s304 = scalar_select %p303, %s302, 47
        %s305 = smul.addr %s304, 4
        %s306 = scalar_lea.vmem %s2, %s305
        %s307 = smul.u32 24, %s21
      $region40: #{graphsage_forward.2} parent=31 // pred_fallthru
        _
      // Predicated region
      $region41: #{graphsage_forward.2} parent=31 // pred_check
        %p308 = pneg %p189
      $region42: #{graphsage_forward.2} parent=31 // pred_check_branch
        %310 = sbr.rel (%p308) target = $region44
      $region43: #{graphsage_forward.2} parent=31 // pred_region
        %s311 = smul.u32 24, %s21
        %p312 = scmp.lt.s32.totalorder %s311, 47
        %s313 = scalar_select %p312, %s311, 47
        %s314 = smul.addr %s313, 8
        %s315 = scalar_lea.vmem %s6, %s314
        %s316 = smul.u32 24, %s21
      $region44: #{graphsage_forward.2} parent=31 // pred_fallthru
        _
      // Predicated region
      $region45: #{graphsage_forward.2} parent=31 // pred_check
        %p317 = pneg %p215
      $region46: #{graphsage_forward.2} parent=31 // pred_check_branch
        %319 = sbr.rel (%p317) target = $region48
      $region47: #{graphsage_forward.2} parent=31 // pred_region
        %s320 = smul.u32 24, %s21
        %p321 = scmp.lt.s32.totalorder %s320, 47
        %s322 = scalar_select %p321, %s320, 47
        %s323 = smul.addr %s322, 8
        %s324 = scalar_lea.vmem %s7, %s323
        %s325 = smul.u32 24, %s21
      $region48: #{graphsage_forward.2} parent=31 // pred_fallthru
        _
    $region32: #{graphsage_forward.2} parent=5 // pred_fallthru
      _
    %p326 = scmp.le.s32.totalorder 1, %s14
    %p327 = scmp.lt.s32.totalorder %s14, 3
    %p328 = pnand %p326, %p327
    %p329 = pneg %p328
    // Predicated region
    $region49: #{graphsage_forward.2} parent=5 // pred_check
      _
    $region50: #{graphsage_forward.2} parent=5 // pred_check_branch
      %331 = sbr.rel (%p328) target = $region52
    $region51: #{graphsage_forward.2} parent=5 // pred_region
      %s332 = ssub.s32 %s14, 1
      %s333 = smul.u32 6, %s23
      %s334 = smul.u32 3, %s24
      %p335 = scmp.lt.s32.totalorder %s333, 11
      %s336 = scalar_select %p335, %s333, 11
      %p337 = scmp.lt.s32.totalorder %s334, 2
      %s338 = scalar_select %p337, %s334, 2
      %s339 = smul.addr %s336, 3
      %s340 = sadd.s32 %s338, %s339
      %s341 = smul.addr %s340, 8
      %s342 = scalar_lea.vmem %s0, %s341
      %p343 = pneg %p54
      %p344 = pneg %p51
      %s345 = smul.u32 48, %s24
      %p346 = scmp.lt.s32.totalorder %s345, 47
      %s347 = scalar_select %p346, %s345, 47
      %s348 = smul.addr %s347, 4
      %s349 = scalar_lea.vmem %s1, %s348
      %p350 = pneg %p80
      %p351 = pneg %p77
      %s352 = smul.u32 24, %s23
      %p353 = scmp.lt.s32.totalorder %s352, 47
      %s354 = scalar_select %p353, %s352, 47
      %s355 = smul.addr %s354, 4
      %s356 = scalar_lea.vmem %s2, %s355
      %p357 = pneg %p106
      %p358 = pneg %p103
      %p359 = pneg %p127
      %p360 = pneg %p124
      %p361 = pneg %p148
      %p362 = pneg %p145
      %p363 = pneg %p169
      %p364 = pneg %p166
      %s365 = smul.u32 24, %s23
      %p366 = scmp.lt.s32.totalorder %s365, 47
      %s367 = scalar_select %p366, %s365, 47
      %s368 = smul.addr %s367, 8
      %s369 = scalar_lea.vmem %s6, %s368
      %p370 = pneg %p195
      %p371 = pneg %p192
      %s372 = smul.u32 24, %s23
      %p373 = scmp.lt.s32.totalorder %s372, 47
      %s374 = scalar_select %p373, %s372, 47
      %s375 = smul.addr %s374, 8
      %s376 = scalar_lea.vmem %s7, %s375
      %p377 = pneg %p221
      %p378 = pneg %p218
      %p379 = pneg %p247
      %p380 = pneg %p244
      %s381 = smul.u32 24, %s23
      %p382 = scmp.lt.s32.totalorder %s381, 47
      %s383 = scalar_select %p382, %s381, 47
      %s384 = smul.addr %s383, 4
      %s385 = scalar_lea.vmem %s8, %s384
      %s386 = smul.u32 6, %s23
      %s387 = smul.u32 3, %s24
      %p388 = scmp.lt.s32.totalorder %s386, 11
      %s389 = scalar_select %p388, %s386, 11
      %p390 = scmp.lt.s32.totalorder %s387, 2
      %s391 = scalar_select %p390, %s387, 2
      %s392 = smul.addr %s389, 3
      %s393 = sadd.s32 %s391, %s392
      %s394 = smul.addr %s393, 8
      %s395 = scalar_lea.vmem %s0, %s394
      %s396 = smul.u32 6, %s23
      %s397 = smul.u32 3, %s24
      %s398 = smul.u32 48, %s24
      %p399 = scmp.lt.s32.totalorder %s398, 47
      %s400 = scalar_select %p399, %s398, 47
      %s401 = smul.addr %s400, 4
      %s402 = scalar_lea.vmem %s1, %s401
      %s403 = smul.u32 48, %s24
      %s404 = smul.u32 24, %s23
      %p405 = scmp.lt.s32.totalorder %s404, 47
      %s406 = scalar_select %p405, %s404, 47
      %s407 = smul.addr %s406, 4
      %s408 = scalar_lea.vmem %s2, %s407
      %s409 = smul.u32 24, %s23
      %s410 = smul.u32 24, %s23
      %p411 = scmp.lt.s32.totalorder %s410, 47
      %s412 = scalar_select %p411, %s410, 47
      %s413 = smul.addr %s412, 8
      %s414 = scalar_lea.vmem %s6, %s413
      %s415 = smul.u32 24, %s23
      %s416 = smul.u32 24, %s23
      %p417 = scmp.lt.s32.totalorder %s416, 47
      %s418 = scalar_select %p417, %s416, 47
      %s419 = smul.addr %s418, 8
      %s420 = scalar_lea.vmem %s7, %s419
      %s421 = smul.u32 24, %s23
      %s422 = smul.u32 24, %s23
      %p423 = scmp.lt.s32.totalorder %s422, 47
      %s424 = scalar_select %p423, %s422, 47
      %s425 = smul.addr %s424, 4
      %s426 = scalar_lea.vmem %s8, %s425
      %s427 = smul.u32 24, %s23
      %p429 = scmp.eq.s32.totalorder %s24, 0
      // Predicated region
      $region53: #{graphsage_forward.2} parent=51 // pred_check
        %p430 = pneg %p429
      $region54: #{graphsage_forward.2} parent=51 // pred_check_branch
        %432 = sbr.rel (%p430) target = $region56
      $region55: #{graphsage_forward.2} parent=51 // pred_region
        %vm433 = vcmask 130048
        %434 = vst.msk [vmem:[#allocation2] sm:$0xff] %vm433, 0.0
        %435 = vst.msk [vmem:[#allocation2 + $0x8] sm:$0xff] %vm433, 0.0
        %436 = vst.msk [vmem:[#allocation2 + $0x10] sm:$0xff] %vm433, 0.0
        %437 = vst.msk [vmem:[#allocation2 + $0x18] sm:$0xff] %vm433, 0.0
        %438 = vst.msk [vmem:[#allocation2 + $0x20] sm:$0xff] %vm433, 0.0
        %439 = vst.msk [vmem:[#allocation2 + $0x28] sm:$0xff] %vm433, 0.0
        %440 = vst.msk [vmem:[#allocation2 + $0x30] sm:$0xff] %vm433, 0.0
        %441 = vst.msk [vmem:[#allocation2 + $0x38] sm:$0xff] %vm433, 0.0
        %442 = vst.msk [vmem:[#allocation2 + $0x40] sm:$0xff] %vm433, 0.0
        %443 = vst.msk [vmem:[#allocation2 + $0x48] sm:$0xff] %vm433, 0.0
        %444 = vst.msk [vmem:[#allocation2 + $0x50] sm:$0xff] %vm433, 0.0
        %445 = vst.msk [vmem:[#allocation2 + $0x58] sm:$0xff] %vm433, 0.0
        %446 = vst.msk [vmem:[#allocation2 + $0x60] sm:$0xff] %vm433, 0.0
        %447 = vst.msk [vmem:[#allocation2 + $0x68] sm:$0xff] %vm433, 0.0
        %448 = vst.msk [vmem:[#allocation2 + $0x70] sm:$0xff] %vm433, 0.0
        %449 = vst.msk [vmem:[#allocation2 + $0x78] sm:$0xff] %vm433, 0.0
        %450 = vst.msk [vmem:[#allocation2 + $0x80] sm:$0xff] %vm433, 0.0
        %451 = vst.msk [vmem:[#allocation2 + $0x88] sm:$0xff] %vm433, 0.0
        %452 = vst.msk [vmem:[#allocation2 + $0x90] sm:$0xff] %vm433, 0.0
        %453 = vst.msk [vmem:[#allocation2 + $0x98] sm:$0xff] %vm433, 0.0
        %454 = vst.msk [vmem:[#allocation2 + $0xa0] sm:$0xff] %vm433, 0.0
        %455 = vst.msk [vmem:[#allocation2 + $0xa8] sm:$0xff] %vm433, 0.0
        %456 = vst.msk [vmem:[#allocation2 + $0xb0] sm:$0xff] %vm433, 0.0
        %457 = vst.msk [vmem:[#allocation2 + $0xb8] sm:$0xff] %vm433, 0.0
      $region56: #{graphsage_forward.2} parent=51 // pred_fallthru
        _
      %v458 = vld [vmem:[%s395] sm:$0xff]
      %v459 = vld [vmem:[%s395 + $0x8] sm:$0xff]
      %v460 = vld [vmem:[%s395 + $0x10] sm:$0xff]
      %v461 = vld [vmem:[%s395 + $0x18] sm:$0xff]
      %v462 = vld [vmem:[%s395 + $0x20] sm:$0xff]
      %v463 = vld [vmem:[%s395 + $0x28] sm:$0xff]
      %v464 = vld [vmem:[%s395 + $0x30] sm:$0xff]
      %v465 = vld [vmem:[%s395 + $0x38] sm:$0xff]
      %v466 = vld [vmem:[%s395 + $0x40] sm:$0xff]
      %v467 = vld [vmem:[%s395 + $0x48] sm:$0xff]
      %v468 = vld [vmem:[%s395 + $0x50] sm:$0xff]
      %v469 = vld [vmem:[%s395 + $0x58] sm:$0xff]
      %v470 = vld [vmem:[%s395 + $0x60] sm:$0xff]
      %v471 = vld [vmem:[%s395 + $0x68] sm:$0xff]
      %v472 = vld [vmem:[%s395 + $0x70] sm:$0xff]
      %v473 = vld [vmem:[%s395 + $0x78] sm:$0xff]
      %v474 = vld [vmem:[%s395 + $0x80] sm:$0xff]
      %v475 = vld [vmem:[%s395 + $0x88] sm:$0xff]
      %v476 = vunpack.c.l.s8.bf16 %v458
      %v477 = vunpack.c.l.s8.bf16 %v459
      %v478 = vunpack.c.l.s8.bf16 %v460
      %v479 = vunpack.c.h.s8.bf16 %v458
      %v480 = vunpack.c.h.s8.bf16 %v459
      %v481 = vunpack.c.h.s8.bf16 %v460
      %v482 = vunpack.c.l.s8.bf16 %v461
      %v483 = vunpack.c.l.s8.bf16 %v462
      %v484 = vunpack.c.l.s8.bf16 %v463
      %v485 = vunpack.c.h.s8.bf16 %v461
      %v486 = vunpack.c.h.s8.bf16 %v462
      %v487 = vunpack.c.h.s8.bf16 %v463
      %v488 = vunpack.c.l.s8.bf16 %v464
      %v489 = vunpack.c.l.s8.bf16 %v465
      %v490 = vunpack.c.l.s8.bf16 %v466
      %v491 = vunpack.c.h.s8.bf16 %v464
      %v492 = vunpack.c.h.s8.bf16 %v465
      %v493 = vunpack.c.h.s8.bf16 %v466
      %v494 = vunpack.c.l.s8.bf16 %v467
      %v495 = vunpack.c.l.s8.bf16 %v468
      %v496 = vunpack.c.l.s8.bf16 %v469
      %v497 = vunpack.c.h.s8.bf16 %v467
      %v498 = vunpack.c.h.s8.bf16 %v468
      %v499 = vunpack.c.h.s8.bf16 %v469
      %v500 = vunpack.c.l.s8.bf16 %v470
      %v501 = vunpack.c.l.s8.bf16 %v471
      %v502 = vunpack.c.l.s8.bf16 %v472
      %v503 = vunpack.c.h.s8.bf16 %v470
      %v504 = vunpack.c.h.s8.bf16 %v471
      %v505 = vunpack.c.h.s8.bf16 %v472
      %v506 = vunpack.c.l.s8.bf16 %v473
      %v507 = vunpack.c.l.s8.bf16 %v474
      %v508 = vunpack.c.l.s8.bf16 %v475
      %v509 = vunpack.c.h.s8.bf16 %v473
      %v510 = vunpack.c.h.s8.bf16 %v474
      %v511 = vunpack.c.h.s8.bf16 %v475
      %v512 = vld [vmem:[#allocation2] sm:$0xff]
      %v513 = vld [vmem:[#allocation2 + $0x8] sm:$0xff]
      %v514 = vld [vmem:[#allocation2 + $0x10] sm:$0xff]
      %v515 = vld [vmem:[#allocation2 + $0x18] sm:$0xff]
      %v516 = vld [vmem:[#allocation2 + $0x20] sm:$0xff]
      %v517 = vld [vmem:[#allocation2 + $0x28] sm:$0xff]
      %v518 = vld [vmem:[#allocation2 + $0x30] sm:$0xff]
      %v519 = vld [vmem:[#allocation2 + $0x38] sm:$0xff]
      %v520 = vld [vmem:[#allocation2 + $0x40] sm:$0xff]
      %v521 = vld [vmem:[#allocation2 + $0x48] sm:$0xff]
      %v522 = vld [vmem:[#allocation2 + $0x50] sm:$0xff]
      %v523 = vld [vmem:[#allocation2 + $0x58] sm:$0xff]
      %v524 = vld [vmem:[#allocation2 + $0x60] sm:$0xff]
      %v525 = vld [vmem:[#allocation2 + $0x68] sm:$0xff]
      %v526 = vld [vmem:[#allocation2 + $0x70] sm:$0xff]
      %v527 = vld [vmem:[#allocation2 + $0x78] sm:$0xff]
      %v528 = vld [vmem:[#allocation2 + $0x80] sm:$0xff]
      %v529 = vld [vmem:[#allocation2 + $0x88] sm:$0xff]
      %v530 = vld [vmem:[#allocation2 + $0x90] sm:$0xff]
      %v531 = vld [vmem:[#allocation2 + $0x98] sm:$0xff]
      %v532 = vld [vmem:[#allocation2 + $0xa0] sm:$0xff]
      %v533 = vld [vmem:[#allocation2 + $0xa8] sm:$0xff]
      %v534 = vld [vmem:[#allocation2 + $0xb0] sm:$0xff]
      %v535 = vld [vmem:[#allocation2 + $0xb8] sm:$0xff]
      %v536 = vld [vmem:[%s402] sm:$0xf]
      %v537 = vld [vmem:[%s402 + $0x4] sm:$0xf]
      %v538 = vld [vmem:[%s402 + $0x8] sm:$0xf]
      %v539 = vld [vmem:[%s402 + $0xc] sm:$0xf]
      %v540 = vld [vmem:[%s402 + $0x10] sm:$0xf]
      %v541 = vld [vmem:[%s402 + $0x14] sm:$0xf]
      %v542 = vld [vmem:[%s402 + $0x18] sm:$0xf]
      %v543 = vld [vmem:[%s402 + $0x1c] sm:$0xf]
      %v544 = vld [vmem:[%s402 + $0x20] sm:$0xf]
      %v545 = vld [vmem:[%s402 + $0x24] sm:$0xf]
      %v546 = vld [vmem:[%s402 + $0x28] sm:$0xf]
      %v547 = vld [vmem:[%s402 + $0x2c] sm:$0xf]
      %v548 = vld [vmem:[%s402 + $0x30] sm:$0xf]
      %v549 = vld [vmem:[%s402 + $0x34] sm:$0xf]
      %v550 = vld [vmem:[%s402 + $0x38] sm:$0xf]
      %v551 = vld [vmem:[%s402 + $0x3c] sm:$0xf]
      %v552 = vld [vmem:[%s402 + $0x40] sm:$0xf]
      %v553 = vld [vmem:[%s402 + $0x44] sm:$0xf]
      %v554 = vld [vmem:[%s402 + $0x48] sm:$0xf]
      %v555 = vld [vmem:[%s402 + $0x4c] sm:$0xf]
      %v556 = vld [vmem:[%s402 + $0x50] sm:$0xf]
      %v557 = vld [vmem:[%s402 + $0x54] sm:$0xf]
      %v558 = vld [vmem:[%s402 + $0x58] sm:$0xf]
      %v559 = vld [vmem:[%s402 + $0x5c] sm:$0xf]
      %v560 = vld [vmem:[%s402 + $0x60] sm:$0xf]
      %v561 = vld [vmem:[%s402 + $0x64] sm:$0xf]
      %v562 = vld [vmem:[%s402 + $0x68] sm:$0xf]
      %v563 = vld [vmem:[%s402 + $0x6c] sm:$0xf]
      %v564 = vld [vmem:[%s402 + $0x70] sm:$0xf]
      %v565 = vld [vmem:[%s402 + $0x74] sm:$0xf]
      %v566 = vld [vmem:[%s402 + $0x78] sm:$0xf]
      %v567 = vld [vmem:[%s402 + $0x7c] sm:$0xf]
      %v568 = vld [vmem:[%s402 + $0x80] sm:$0xf]
      %v569 = vld [vmem:[%s402 + $0x84] sm:$0xf]
      %v570 = vld [vmem:[%s402 + $0x88] sm:$0xf]
      %v571 = vld [vmem:[%s402 + $0x8c] sm:$0xf]
      %v572 = vld [vmem:[%s402 + $0x90] sm:$0xf]
      %v573 = vld [vmem:[%s402 + $0x94] sm:$0xf]
      %v574 = vld [vmem:[%s402 + $0x98] sm:$0xf]
      %v575 = vld [vmem:[%s402 + $0x9c] sm:$0xf]
      %v576 = vld [vmem:[%s402 + $0xa0] sm:$0xf]
      %v577 = vld [vmem:[%s402 + $0xa4] sm:$0xf]
      %v578 = vld [vmem:[%s402 + $0xa8] sm:$0xf]
      %v579 = vld [vmem:[%s402 + $0xac] sm:$0xf]
      %v580 = vld [vmem:[%s402 + $0xb0] sm:$0xf]
      %v581 = vld [vmem:[%s402 + $0xb4] sm:$0xf]
      %v582 = vld [vmem:[%s402 + $0xb8] sm:$0xf]
      %v583 = vld [vmem:[%s402 + $0xbc] sm:$0xf]
      %v632 = vunpack.c.l.b16 %v536
      %v633 = vunpack.c.l.b16 %v537
      %v634 = vunpack.c.l.b16 %v538
      %v635 = vunpack.c.l.b16 %v539
      %v636 = vunpack.c.l.b16 %v540
      %v637 = vunpack.c.l.b16 %v541
      %v638 = vunpack.c.l.b16 %v542
      %v639 = vunpack.c.l.b16 %v543
      %v640 = vunpack.c.l.b16 %v544
      %v641 = vunpack.c.l.b16 %v545
      %v642 = vunpack.c.l.b16 %v546
      %v643 = vunpack.c.l.b16 %v547
      %v644 = vunpack.c.l.b16 %v548
      %v645 = vunpack.c.l.b16 %v549
      %v646 = vunpack.c.l.b16 %v550
      %v647 = vunpack.c.l.b16 %v551
      %v648 = vunpack.c.l.b16 %v552
      %v649 = vunpack.c.l.b16 %v553
      %v650 = vunpack.c.l.b16 %v554
      %v651 = vunpack.c.l.b16 %v555
      %v652 = vunpack.c.l.b16 %v556
      %v653 = vunpack.c.l.b16 %v557
      %v654 = vunpack.c.l.b16 %v558
      %v655 = vunpack.c.l.b16 %v559
      %v656 = vunpack.c.l.b16 %v560
      %v657 = vunpack.c.l.b16 %v561
      %v658 = vunpack.c.l.b16 %v562
      %v659 = vunpack.c.l.b16 %v563
      %v660 = vunpack.c.l.b16 %v564
      %v661 = vunpack.c.l.b16 %v565
      %v662 = vunpack.c.l.b16 %v566
      %v663 = vunpack.c.l.b16 %v567
      %v664 = vunpack.c.l.b16 %v568
      %v665 = vunpack.c.l.b16 %v569
      %v666 = vunpack.c.l.b16 %v570
      %v667 = vunpack.c.l.b16 %v571
      %v668 = vunpack.c.l.b16 %v572
      %v669 = vunpack.c.l.b16 %v573
      %v670 = vunpack.c.l.b16 %v574
      %v671 = vunpack.c.l.b16 %v575
      %v672 = vunpack.c.l.b16 %v576
      %v673 = vunpack.c.l.b16 %v577
      %v674 = vunpack.c.l.b16 %v578
      %v675 = vunpack.c.l.b16 %v579
      %v676 = vunpack.c.l.b16 %v580
      %v677 = vunpack.c.l.b16 %v581
      %v678 = vunpack.c.l.b16 %v582
      %v679 = vunpack.c.l.b16 %v583
      %v680 = vpack.c.b16 %v633, %v632
      %v681 = vpack.c.b16 %v635, %v634
      %v682 = vpack.c.b16 %v637, %v636
      %v683 = vpack.c.b16 %v639, %v638
      %v684 = vpack.c.b16 %v641, %v640
      %v685 = vpack.c.b16 %v643, %v642
      %v686 = vpack.c.b16 %v645, %v644
      %v687 = vpack.c.b16 %v647, %v646
      %v688 = vpack.c.b16 %v649, %v648
      %v689 = vpack.c.b16 %v651, %v650
      %v690 = vpack.c.b16 %v653, %v652
      %v691 = vpack.c.b16 %v655, %v654
      %v692 = vpack.c.b16 %v657, %v656
      %v693 = vpack.c.b16 %v659, %v658
      %v694 = vpack.c.b16 %v661, %v660
      %v695 = vpack.c.b16 %v663, %v662
      %v696 = vpack.c.b16 %v665, %v664
      %v697 = vpack.c.b16 %v667, %v666
      %v698 = vpack.c.b16 %v669, %v668
      %v699 = vpack.c.b16 %v671, %v670
      %v700 = vpack.c.b16 %v673, %v672
      %v701 = vpack.c.b16 %v675, %v674
      %v702 = vpack.c.b16 %v677, %v676
      %v703 = vpack.c.b16 %v679, %v678
      %728 = vmatprep.subr.bf16.mxu0 0
      %729 = vmatpush1.bf16.msra.mxu0 %v680
      %730 = vmatprep.subr.bf16.mxu0 0
      %731 = vmatpush1.bf16.msra.mxu0 %v681
      %732 = vmatprep.subr.bf16.mxu0 0
      %733 = vmatpush1.bf16.msra.mxu0 %v682
      %734 = vmatprep.subr.bf16.mxu0 0
      %735 = vmatpush1.bf16.msra.mxu0 %v683
      %736 = vmatprep.subr.bf16.mxu0 0
      %737 = vmatpush1.bf16.msra.mxu0 %v684
      %738 = vmatprep.subr.bf16.mxu0 0
      %739 = vmatpush1.bf16.msra.mxu0 %v685
      %740 = vmatprep.subr.bf16.mxu0 0
      %741 = vmatpush1.bf16.msra.mxu0 %v686
      %742 = vmatprep.subr.bf16.mxu0 0
      %743 = vmatpush1.bf16.msra.mxu0 %v687
      %744 = vmatprep.subr.bf16.mxu0 0
      %745 = vmatpush1.bf16.msra.mxu0 %v688
      %746 = vmatprep.subr.bf16.mxu0 0
      %747 = vmatpush1.bf16.msra.mxu0 %v689
      %748 = vmatprep.subr.bf16.mxu0 0
      %749 = vmatpush1.bf16.msra.mxu0 %v690
      %750 = vmatprep.subr.bf16.mxu0 0
      %751 = vmatpush1.bf16.msra.mxu0 %v691
      %752 = vmatprep.subr.bf16.mxu0 0
      %753 = vmatpush1.bf16.msra.mxu0 %v692
      %754 = vmatprep.subr.bf16.mxu0 0
      %755 = vmatpush1.bf16.msra.mxu0 %v693
      %756 = vmatprep.subr.bf16.mxu0 0
      %757 = vmatpush1.bf16.msra.mxu0 %v694
      %758 = vmatprep.subr.bf16.mxu0 0
      %759 = vmatpush1.bf16.msra.mxu0 %v695
      %760 = vmatprep.mubr.bf16.mxu0 %v477
      %761 = vmatmul.mubr.bf16.gmra.mrb[0].mxu0 %v476
      %v762 = vpop.f32.mrb[0].mxu0
      %v763 = vadd.f32 0.0, %v762
      %v764 = vpop.f32.mrb[0].mxu0
      %v765 = vpop.f32.mrb[0].mxu0
      %v766 = vadd.f32 0.0, %v765
      %v767 = vpop.f32.mrb[0].mxu0
      %768 = vmatprep.mubr.bf16.mxu0 %v480
      %769 = vmatmul.mubr.bf16.gmra.mrb[0].mxu0 %v479
      %v770 = vpop.f32.mrb[0].mxu0
      %v771 = vadd.f32 0.0, %v770
      %v772 = vpop.f32.mrb[0].mxu0
      %v773 = vpop.f32.mrb[0].mxu0
      %v774 = vadd.f32 0.0, %v773
      %v775 = vpop.f32.mrb[0].mxu0
      %776 = vmatprep.mubr.bf16.mxu0 %v483
      %777 = vmatmul.mubr.bf16.gmra.mrb[0].mxu0 %v482
      %v778 = vpop.f32.mrb[0].mxu0
      %v779 = vadd.f32 0.0, %v778
      %v780 = vpop.f32.mrb[0].mxu0
      %v781 = vpop.f32.mrb[0].mxu0
      %v782 = vadd.f32 0.0, %v781
      %v783 = vpop.f32.mrb[0].mxu0
      %784 = vmatprep.mubr.bf16.mxu0 %v486
      %785 = vmatmul.mubr.bf16.gmra.mrb[0].mxu0 %v485
      %v786 = vpop.f32.mrb[0].mxu0
      %v787 = vadd.f32 0.0, %v786
      %v788 = vpop.f32.mrb[0].mxu0
      %v789 = vpop.f32.mrb[0].mxu0
      %v790 = vadd.f32 0.0, %v789
      %v791 = vpop.f32.mrb[0].mxu0
      %792 = vmatprep.mubr.bf16.mxu0 %v489
      %793 = vmatmul.mubr.bf16.gmra.mrb[0].mxu0 %v488
      %v794 = vpop.f32.mrb[0].mxu0
      %v795 = vadd.f32 0.0, %v794
      %v796 = vpop.f32.mrb[0].mxu0
      %v797 = vpop.f32.mrb[0].mxu0
      %v798 = vadd.f32 0.0, %v797
      %v799 = vpop.f32.mrb[0].mxu0
      %800 = vmatprep.mubr.bf16.mxu0 %v492
      %801 = vmatmul.mubr.bf16.gmra.mrb[0].mxu0 %v491
      %v802 = vpop.f32.mrb[0].mxu0
      %v803 = vadd.f32 0.0, %v802
      %v804 = vpop.f32.mrb[0].mxu0
      %v805 = vpop.f32.mrb[0].mxu0
      %v806 = vadd.f32 0.0, %v805
      %v807 = vpop.f32.mrb[0].mxu0
      %808 = vmatprep.mubr.bf16.mxu0 %v495
      %809 = vmatmul.mubr.bf16.gmra.mrb[0].mxu0 %v494
      %v810 = vpop.f32.mrb[0].mxu0
      %v811 = vadd.f32 0.0, %v810
      %v812 = vpop.f32.mrb[0].mxu0
      %v813 = vpop.f32.mrb[0].mxu0
      %v814 = vadd.f32 0.0, %v813
      %v815 = vpop.f32.mrb[0].mxu0
      %816 = vmatprep.mubr.bf16.mxu0 %v498
      %817 = vmatmul.mubr.bf16.gmra.mrb[0].mxu0 %v497
      %v818 = vpop.f32.mrb[0].mxu0
      %v819 = vadd.f32 0.0, %v818
      %v820 = vpop.f32.mrb[0].mxu0
      %v821 = vpop.f32.mrb[0].mxu0
      %v822 = vadd.f32 0.0, %v821
      %v823 = vpop.f32.mrb[0].mxu0
      %824 = vmatprep.mubr.bf16.mxu0 %v501
      %825 = vmatmul.mubr.bf16.gmra.mrb[0].mxu0 %v500
      %v826 = vpop.f32.mrb[0].mxu0
      %v827 = vadd.f32 0.0, %v826
      %v828 = vpop.f32.mrb[0].mxu0
      %v829 = vpop.f32.mrb[0].mxu0
      %v830 = vadd.f32 0.0, %v829
      %v831 = vpop.f32.mrb[0].mxu0
      %832 = vmatprep.mubr.bf16.mxu0 %v504
      %833 = vmatmul.mubr.bf16.gmra.mrb[0].mxu0 %v503
      %v834 = vpop.f32.mrb[0].mxu0
      %v835 = vadd.f32 0.0, %v834
      %v836 = vpop.f32.mrb[0].mxu0
      %v837 = vpop.f32.mrb[0].mxu0
      %v838 = vadd.f32 0.0, %v837
      %v839 = vpop.f32.mrb[0].mxu0
      %840 = vmatprep.mubr.bf16.mxu0 %v507
      %841 = vmatmul.mubr.bf16.gmra.mrb[0].mxu0 %v506
      %v842 = vpop.f32.mrb[0].mxu0
      %v843 = vadd.f32 0.0, %v842
      %v844 = vpop.f32.mrb[0].mxu0
      %v845 = vpop.f32.mrb[0].mxu0
      %v846 = vadd.f32 0.0, %v845
      %v847 = vpop.f32.mrb[0].mxu0
      %848 = vmatprep.mubr.bf16.mxu0 %v510
      %849 = vmatmul.mubr.bf16.gmra.mrb[0].mxu0 %v509
      %v850 = vpop.f32.mrb[0].mxu0
      %v851 = vadd.f32 0.0, %v850
      %v852 = vpop.f32.mrb[0].mxu0
      %v853 = vpop.f32.mrb[0].mxu0
      %v854 = vadd.f32 0.0, %v853
      %v855 = vpop.f32.mrb[0].mxu0
      %856 = vdwg.mxu0
      %857 = vmatprep.subr.bf16.mxu0 0
      %858 = vmatpush1.bf16.msra.mxu0 %v696
      %859 = vmatprep.subr.bf16.mxu0 0
      %860 = vmatpush1.bf16.msra.mxu0 %v697
      %861 = vmatprep.subr.bf16.mxu0 0
      %862 = vmatpush1.bf16.msra.mxu0 %v698
      %863 = vmatprep.subr.bf16.mxu0 0
      %864 = vmatpush1.bf16.msra.mxu0 %v699
      %865 = vmatprep.subr.bf16.mxu0 0
      %866 = vmatpush1.bf16.msra.mxu0 %v700
      %867 = vmatprep.subr.bf16.mxu0 0
      %868 = vmatpush1.bf16.msra.mxu0 %v701
      %869 = vmatprep.subr.bf16.mxu0 0
      %870 = vmatpush1.bf16.msra.mxu0 %v702
      %871 = vmatprep.subr.bf16.mxu0 0
      %872 = vmatpush1.bf16.msra.mxu0 %v703
      %873 = vmatprep.subr.bf16.mxu0 0
      %874 = vmatpush1.bf16.msra.mxu0 0
      %875 = vmatprep.subr.bf16.mxu0 0
      %876 = vmatpush1.bf16.msra.mxu0 0
      %877 = vmatprep.subr.bf16.mxu0 0
      %878 = vmatpush1.bf16.msra.mxu0 0
      %879 = vmatprep.subr.bf16.mxu0 0
      %880 = vmatpush1.bf16.msra.mxu0 0
      %881 = vmatprep.subr.bf16.mxu0 0
      %882 = vmatpush1.bf16.msra.mxu0 0
      %883 = vmatprep.subr.bf16.mxu0 0
      %884 = vmatpush1.bf16.msra.mxu0 0
      %885 = vmatprep.subr.bf16.mxu0 0
      %886 = vmatpush1.bf16.msra.mxu0 0
      %887 = vmatprep.subr.bf16.mxu0 0
      %888 = vmatpush1.bf16.msra.mxu0 0
      %889 = vmatprep.mubr.bf16.mxu0 0
      %890 = vmatmul.mubr.bf16.gmra.mrb[0].mxu0 %v478
      %v891 = vpop.f32.mrb[0].mxu0
      %v892 = vadd.f32 %v763, %v891
      %v893 = vpop.f32.mrb[0].mxu0
      %v894 = vpop.f32.mrb[0].mxu0
      %v895 = vadd.f32 %v766, %v894
      %v896 = vpop.f32.mrb[0].mxu0
      %897 = vmatprep.mubr.bf16.mxu0 0
      %898 = vmatmul.mubr.bf16.gmra.mrb[0].mxu0 %v481
      %v899 = vpop.f32.mrb[0].mxu0
      %v900 = vadd.f32 %v771, %v899
      %v901 = vpop.f32.mrb[0].mxu0
      %v902 = vpop.f32.mrb[0].mxu0
      %v903 = vadd.f32 %v774, %v902
      %v904 = vpop.f32.mrb[0].mxu0
      %905 = vmatprep.mubr.bf16.mxu0 0
      %906 = vmatmul.mubr.bf16.gmra.mrb[0].mxu0 %v484
      %v907 = vpop.f32.mrb[0].mxu0
      %v908 = vadd.f32 %v779, %v907
      %v909 = vpop.f32.mrb[0].mxu0
      %v910 = vpop.f32.mrb[0].mxu0
      %v911 = vadd.f32 %v782, %v910
      %v912 = vpop.f32.mrb[0].mxu0
      %913 = vmatprep.mubr.bf16.mxu0 0
      %914 = vmatmul.mubr.bf16.gmra.mrb[0].mxu0 %v487
      %v915 = vpop.f32.mrb[0].mxu0
      %v916 = vadd.f32 %v787, %v915
      %v917 = vpop.f32.mrb[0].mxu0
      %v918 = vpop.f32.mrb[0].mxu0
      %v919 = vadd.f32 %v790, %v918
      %v920 = vpop.f32.mrb[0].mxu0
      %921 = vmatprep.mubr.bf16.mxu0 0
      %922 = vmatmul.mubr.bf16.gmra.mrb[0].mxu0 %v490
      %v923 = vpop.f32.mrb[0].mxu0
      %v924 = vadd.f32 %v795, %v923
      %v925 = vpop.f32.mrb[0].mxu0
      %v926 = vpop.f32.mrb[0].mxu0
      %v927 = vadd.f32 %v798, %v926
      %v928 = vpop.f32.mrb[0].mxu0
      %929 = vmatprep.mubr.bf16.mxu0 0
      %930 = vmatmul.mubr.bf16.gmra.mrb[0].mxu0 %v493
      %v931 = vpop.f32.mrb[0].mxu0
      %v932 = vadd.f32 %v803, %v931
      %v933 = vpop.f32.mrb[0].mxu0
      %v934 = vpop.f32.mrb[0].mxu0
      %v935 = vadd.f32 %v806, %v934
      %v936 = vpop.f32.mrb[0].mxu0
      %937 = vmatprep.mubr.bf16.mxu0 0
      %938 = vmatmul.mubr.bf16.gmra.mrb[0].mxu0 %v496
      %v939 = vpop.f32.mrb[0].mxu0
      %v940 = vadd.f32 %v811, %v939
      %v941 = vpop.f32.mrb[0].mxu0
      %v942 = vpop.f32.mrb[0].mxu0
      %v943 = vadd.f32 %v814, %v942
      %v944 = vpop.f32.mrb[0].mxu0
      %945 = vmatprep.mubr.bf16.mxu0 0
      %946 = vmatmul.mubr.bf16.gmra.mrb[0].mxu0 %v499
      %v947 = vpop.f32.mrb[0].mxu0
      %v948 = vadd.f32 %v819, %v947
      %v949 = vpop.f32.mrb[0].mxu0
      %v950 = vpop.f32.mrb[0].mxu0
      %v951 = vadd.f32 %v822, %v950
      %v952 = vpop.f32.mrb[0].mxu0
      %953 = vmatprep.mubr.bf16.mxu0 0
      %954 = vmatmul.mubr.bf16.gmra.mrb[0].mxu0 %v502
      %v955 = vpop.f32.mrb[0].mxu0
      %v956 = vadd.f32 %v827, %v955
      %v957 = vpop.f32.mrb[0].mxu0
      %v958 = vpop.f32.mrb[0].mxu0
      %v959 = vadd.f32 %v830, %v958
      %v960 = vpop.f32.mrb[0].mxu0
      %961 = vmatprep.mubr.bf16.mxu0 0
      %962 = vmatmul.mubr.bf16.gmra.mrb[0].mxu0 %v505
      %v963 = vpop.f32.mrb[0].mxu0
      %v964 = vadd.f32 %v835, %v963
      %v965 = vpop.f32.mrb[0].mxu0
      %v966 = vpop.f32.mrb[0].mxu0
      %v967 = vadd.f32 %v838, %v966
      %v968 = vpop.f32.mrb[0].mxu0
      %969 = vmatprep.mubr.bf16.mxu0 0
      %970 = vmatmul.mubr.bf16.gmra.mrb[0].mxu0 %v508
      %v971 = vpop.f32.mrb[0].mxu0
      %v972 = vadd.f32 %v843, %v971
      %v973 = vpop.f32.mrb[0].mxu0
      %v974 = vpop.f32.mrb[0].mxu0
      %v975 = vadd.f32 %v846, %v974
      %v976 = vpop.f32.mrb[0].mxu0
      %977 = vmatprep.mubr.bf16.mxu0 0
      %978 = vmatmul.mubr.bf16.gmra.mrb[0].mxu0 %v511
      %v979 = vpop.f32.mrb[0].mxu0
      %v980 = vadd.f32 %v851, %v979
      %v981 = vpop.f32.mrb[0].mxu0
      %v982 = vpop.f32.mrb[0].mxu0
      %v983 = vadd.f32 %v854, %v982
      %v984 = vpop.f32.mrb[0].mxu0
      %985 = vdwg.mxu0
      %v986 = vadd.f32 %v512, %v892
      %v987 = vadd.f32 %v513, %v895
      %v988 = vadd.f32 %v514, %v900
      %v989 = vadd.f32 %v515, %v903
      %v990 = vadd.f32 %v516, %v908
      %v991 = vadd.f32 %v517, %v911
      %v992 = vadd.f32 %v518, %v916
      %v993 = vadd.f32 %v519, %v919
      %v994 = vadd.f32 %v520, %v924
      %v995 = vadd.f32 %v521, %v927
      %v996 = vadd.f32 %v522, %v932
      %v997 = vadd.f32 %v523, %v935
      %v998 = vadd.f32 %v524, %v940
      %v999 = vadd.f32 %v525, %v943
      %v1000 = vadd.f32 %v526, %v948
      %v1001 = vadd.f32 %v527, %v951
      %v1002 = vadd.f32 %v528, %v956
      %v1003 = vadd.f32 %v529, %v959
      %v1004 = vadd.f32 %v530, %v964
      %v1005 = vadd.f32 %v531, %v967
      %v1006 = vadd.f32 %v532, %v972
      %v1007 = vadd.f32 %v533, %v975
      %v1008 = vadd.f32 %v534, %v980
      %v1009 = vadd.f32 %v535, %v983
      %vm1010 = vcmask 130048
      %1011 = vst.msk [vmem:[#allocation2] sm:$0xff] %vm1010, %v986
      %1012 = vst.msk [vmem:[#allocation2 + $0x8] sm:$0xff] %vm1010, %v987
      %1013 = vst.msk [vmem:[#allocation2 + $0x10] sm:$0xff] %vm1010, %v988
      %1014 = vst.msk [vmem:[#allocation2 + $0x18] sm:$0xff] %vm1010, %v989
      %1015 = vst.msk [vmem:[#allocation2 + $0x20] sm:$0xff] %vm1010, %v990
      %1016 = vst.msk [vmem:[#allocation2 + $0x28] sm:$0xff] %vm1010, %v991
      %1017 = vst.msk [vmem:[#allocation2 + $0x30] sm:$0xff] %vm1010, %v992
      %1018 = vst.msk [vmem:[#allocation2 + $0x38] sm:$0xff] %vm1010, %v993
      %1019 = vst.msk [vmem:[#allocation2 + $0x40] sm:$0xff] %vm1010, %v994
      %1020 = vst.msk [vmem:[#allocation2 + $0x48] sm:$0xff] %vm1010, %v995
      %1021 = vst.msk [vmem:[#allocation2 + $0x50] sm:$0xff] %vm1010, %v996
      %1022 = vst.msk [vmem:[#allocation2 + $0x58] sm:$0xff] %vm1010, %v997
      %1023 = vst.msk [vmem:[#allocation2 + $0x60] sm:$0xff] %vm1010, %v998
      %1024 = vst.msk [vmem:[#allocation2 + $0x68] sm:$0xff] %vm1010, %v999
      %1025 = vst.msk [vmem:[#allocation2 + $0x70] sm:$0xff] %vm1010, %v1000
      %1026 = vst.msk [vmem:[#allocation2 + $0x78] sm:$0xff] %vm1010, %v1001
      %1027 = vst.msk [vmem:[#allocation2 + $0x80] sm:$0xff] %vm1010, %v1002
      %1028 = vst.msk [vmem:[#allocation2 + $0x88] sm:$0xff] %vm1010, %v1003
      %1029 = vst.msk [vmem:[#allocation2 + $0x90] sm:$0xff] %vm1010, %v1004
      %1030 = vst.msk [vmem:[#allocation2 + $0x98] sm:$0xff] %vm1010, %v1005
      %1031 = vst.msk [vmem:[#allocation2 + $0xa0] sm:$0xff] %vm1010, %v1006
      %1032 = vst.msk [vmem:[#allocation2 + $0xa8] sm:$0xff] %vm1010, %v1007
      %1033 = vst.msk [vmem:[#allocation2 + $0xb0] sm:$0xff] %vm1010, %v1008
      %1034 = vst.msk [vmem:[#allocation2 + $0xb8] sm:$0xff] %vm1010, %v1009
      // Predicated region
      $region57: #{graphsage_forward.2} parent=51 // pred_check
        %p1035 = pneg %p429
      $region58: #{graphsage_forward.2} parent=51 // pred_check_branch
        %1037 = sbr.rel (%p1035) target = $region60
      $region59: #{graphsage_forward.2} parent=51 // pred_region
        %v1038 = vld [vmem:[#allocation2] sm:$0xff]
        %v1039 = vld [vmem:[#allocation2 + $0x8] sm:$0xff]
        %v1040 = vld [vmem:[#allocation2 + $0x10] sm:$0xff]
        %v1041 = vld [vmem:[#allocation2 + $0x18] sm:$0xff]
        %v1042 = vld [vmem:[#allocation2 + $0x20] sm:$0xff]
        %v1043 = vld [vmem:[#allocation2 + $0x28] sm:$0xff]
        %v1044 = vld [vmem:[#allocation2 + $0x30] sm:$0xff]
        %v1045 = vld [vmem:[#allocation2 + $0x38] sm:$0xff]
        %v1046 = vld [vmem:[#allocation2 + $0x40] sm:$0xff]
        %v1047 = vld [vmem:[#allocation2 + $0x48] sm:$0xff]
        %v1048 = vld [vmem:[#allocation2 + $0x50] sm:$0xff]
        %v1049 = vld [vmem:[#allocation2 + $0x58] sm:$0xff]
        %v1050 = vld [vmem:[#allocation2 + $0x60] sm:$0xff]
        %v1051 = vld [vmem:[#allocation2 + $0x68] sm:$0xff]
        %v1052 = vld [vmem:[#allocation2 + $0x70] sm:$0xff]
        %v1053 = vld [vmem:[#allocation2 + $0x78] sm:$0xff]
        %v1054 = vld [vmem:[#allocation2 + $0x80] sm:$0xff]
        %v1055 = vld [vmem:[#allocation2 + $0x88] sm:$0xff]
        %v1056 = vld [vmem:[#allocation2 + $0x90] sm:$0xff]
        %v1057 = vld [vmem:[#allocation2 + $0x98] sm:$0xff]
        %v1058 = vld [vmem:[#allocation2 + $0xa0] sm:$0xff]
        %v1059 = vld [vmem:[#allocation2 + $0xa8] sm:$0xff]
        %v1060 = vld [vmem:[#allocation2 + $0xb0] sm:$0xff]
        %v1061 = vld [vmem:[#allocation2 + $0xb8] sm:$0xff]
        %v1062 = vld [vmem:[%s414] sm:$0xff]
        %v1063 = vld [vmem:[%s414 + $0x8] sm:$0xff]
        %v1064 = vld [vmem:[%s414 + $0x10] sm:$0xff]
        %v1065 = vld [vmem:[%s414 + $0x18] sm:$0xff]
        %v1066 = vld [vmem:[%s414 + $0x20] sm:$0xff]
        %v1067 = vld [vmem:[%s414 + $0x28] sm:$0xff]
        %v1068 = vld [vmem:[%s414 + $0x30] sm:$0xff]
        %v1069 = vld [vmem:[%s414 + $0x38] sm:$0xff]
        %v1070 = vld [vmem:[%s414 + $0x40] sm:$0xff]
        %v1071 = vld [vmem:[%s414 + $0x48] sm:$0xff]
        %v1072 = vld [vmem:[%s414 + $0x50] sm:$0xff]
        %v1073 = vld [vmem:[%s414 + $0x58] sm:$0xff]
        %v1074 = vld [vmem:[%s414 + $0x60] sm:$0xff]
        %v1075 = vld [vmem:[%s414 + $0x68] sm:$0xff]
        %v1076 = vld [vmem:[%s414 + $0x70] sm:$0xff]
        %v1077 = vld [vmem:[%s414 + $0x78] sm:$0xff]
        %v1078 = vld [vmem:[%s414 + $0x80] sm:$0xff]
        %v1079 = vld [vmem:[%s414 + $0x88] sm:$0xff]
        %v1080 = vld [vmem:[%s414 + $0x90] sm:$0xff]
        %v1081 = vld [vmem:[%s414 + $0x98] sm:$0xff]
        %v1082 = vld [vmem:[%s414 + $0xa0] sm:$0xff]
        %v1083 = vld [vmem:[%s414 + $0xa8] sm:$0xff]
        %v1084 = vld [vmem:[%s414 + $0xb0] sm:$0xff]
        %v1085 = vld [vmem:[%s414 + $0xb8] sm:$0xff]
        %1087 = vset.pattern.permute.xlu0 0
        %1088 = vperm.xlu0 %1087, %v1062
        %v1089 = vpop.permute.xlu0 %1088
        %1092 = vset.pattern.permute.xlu0 0
        %1093 = vperm.xlu0 %1092, %v1063
        %v1094 = vpop.permute.xlu0 %1093
        %1097 = vset.pattern.permute.xlu0 0
        %1098 = vperm.xlu0 %1097, %v1064
        %v1099 = vpop.permute.xlu0 %1098
        %1102 = vset.pattern.permute.xlu0 0
        %1103 = vperm.xlu0 %1102, %v1065
        %v1104 = vpop.permute.xlu0 %1103
        %1107 = vset.pattern.permute.xlu0 0
        %1108 = vperm.xlu0 %1107, %v1066
        %v1109 = vpop.permute.xlu0 %1108
        %1112 = vset.pattern.permute.xlu0 0
        %1113 = vperm.xlu0 %1112, %v1067
        %v1114 = vpop.permute.xlu0 %1113
        %1117 = vset.pattern.permute.xlu0 0
        %1118 = vperm.xlu0 %1117, %v1068
        %v1119 = vpop.permute.xlu0 %1118
        %1122 = vset.pattern.permute.xlu0 0
        %1123 = vperm.xlu0 %1122, %v1069
        %v1124 = vpop.permute.xlu0 %1123
        %1127 = vset.pattern.permute.xlu0 0
        %1128 = vperm.xlu0 %1127, %v1070
        %v1129 = vpop.permute.xlu0 %1128
        %1132 = vset.pattern.permute.xlu0 0
        %1133 = vperm.xlu0 %1132, %v1071
        %v1134 = vpop.permute.xlu0 %1133
        %1137 = vset.pattern.permute.xlu0 0
        %1138 = vperm.xlu0 %1137, %v1072
        %v1139 = vpop.permute.xlu0 %1138
        %1142 = vset.pattern.permute.xlu0 0
        %1143 = vperm.xlu0 %1142, %v1073
        %v1144 = vpop.permute.xlu0 %1143
        %1147 = vset.pattern.permute.xlu0 0
        %1148 = vperm.xlu0 %1147, %v1074
        %v1149 = vpop.permute.xlu0 %1148
        %1152 = vset.pattern.permute.xlu0 0
        %1153 = vperm.xlu0 %1152, %v1075
        %v1154 = vpop.permute.xlu0 %1153
        %1157 = vset.pattern.permute.xlu0 0
        %1158 = vperm.xlu0 %1157, %v1076
        %v1159 = vpop.permute.xlu0 %1158
        %1162 = vset.pattern.permute.xlu0 0
        %1163 = vperm.xlu0 %1162, %v1077
        %v1164 = vpop.permute.xlu0 %1163
        %1167 = vset.pattern.permute.xlu0 0
        %1168 = vperm.xlu0 %1167, %v1078
        %v1169 = vpop.permute.xlu0 %1168
        %1172 = vset.pattern.permute.xlu0 0
        %1173 = vperm.xlu0 %1172, %v1079
        %v1174 = vpop.permute.xlu0 %1173
        %1177 = vset.pattern.permute.xlu0 0
        %1178 = vperm.xlu0 %1177, %v1080
        %v1179 = vpop.permute.xlu0 %1178
        %1182 = vset.pattern.permute.xlu0 0
        %1183 = vperm.xlu0 %1182, %v1081
        %v1184 = vpop.permute.xlu0 %1183
        %1187 = vset.pattern.permute.xlu0 0
        %1188 = vperm.xlu0 %1187, %v1082
        %v1189 = vpop.permute.xlu0 %1188
        %1192 = vset.pattern.permute.xlu0 0
        %1193 = vperm.xlu0 %1192, %v1083
        %v1194 = vpop.permute.xlu0 %1193
        %1197 = vset.pattern.permute.xlu0 0
        %1198 = vperm.xlu0 %1197, %v1084
        %v1199 = vpop.permute.xlu0 %1198
        %1202 = vset.pattern.permute.xlu0 0
        %1203 = vperm.xlu0 %1202, %v1085
        %v1204 = vpop.permute.xlu0 %1203
        %v1206 = vmul.f32 %v1038, %v1089
        %v1207 = vmul.f32 %v1039, %v1094
        %v1208 = vmul.f32 %v1040, %v1099
        %v1209 = vmul.f32 %v1041, %v1104
        %v1210 = vmul.f32 %v1042, %v1109
        %v1211 = vmul.f32 %v1043, %v1114
        %v1212 = vmul.f32 %v1044, %v1119
        %v1213 = vmul.f32 %v1045, %v1124
        %v1214 = vmul.f32 %v1046, %v1129
        %v1215 = vmul.f32 %v1047, %v1134
        %v1216 = vmul.f32 %v1048, %v1139
        %v1217 = vmul.f32 %v1049, %v1144
        %v1218 = vmul.f32 %v1050, %v1149
        %v1219 = vmul.f32 %v1051, %v1154
        %v1220 = vmul.f32 %v1052, %v1159
        %v1221 = vmul.f32 %v1053, %v1164
        %v1222 = vmul.f32 %v1054, %v1169
        %v1223 = vmul.f32 %v1055, %v1174
        %v1224 = vmul.f32 %v1056, %v1179
        %v1225 = vmul.f32 %v1057, %v1184
        %v1226 = vmul.f32 %v1058, %v1189
        %v1227 = vmul.f32 %v1059, %v1194
        %v1228 = vmul.f32 %v1060, %v1199
        %v1229 = vmul.f32 %v1061, %v1204
        %v1230 = vpack.c.bf16 %v1207, %v1206
        %v1231 = vpack.c.bf16 %v1209, %v1208
        %v1232 = vpack.c.bf16 %v1211, %v1210
        %v1233 = vpack.c.bf16 %v1213, %v1212
        %v1234 = vpack.c.bf16 %v1215, %v1214
        %v1235 = vpack.c.bf16 %v1217, %v1216
        %v1236 = vpack.c.bf16 %v1219, %v1218
        %v1237 = vpack.c.bf16 %v1221, %v1220
        %v1238 = vpack.c.bf16 %v1223, %v1222
        %v1239 = vpack.c.bf16 %v1225, %v1224
        %v1240 = vpack.c.bf16 %v1227, %v1226
        %v1241 = vpack.c.bf16 %v1229, %v1228
        %v1242 = vld [vmem:[%s3] sm:$0xf]
        %v1243 = vld [vmem:[%s3 + $0x4] sm:$0xf]
        %v1244 = vld [vmem:[%s408] sm:$0xf]
        %v1245 = vld [vmem:[%s408 + $0x4] sm:$0xf]
        %v1246 = vld [vmem:[%s408 + $0x8] sm:$0xf]
        %v1247 = vld [vmem:[%s408 + $0xc] sm:$0xf]
        %v1248 = vld [vmem:[%s408 + $0x10] sm:$0xf]
        %v1249 = vld [vmem:[%s408 + $0x14] sm:$0xf]
        %v1250 = vld [vmem:[%s408 + $0x18] sm:$0xf]
        %v1251 = vld [vmem:[%s408 + $0x1c] sm:$0xf]
        %v1252 = vld [vmem:[%s408 + $0x20] sm:$0xf]
        %v1253 = vld [vmem:[%s408 + $0x24] sm:$0xf]
        %v1254 = vld [vmem:[%s408 + $0x28] sm:$0xf]
        %v1255 = vld [vmem:[%s408 + $0x2c] sm:$0xf]
        %v1256 = vld [vmem:[%s408 + $0x30] sm:$0xf]
        %v1257 = vld [vmem:[%s408 + $0x34] sm:$0xf]
        %v1258 = vld [vmem:[%s408 + $0x38] sm:$0xf]
        %v1259 = vld [vmem:[%s408 + $0x3c] sm:$0xf]
        %v1260 = vld [vmem:[%s408 + $0x40] sm:$0xf]
        %v1261 = vld [vmem:[%s408 + $0x44] sm:$0xf]
        %v1262 = vld [vmem:[%s408 + $0x48] sm:$0xf]
        %v1263 = vld [vmem:[%s408 + $0x4c] sm:$0xf]
        %v1264 = vld [vmem:[%s408 + $0x50] sm:$0xf]
        %v1265 = vld [vmem:[%s408 + $0x54] sm:$0xf]
        %v1266 = vld [vmem:[%s408 + $0x58] sm:$0xf]
        %v1267 = vld [vmem:[%s408 + $0x5c] sm:$0xf]
        %v1268 = vld [vmem:[%s4] sm:$0xf]
        %v1269 = vld [vmem:[%s4 + $0x4] sm:$0xf]
        %v1294 = vunpack.c.l.b16 %v1244
        %v1295 = vunpack.c.l.b16 %v1245
        %v1296 = vunpack.c.l.b16 %v1246
        %v1297 = vunpack.c.l.b16 %v1247
        %v1298 = vunpack.c.l.b16 %v1248
        %v1299 = vunpack.c.l.b16 %v1249
        %v1300 = vunpack.c.l.b16 %v1250
        %v1301 = vunpack.c.l.b16 %v1251
        %v1302 = vunpack.c.l.b16 %v1252
        %v1303 = vunpack.c.l.b16 %v1253
        %v1304 = vunpack.c.l.b16 %v1254
        %v1305 = vunpack.c.l.b16 %v1255
        %v1306 = vunpack.c.l.b16 %v1256
        %v1307 = vunpack.c.l.b16 %v1257
        %v1308 = vunpack.c.l.b16 %v1258
        %v1309 = vunpack.c.l.b16 %v1259
        %v1310 = vunpack.c.l.b16 %v1260
        %v1311 = vunpack.c.l.b16 %v1261
        %v1312 = vunpack.c.l.b16 %v1262
        %v1313 = vunpack.c.l.b16 %v1263
        %v1314 = vunpack.c.l.b16 %v1264
        %v1315 = vunpack.c.l.b16 %v1265
        %v1316 = vunpack.c.l.b16 %v1266
        %v1317 = vunpack.c.l.b16 %v1267
        %v1318 = vpack.c.b16 %v1295, %v1294
        %v1319 = vpack.c.b16 %v1297, %v1296
        %v1320 = vpack.c.b16 %v1299, %v1298
        %v1321 = vpack.c.b16 %v1301, %v1300
        %v1322 = vpack.c.b16 %v1303, %v1302
        %v1323 = vpack.c.b16 %v1305, %v1304
        %v1324 = vpack.c.b16 %v1307, %v1306
        %v1325 = vpack.c.b16 %v1309, %v1308
        %v1326 = vpack.c.b16 %v1311, %v1310
        %v1327 = vpack.c.b16 %v1313, %v1312
        %v1328 = vpack.c.b16 %v1315, %v1314
        %v1329 = vpack.c.b16 %v1317, %v1316
        %v1332 = vunpack.c.l.b16 %v1268
        %v1333 = vunpack.c.l.b16 %v1269
        %v1334 = vpack.c.b16 %v1333, %v1332
        %v1337 = vsel %vm1010, %v1318, 0
        %v1340 = vsel %vm1010, %v1319, 0
        %v1343 = vsel %vm1010, %v1320, 0
        %v1346 = vsel %vm1010, %v1321, 0
        %v1349 = vsel %vm1010, %v1322, 0
        %v1352 = vsel %vm1010, %v1323, 0
        %v1355 = vsel %vm1010, %v1324, 0
        %v1358 = vsel %vm1010, %v1325, 0
        %v1361 = vsel %vm1010, %v1326, 0
        %v1364 = vsel %vm1010, %v1327, 0
        %v1367 = vsel %vm1010, %v1328, 0
        %v1370 = vsel %vm1010, %v1329, 0
        %1372 = vmatprep.subr.bf16.mxu0 0
        %1373 = vmatpush1.bf16.msra.mxu0 %v1334
        %1374 = vmatprep.subr.bf16.mxu0 0
        %1375 = vmatpush1.bf16.msra.mxu0 0
        %1376 = vmatprep.subr.bf16.mxu0 0
        %1377 = vmatpush1.bf16.msra.mxu0 0
        %1378 = vmatprep.subr.bf16.mxu0 0
        %1379 = vmatpush1.bf16.msra.mxu0 0
        %1380 = vmatprep.subr.bf16.mxu0 0
        %1381 = vmatpush1.bf16.msra.mxu0 0
        %1382 = vmatprep.subr.bf16.mxu0 0
        %1383 = vmatpush1.bf16.msra.mxu0 0
        %1384 = vmatprep.subr.bf16.mxu0 0
        %1385 = vmatpush1.bf16.msra.mxu0 0
        %1386 = vmatprep.subr.bf16.mxu0 0
        %1387 = vmatpush1.bf16.msra.mxu0 0
        %1388 = vmatprep.subr.bf16.mxu0 0
        %1389 = vmatpush1.bf16.msra.mxu0 0
        %1390 = vmatprep.subr.bf16.mxu0 0
        %1391 = vmatpush1.bf16.msra.mxu0 0
        %1392 = vmatprep.subr.bf16.mxu0 0
        %1393 = vmatpush1.bf16.msra.mxu0 0
        %1394 = vmatprep.subr.bf16.mxu0 0
        %1395 = vmatpush1.bf16.msra.mxu0 0
        %1396 = vmatprep.subr.bf16.mxu0 0
        %1397 = vmatpush1.bf16.msra.mxu0 0
        %1398 = vmatprep.subr.bf16.mxu0 0
        %1399 = vmatpush1.bf16.msra.mxu0 0
        %1400 = vmatprep.subr.bf16.mxu0 0
        %1401 = vmatpush1.bf16.msra.mxu0 0
        %1402 = vmatprep.subr.bf16.mxu0 0
        %1403 = vmatpush1.bf16.msra.mxu0 0
        %1404 = vmatprep.mubr.bf16.mxu0 0
        %1405 = vmatmul.mubr.bf16.gmra.mrb[0].mxu0 %v1337
        %v1406 = vpop.f32.mrb[0].mxu0
        %v1407 = vadd.f32 0.0, %v1406
        %v1408 = vpop.f32.mrb[0].mxu0
        %v1409 = vpop.f32.mrb[0].mxu0
        %v1410 = vadd.f32 0.0, %v1409
        %v1411 = vpop.f32.mrb[0].mxu0
        %1412 = vmatprep.mubr.bf16.mxu0 0
        %1413 = vmatmul.mubr.bf16.gmra.mrb[0].mxu0 %v1340
        %v1414 = vpop.f32.mrb[0].mxu0
        %v1415 = vadd.f32 0.0, %v1414
        %v1416 = vpop.f32.mrb[0].mxu0
        %v1417 = vpop.f32.mrb[0].mxu0
        %v1418 = vadd.f32 0.0, %v1417
        %v1419 = vpop.f32.mrb[0].mxu0
        %1420 = vmatprep.mubr.bf16.mxu0 0
        %1421 = vmatmul.mubr.bf16.gmra.mrb[0].mxu0 %v1343
        %v1422 = vpop.f32.mrb[0].mxu0
        %v1423 = vadd.f32 0.0, %v1422
        %v1424 = vpop.f32.mrb[0].mxu0
        %v1425 = vpop.f32.mrb[0].mxu0
        %v1426 = vadd.f32 0.0, %v1425
        %v1427 = vpop.f32.mrb[0].mxu0
        %1428 = vmatprep.mubr.bf16.mxu0 0
        %1429 = vmatmul.mubr.bf16.gmra.mrb[0].mxu0 %v1346
        %v1430 = vpop.f32.mrb[0].mxu0
        %v1431 = vadd.f32 0.0, %v1430
        %v1432 = vpop.f32.mrb[0].mxu0
        %v1433 = vpop.f32.mrb[0].mxu0
        %v1434 = vadd.f32 0.0, %v1433
        %v1435 = vpop.f32.mrb[0].mxu0
        %1436 = vmatprep.mubr.bf16.mxu0 0
        %1437 = vmatmul.mubr.bf16.gmra.mrb[0].mxu0 %v1349
        %v1438 = vpop.f32.mrb[0].mxu0
        %v1439 = vadd.f32 0.0, %v1438
        %v1440 = vpop.f32.mrb[0].mxu0
        %v1441 = vpop.f32.mrb[0].mxu0
        %v1442 = vadd.f32 0.0, %v1441
        %v1443 = vpop.f32.mrb[0].mxu0
        %1444 = vmatprep.mubr.bf16.mxu0 0
        %1445 = vmatmul.mubr.bf16.gmra.mrb[0].mxu0 %v1352
        %v1446 = vpop.f32.mrb[0].mxu0
        %v1447 = vadd.f32 0.0, %v1446
        %v1448 = vpop.f32.mrb[0].mxu0
        %v1449 = vpop.f32.mrb[0].mxu0
        %v1450 = vadd.f32 0.0, %v1449
        %v1451 = vpop.f32.mrb[0].mxu0
        %1452 = vmatprep.mubr.bf16.mxu0 0
        %1453 = vmatmul.mubr.bf16.gmra.mrb[0].mxu0 %v1355
        %v1454 = vpop.f32.mrb[0].mxu0
        %v1455 = vadd.f32 0.0, %v1454
        %v1456 = vpop.f32.mrb[0].mxu0
        %v1457 = vpop.f32.mrb[0].mxu0
        %v1458 = vadd.f32 0.0, %v1457
        %v1459 = vpop.f32.mrb[0].mxu0
        %1460 = vmatprep.mubr.bf16.mxu0 0
        %1461 = vmatmul.mubr.bf16.gmra.mrb[0].mxu0 %v1358
        %v1462 = vpop.f32.mrb[0].mxu0
        %v1463 = vadd.f32 0.0, %v1462
        %v1464 = vpop.f32.mrb[0].mxu0
        %v1465 = vpop.f32.mrb[0].mxu0
        %v1466 = vadd.f32 0.0, %v1465
        %v1467 = vpop.f32.mrb[0].mxu0
        %1468 = vmatprep.mubr.bf16.mxu0 0
        %1469 = vmatmul.mubr.bf16.gmra.mrb[0].mxu0 %v1361
        %v1470 = vpop.f32.mrb[0].mxu0
        %v1471 = vadd.f32 0.0, %v1470
        %v1472 = vpop.f32.mrb[0].mxu0
        %v1473 = vpop.f32.mrb[0].mxu0
        %v1474 = vadd.f32 0.0, %v1473
        %v1475 = vpop.f32.mrb[0].mxu0
        %1476 = vmatprep.mubr.bf16.mxu0 0
        %1477 = vmatmul.mubr.bf16.gmra.mrb[0].mxu0 %v1364
        %v1478 = vpop.f32.mrb[0].mxu0
        %v1479 = vadd.f32 0.0, %v1478
        %v1480 = vpop.f32.mrb[0].mxu0
        %v1481 = vpop.f32.mrb[0].mxu0
        %v1482 = vadd.f32 0.0, %v1481
        %v1483 = vpop.f32.mrb[0].mxu0
        %1484 = vmatprep.mubr.bf16.mxu0 0
        %1485 = vmatmul.mubr.bf16.gmra.mrb[0].mxu0 %v1367
        %v1486 = vpop.f32.mrb[0].mxu0
        %v1487 = vadd.f32 0.0, %v1486
        %v1488 = vpop.f32.mrb[0].mxu0
        %v1489 = vpop.f32.mrb[0].mxu0
        %v1490 = vadd.f32 0.0, %v1489
        %v1491 = vpop.f32.mrb[0].mxu0
        %1492 = vmatprep.mubr.bf16.mxu0 0
        %1493 = vmatmul.mubr.bf16.gmra.mrb[0].mxu0 %v1370
        %v1494 = vpop.f32.mrb[0].mxu0
        %v1495 = vadd.f32 0.0, %v1494
        %v1496 = vpop.f32.mrb[0].mxu0
        %v1497 = vpop.f32.mrb[0].mxu0
        %v1498 = vadd.f32 0.0, %v1497
        %v1499 = vpop.f32.mrb[0].mxu0
        %1500 = vdwg.mxu0
        %v1503 = vunpack.c.l.b16 %v1242
        %v1504 = vunpack.c.l.b16 %v1243
        %v1505 = vpack.c.b16 %v1504, %v1503
        %v1508 = vsel %vm1010, %v1230, 0
        %v1511 = vsel %vm1010, %v1231, 0
        %v1514 = vsel %vm1010, %v1232, 0
        %v1517 = vsel %vm1010, %v1233, 0
        %v1520 = vsel %vm1010, %v1234, 0
        %v1523 = vsel %vm1010, %v1235, 0
        %v1526 = vsel %vm1010, %v1236, 0
        %v1529 = vsel %vm1010, %v1237, 0
        %v1532 = vsel %vm1010, %v1238, 0
        %v1535 = vsel %vm1010, %v1239, 0
        %v1538 = vsel %vm1010, %v1240, 0
        %v1541 = vsel %vm1010, %v1241, 0
        %1543 = vmatprep.subr.bf16.mxu0 0
        %1544 = vmatpush1.bf16.msra.mxu0 %v1505
        %1545 = vmatprep.subr.bf16.mxu0 0
        %1546 = vmatpush1.bf16.msra.mxu0 0
        %1547 = vmatprep.subr.bf16.mxu0 0
        %1548 = vmatpush1.bf16.msra.mxu0 0
        %1549 = vmatprep.subr.bf16.mxu0 0
        %1550 = vmatpush1.bf16.msra.mxu0 0
        %1551 = vmatprep.subr.bf16.mxu0 0
        %1552 = vmatpush1.bf16.msra.mxu0 0
        %1553 = vmatprep.subr.bf16.mxu0 0
        %1554 = vmatpush1.bf16.msra.mxu0 0
        %1555 = vmatprep.subr.bf16.mxu0 0
        %1556 = vmatpush1.bf16.msra.mxu0 0
        %1557 = vmatprep.subr.bf16.mxu0 0
        %1558 = vmatpush1.bf16.msra.mxu0 0
        %1559 = vmatprep.subr.bf16.mxu0 0
        %1560 = vmatpush1.bf16.msra.mxu0 0
        %1561 = vmatprep.subr.bf16.mxu0 0
        %1562 = vmatpush1.bf16.msra.mxu0 0
        %1563 = vmatprep.subr.bf16.mxu0 0
        %1564 = vmatpush1.bf16.msra.mxu0 0
        %1565 = vmatprep.subr.bf16.mxu0 0
        %1566 = vmatpush1.bf16.msra.mxu0 0
        %1567 = vmatprep.subr.bf16.mxu0 0
        %1568 = vmatpush1.bf16.msra.mxu0 0
        %1569 = vmatprep.subr.bf16.mxu0 0
        %1570 = vmatpush1.bf16.msra.mxu0 0
        %1571 = vmatprep.subr.bf16.mxu0 0
        %1572 = vmatpush1.bf16.msra.mxu0 0
        %1573 = vmatprep.subr.bf16.mxu0 0
        %1574 = vmatpush1.bf16.msra.mxu0 0
        %1575 = vmatprep.mubr.bf16.mxu0 0
        %1576 = vmatmul.mubr.bf16.gmra.mrb[0].mxu0 %v1508
        %v1577 = vpop.f32.mrb[0].mxu0
        %v1578 = vadd.f32 %v1407, %v1577
        %v1579 = vpop.f32.mrb[0].mxu0
        %v1580 = vpop.f32.mrb[0].mxu0
        %v1581 = vadd.f32 %v1410, %v1580
        %v1582 = vpop.f32.mrb[0].mxu0
        %1583 = vmatprep.mubr.bf16.mxu0 0
        %1584 = vmatmul.mubr.bf16.gmra.mrb[0].mxu0 %v1511
        %v1585 = vpop.f32.mrb[0].mxu0
        %v1586 = vadd.f32 %v1415, %v1585
        %v1587 = vpop.f32.mrb[0].mxu0
        %v1588 = vpop.f32.mrb[0].mxu0
        %v1589 = vadd.f32 %v1418, %v1588
        %v1590 = vpop.f32.mrb[0].mxu0
        %1591 = vmatprep.mubr.bf16.mxu0 0
        %1592 = vmatmul.mubr.bf16.gmra.mrb[0].mxu0 %v1514
        %v1593 = vpop.f32.mrb[0].mxu0
        %v1594 = vadd.f32 %v1423, %v1593
        %v1595 = vpop.f32.mrb[0].mxu0
        %v1596 = vpop.f32.mrb[0].mxu0
        %v1597 = vadd.f32 %v1426, %v1596
        %v1598 = vpop.f32.mrb[0].mxu0
        %1599 = vmatprep.mubr.bf16.mxu0 0
        %1600 = vmatmul.mubr.bf16.gmra.mrb[0].mxu0 %v1517
        %v1601 = vpop.f32.mrb[0].mxu0
        %v1602 = vadd.f32 %v1431, %v1601
        %v1603 = vpop.f32.mrb[0].mxu0
        %v1604 = vpop.f32.mrb[0].mxu0
        %v1605 = vadd.f32 %v1434, %v1604
        %v1606 = vpop.f32.mrb[0].mxu0
        %1607 = vmatprep.mubr.bf16.mxu0 0
        %1608 = vmatmul.mubr.bf16.gmra.mrb[0].mxu0 %v1520
        %v1609 = vpop.f32.mrb[0].mxu0
        %v1610 = vadd.f32 %v1439, %v1609
        %v1611 = vpop.f32.mrb[0].mxu0
        %v1612 = vpop.f32.mrb[0].mxu0
        %v1613 = vadd.f32 %v1442, %v1612
        %v1614 = vpop.f32.mrb[0].mxu0
        %1615 = vmatprep.mubr.bf16.mxu0 0
        %1616 = vmatmul.mubr.bf16.gmra.mrb[0].mxu0 %v1523
        %v1617 = vpop.f32.mrb[0].mxu0
        %v1618 = vadd.f32 %v1447, %v1617
        %v1619 = vpop.f32.mrb[0].mxu0
        %v1620 = vpop.f32.mrb[0].mxu0
        %v1621 = vadd.f32 %v1450, %v1620
        %v1622 = vpop.f32.mrb[0].mxu0
        %1623 = vmatprep.mubr.bf16.mxu0 0
        %1624 = vmatmul.mubr.bf16.gmra.mrb[0].mxu0 %v1526
        %v1625 = vpop.f32.mrb[0].mxu0
        %v1626 = vadd.f32 %v1455, %v1625
        %v1627 = vpop.f32.mrb[0].mxu0
        %v1628 = vpop.f32.mrb[0].mxu0
        %v1629 = vadd.f32 %v1458, %v1628
        %v1630 = vpop.f32.mrb[0].mxu0
        %1631 = vmatprep.mubr.bf16.mxu0 0
        %1632 = vmatmul.mubr.bf16.gmra.mrb[0].mxu0 %v1529
        %v1633 = vpop.f32.mrb[0].mxu0
        %v1634 = vadd.f32 %v1463, %v1633
        %v1635 = vpop.f32.mrb[0].mxu0
        %v1636 = vpop.f32.mrb[0].mxu0
        %v1637 = vadd.f32 %v1466, %v1636
        %v1638 = vpop.f32.mrb[0].mxu0
        %1639 = vmatprep.mubr.bf16.mxu0 0
        %1640 = vmatmul.mubr.bf16.gmra.mrb[0].mxu0 %v1532
        %v1641 = vpop.f32.mrb[0].mxu0
        %v1642 = vadd.f32 %v1471, %v1641
        %v1643 = vpop.f32.mrb[0].mxu0
        %v1644 = vpop.f32.mrb[0].mxu0
        %v1645 = vadd.f32 %v1474, %v1644
        %v1646 = vpop.f32.mrb[0].mxu0
        %1647 = vmatprep.mubr.bf16.mxu0 0
        %1648 = vmatmul.mubr.bf16.gmra.mrb[0].mxu0 %v1535
        %v1649 = vpop.f32.mrb[0].mxu0
        %v1650 = vadd.f32 %v1479, %v1649
        %v1651 = vpop.f32.mrb[0].mxu0
        %v1652 = vpop.f32.mrb[0].mxu0
        %v1653 = vadd.f32 %v1482, %v1652
        %v1654 = vpop.f32.mrb[0].mxu0
        %1655 = vmatprep.mubr.bf16.mxu0 0
        %1656 = vmatmul.mubr.bf16.gmra.mrb[0].mxu0 %v1538
        %v1657 = vpop.f32.mrb[0].mxu0
        %v1658 = vadd.f32 %v1487, %v1657
        %v1659 = vpop.f32.mrb[0].mxu0
        %v1660 = vpop.f32.mrb[0].mxu0
        %v1661 = vadd.f32 %v1490, %v1660
        %v1662 = vpop.f32.mrb[0].mxu0
        %1663 = vmatprep.mubr.bf16.mxu0 0
        %1664 = vmatmul.mubr.bf16.gmra.mrb[0].mxu0 %v1541
        %v1665 = vpop.f32.mrb[0].mxu0
        %v1666 = vadd.f32 %v1495, %v1665
        %v1667 = vpop.f32.mrb[0].mxu0
        %v1668 = vpop.f32.mrb[0].mxu0
        %v1669 = vadd.f32 %v1498, %v1668
        %v1670 = vpop.f32.mrb[0].mxu0
        %1671 = vdwg.mxu0
        %v1672 = vld [vmem:[%s5] sm:$0x1]
        %v1674 = vlaneseq
        %v1675 = vshrl.u32 %v1674, 7
        %v1676 = vsub.s32 0, %v1675
        %v1677 = vrot.slane %v1672, %v1676
        %v1679 = vadd.f32 %v1578, %v1677
        %v1680 = vadd.f32 %v1581, %v1677
        %v1681 = vadd.f32 %v1586, %v1677
        %v1682 = vadd.f32 %v1589, %v1677
        %v1683 = vadd.f32 %v1594, %v1677
        %v1684 = vadd.f32 %v1597, %v1677
        %v1685 = vadd.f32 %v1602, %v1677
        %v1686 = vadd.f32 %v1605, %v1677
        %v1687 = vadd.f32 %v1610, %v1677
        %v1688 = vadd.f32 %v1613, %v1677
        %v1689 = vadd.f32 %v1618, %v1677
        %v1690 = vadd.f32 %v1621, %v1677
        %v1691 = vadd.f32 %v1626, %v1677
        %v1692 = vadd.f32 %v1629, %v1677
        %v1693 = vadd.f32 %v1634, %v1677
        %v1694 = vadd.f32 %v1637, %v1677
        %v1695 = vadd.f32 %v1642, %v1677
        %v1696 = vadd.f32 %v1645, %v1677
        %v1697 = vadd.f32 %v1650, %v1677
        %v1698 = vadd.f32 %v1653, %v1677
        %v1699 = vadd.f32 %v1658, %v1677
        %v1700 = vadd.f32 %v1661, %v1677
        %v1701 = vadd.f32 %v1666, %v1677
        %v1702 = vadd.f32 %v1669, %v1677
        %v1703 = vmax.f32 %v1679, 0.0
        %v1704 = vmax.f32 %v1680, 0.0
        %v1705 = vmax.f32 %v1681, 0.0
        %v1706 = vmax.f32 %v1682, 0.0
        %v1707 = vmax.f32 %v1683, 0.0
        %v1708 = vmax.f32 %v1684, 0.0
        %v1709 = vmax.f32 %v1685, 0.0
        %v1710 = vmax.f32 %v1686, 0.0
        %v1711 = vmax.f32 %v1687, 0.0
        %v1712 = vmax.f32 %v1688, 0.0
        %v1713 = vmax.f32 %v1689, 0.0
        %v1714 = vmax.f32 %v1690, 0.0
        %v1715 = vmax.f32 %v1691, 0.0
        %v1716 = vmax.f32 %v1692, 0.0
        %v1717 = vmax.f32 %v1693, 0.0
        %v1718 = vmax.f32 %v1694, 0.0
        %v1719 = vmax.f32 %v1695, 0.0
        %v1720 = vmax.f32 %v1696, 0.0
        %v1721 = vmax.f32 %v1697, 0.0
        %v1722 = vmax.f32 %v1698, 0.0
        %v1723 = vmax.f32 %v1699, 0.0
        %v1724 = vmax.f32 %v1700, 0.0
        %v1725 = vmax.f32 %v1701, 0.0
        %v1726 = vmax.f32 %v1702, 0.0
        %v1727 = vld [vmem:[%s420] sm:$0xff]
        %v1728 = vld [vmem:[%s420 + $0x8] sm:$0xff]
        %v1729 = vld [vmem:[%s420 + $0x10] sm:$0xff]
        %v1730 = vld [vmem:[%s420 + $0x18] sm:$0xff]
        %v1731 = vld [vmem:[%s420 + $0x20] sm:$0xff]
        %v1732 = vld [vmem:[%s420 + $0x28] sm:$0xff]
        %v1733 = vld [vmem:[%s420 + $0x30] sm:$0xff]
        %v1734 = vld [vmem:[%s420 + $0x38] sm:$0xff]
        %v1735 = vld [vmem:[%s420 + $0x40] sm:$0xff]
        %v1736 = vld [vmem:[%s420 + $0x48] sm:$0xff]
        %v1737 = vld [vmem:[%s420 + $0x50] sm:$0xff]
        %v1738 = vld [vmem:[%s420 + $0x58] sm:$0xff]
        %v1739 = vld [vmem:[%s420 + $0x60] sm:$0xff]
        %v1740 = vld [vmem:[%s420 + $0x68] sm:$0xff]
        %v1741 = vld [vmem:[%s420 + $0x70] sm:$0xff]
        %v1742 = vld [vmem:[%s420 + $0x78] sm:$0xff]
        %v1743 = vld [vmem:[%s420 + $0x80] sm:$0xff]
        %v1744 = vld [vmem:[%s420 + $0x88] sm:$0xff]
        %v1745 = vld [vmem:[%s420 + $0x90] sm:$0xff]
        %v1746 = vld [vmem:[%s420 + $0x98] sm:$0xff]
        %v1747 = vld [vmem:[%s420 + $0xa0] sm:$0xff]
        %v1748 = vld [vmem:[%s420 + $0xa8] sm:$0xff]
        %v1749 = vld [vmem:[%s420 + $0xb0] sm:$0xff]
        %v1750 = vld [vmem:[%s420 + $0xb8] sm:$0xff]
        %1752 = vset.pattern.permute.xlu0 0
        %1753 = vperm.xlu0 %1752, %v1727
        %v1754 = vpop.permute.xlu0 %1753
        %1757 = vset.pattern.permute.xlu0 0
        %1758 = vperm.xlu0 %1757, %v1728
        %v1759 = vpop.permute.xlu0 %1758
        %1762 = vset.pattern.permute.xlu0 0
        %1763 = vperm.xlu0 %1762, %v1729
        %v1764 = vpop.permute.xlu0 %1763
        %1767 = vset.pattern.permute.xlu0 0
        %1768 = vperm.xlu0 %1767, %v1730
        %v1769 = vpop.permute.xlu0 %1768
        %1772 = vset.pattern.permute.xlu0 0
        %1773 = vperm.xlu0 %1772, %v1731
        %v1774 = vpop.permute.xlu0 %1773
        %1777 = vset.pattern.permute.xlu0 0
        %1778 = vperm.xlu0 %1777, %v1732
        %v1779 = vpop.permute.xlu0 %1778
        %1782 = vset.pattern.permute.xlu0 0
        %1783 = vperm.xlu0 %1782, %v1733
        %v1784 = vpop.permute.xlu0 %1783
        %1787 = vset.pattern.permute.xlu0 0
        %1788 = vperm.xlu0 %1787, %v1734
        %v1789 = vpop.permute.xlu0 %1788
        %1792 = vset.pattern.permute.xlu0 0
        %1793 = vperm.xlu0 %1792, %v1735
        %v1794 = vpop.permute.xlu0 %1793
        %1797 = vset.pattern.permute.xlu0 0
        %1798 = vperm.xlu0 %1797, %v1736
        %v1799 = vpop.permute.xlu0 %1798
        %1802 = vset.pattern.permute.xlu0 0
        %1803 = vperm.xlu0 %1802, %v1737
        %v1804 = vpop.permute.xlu0 %1803
        %1807 = vset.pattern.permute.xlu0 0
        %1808 = vperm.xlu0 %1807, %v1738
        %v1809 = vpop.permute.xlu0 %1808
        %1812 = vset.pattern.permute.xlu0 0
        %1813 = vperm.xlu0 %1812, %v1739
        %v1814 = vpop.permute.xlu0 %1813
        %1817 = vset.pattern.permute.xlu0 0
        %1818 = vperm.xlu0 %1817, %v1740
        %v1819 = vpop.permute.xlu0 %1818
        %1822 = vset.pattern.permute.xlu0 0
        %1823 = vperm.xlu0 %1822, %v1741
        %v1824 = vpop.permute.xlu0 %1823
        %1827 = vset.pattern.permute.xlu0 0
        %1828 = vperm.xlu0 %1827, %v1742
        %v1829 = vpop.permute.xlu0 %1828
        %1832 = vset.pattern.permute.xlu0 0
        %1833 = vperm.xlu0 %1832, %v1743
        %v1834 = vpop.permute.xlu0 %1833
        %1837 = vset.pattern.permute.xlu0 0
        %1838 = vperm.xlu0 %1837, %v1744
        %v1839 = vpop.permute.xlu0 %1838
        %1842 = vset.pattern.permute.xlu0 0
        %1843 = vperm.xlu0 %1842, %v1745
        %v1844 = vpop.permute.xlu0 %1843
        %1847 = vset.pattern.permute.xlu0 0
        %1848 = vperm.xlu0 %1847, %v1746
        %v1849 = vpop.permute.xlu0 %1848
        %1852 = vset.pattern.permute.xlu0 0
        %1853 = vperm.xlu0 %1852, %v1747
        %v1854 = vpop.permute.xlu0 %1853
        %1857 = vset.pattern.permute.xlu0 0
        %1858 = vperm.xlu0 %1857, %v1748
        %v1859 = vpop.permute.xlu0 %1858
        %1862 = vset.pattern.permute.xlu0 0
        %1863 = vperm.xlu0 %1862, %v1749
        %v1864 = vpop.permute.xlu0 %1863
        %1867 = vset.pattern.permute.xlu0 0
        %1868 = vperm.xlu0 %1867, %v1750
        %v1869 = vpop.permute.xlu0 %1868
        %v1871 = vmul.f32 %v1703, %v1754
        %v1872 = vmul.f32 %v1704, %v1759
        %v1873 = vmul.f32 %v1705, %v1764
        %v1874 = vmul.f32 %v1706, %v1769
        %v1875 = vmul.f32 %v1707, %v1774
        %v1876 = vmul.f32 %v1708, %v1779
        %v1877 = vmul.f32 %v1709, %v1784
        %v1878 = vmul.f32 %v1710, %v1789
        %v1879 = vmul.f32 %v1711, %v1794
        %v1880 = vmul.f32 %v1712, %v1799
        %v1881 = vmul.f32 %v1713, %v1804
        %v1882 = vmul.f32 %v1714, %v1809
        %v1883 = vmul.f32 %v1715, %v1814
        %v1884 = vmul.f32 %v1716, %v1819
        %v1885 = vmul.f32 %v1717, %v1824
        %v1886 = vmul.f32 %v1718, %v1829
        %v1887 = vmul.f32 %v1719, %v1834
        %v1888 = vmul.f32 %v1720, %v1839
        %v1889 = vmul.f32 %v1721, %v1844
        %v1890 = vmul.f32 %v1722, %v1849
        %v1891 = vmul.f32 %v1723, %v1854
        %v1892 = vmul.f32 %v1724, %v1859
        %v1893 = vmul.f32 %v1725, %v1864
        %v1894 = vmul.f32 %v1726, %v1869
        %v1895 = vpack.c.bf16 %v1872, %v1871
        %v1896 = vpack.c.bf16 %v1874, %v1873
        %v1897 = vpack.c.bf16 %v1876, %v1875
        %v1898 = vpack.c.bf16 %v1878, %v1877
        %v1899 = vpack.c.bf16 %v1880, %v1879
        %v1900 = vpack.c.bf16 %v1882, %v1881
        %v1901 = vpack.c.bf16 %v1884, %v1883
        %v1902 = vpack.c.bf16 %v1886, %v1885
        %v1903 = vpack.c.bf16 %v1888, %v1887
        %v1904 = vpack.c.bf16 %v1890, %v1889
        %v1905 = vpack.c.bf16 %v1892, %v1891
        %v1906 = vpack.c.bf16 %v1894, %v1893
        %v1919 = vunpack.c.l.b16 %v1895
        %v1920 = vunpack.c.h.b16 %v1895
        %v1921 = vunpack.c.l.b16 %v1896
        %v1922 = vunpack.c.h.b16 %v1896
        %v1923 = vunpack.c.l.b16 %v1897
        %v1924 = vunpack.c.h.b16 %v1897
        %v1925 = vunpack.c.l.b16 %v1898
        %v1926 = vunpack.c.h.b16 %v1898
        %v1927 = vunpack.c.l.b16 %v1899
        %v1928 = vunpack.c.h.b16 %v1899
        %v1929 = vunpack.c.l.b16 %v1900
        %v1930 = vunpack.c.h.b16 %v1900
        %v1931 = vunpack.c.l.b16 %v1901
        %v1932 = vunpack.c.h.b16 %v1901
        %v1933 = vunpack.c.l.b16 %v1902
        %v1934 = vunpack.c.h.b16 %v1902
        %v1935 = vunpack.c.l.b16 %v1903
        %v1936 = vunpack.c.h.b16 %v1903
        %v1937 = vunpack.c.l.b16 %v1904
        %v1938 = vunpack.c.h.b16 %v1904
        %v1939 = vunpack.c.l.b16 %v1905
        %v1940 = vunpack.c.h.b16 %v1905
        %v1941 = vunpack.c.l.b16 %v1906
        %v1942 = vunpack.c.h.b16 %v1906
        %v1943 = vpack.c.b16 %v1919, %v1919
        %v1944 = vpack.c.b16 %v1920, %v1920
        %v1945 = vpack.c.b16 %v1921, %v1921
        %v1946 = vpack.c.b16 %v1922, %v1922
        %v1947 = vpack.c.b16 %v1923, %v1923
        %v1948 = vpack.c.b16 %v1924, %v1924
        %v1949 = vpack.c.b16 %v1925, %v1925
        %v1950 = vpack.c.b16 %v1926, %v1926
        %v1951 = vpack.c.b16 %v1927, %v1927
        %v1952 = vpack.c.b16 %v1928, %v1928
        %v1953 = vpack.c.b16 %v1929, %v1929
        %v1954 = vpack.c.b16 %v1930, %v1930
        %v1955 = vpack.c.b16 %v1931, %v1931
        %v1956 = vpack.c.b16 %v1932, %v1932
        %v1957 = vpack.c.b16 %v1933, %v1933
        %v1958 = vpack.c.b16 %v1934, %v1934
        %v1959 = vpack.c.b16 %v1935, %v1935
        %v1960 = vpack.c.b16 %v1936, %v1936
        %v1961 = vpack.c.b16 %v1937, %v1937
        %v1962 = vpack.c.b16 %v1938, %v1938
        %v1963 = vpack.c.b16 %v1939, %v1939
        %v1964 = vpack.c.b16 %v1940, %v1940
        %v1965 = vpack.c.b16 %v1941, %v1941
        %v1966 = vpack.c.b16 %v1942, %v1942
        %1991 = vst [vmem:[%s426] sm:$0xf] %v1943
        %1992 = vst [vmem:[%s426 + $0x4] sm:$0xf] %v1944
        %1993 = vst [vmem:[%s426 + $0x8] sm:$0xf] %v1945
        %1994 = vst [vmem:[%s426 + $0xc] sm:$0xf] %v1946
        %1995 = vst [vmem:[%s426 + $0x10] sm:$0xf] %v1947
        %1996 = vst [vmem:[%s426 + $0x14] sm:$0xf] %v1948
        %1997 = vst [vmem:[%s426 + $0x18] sm:$0xf] %v1949
        %1998 = vst [vmem:[%s426 + $0x1c] sm:$0xf] %v1950
        %1999 = vst [vmem:[%s426 + $0x20] sm:$0xf] %v1951
        %2000 = vst [vmem:[%s426 + $0x24] sm:$0xf] %v1952
        %2001 = vst [vmem:[%s426 + $0x28] sm:$0xf] %v1953
        %2002 = vst [vmem:[%s426 + $0x2c] sm:$0xf] %v1954
        %2003 = vst [vmem:[%s426 + $0x30] sm:$0xf] %v1955
        %2004 = vst [vmem:[%s426 + $0x34] sm:$0xf] %v1956
        %2005 = vst [vmem:[%s426 + $0x38] sm:$0xf] %v1957
        %2006 = vst [vmem:[%s426 + $0x3c] sm:$0xf] %v1958
        %2007 = vst [vmem:[%s426 + $0x40] sm:$0xf] %v1959
        %2008 = vst [vmem:[%s426 + $0x44] sm:$0xf] %v1960
        %2009 = vst [vmem:[%s426 + $0x48] sm:$0xf] %v1961
        %2010 = vst [vmem:[%s426 + $0x4c] sm:$0xf] %v1962
        %2011 = vst [vmem:[%s426 + $0x50] sm:$0xf] %v1963
        %2012 = vst [vmem:[%s426 + $0x54] sm:$0xf] %v1964
        %2013 = vst [vmem:[%s426 + $0x58] sm:$0xf] %v1965
        %2014 = vst [vmem:[%s426 + $0x5c] sm:$0xf] %v1966
      $region60: #{graphsage_forward.2} parent=51 // pred_fallthru
        _
      %s2015 = smul.u32 24, %s23
      %p2016 = scmp.lt.s32.totalorder %s2015, 47
      %s2017 = scalar_select %p2016, %s2015, 47
      %s2018 = smul.addr %s2017, 4
      %s2019 = scalar_lea.vmem %s8, %s2018
      // Predicated region
      $region61: #{graphsage_forward.2} parent=51 // pred_check
        %p2020 = pneg %p244
      $region62: #{graphsage_forward.2} parent=51 // pred_check_branch
        %2022 = sbr.rel (%p2020) target = $region64
      $region63: #{graphsage_forward.2} parent=51 // pred_region
        %s2023 = smul.u32 24, %s23
      $region64: #{graphsage_forward.2} parent=51 // pred_fallthru
        _
    $region52: #{graphsage_forward.2} parent=5 // pred_fallthru
      _
    %p2024 = scmp.le.s32.totalorder 2, %s14
    // Predicated region
    $region65: #{graphsage_forward.2} parent=5 // pred_check
      %p2025 = pneg %p2024
    $region66: #{graphsage_forward.2} parent=5 // pred_check_branch
      %2027 = sbr.rel (%p2025) target = $region68
    $region67: #{graphsage_forward.2} parent=5 // pred_region
      %s2028 = ssub.s32 %s14, 2
      // Predicated region
      $region69: #{graphsage_forward.2} parent=67 // pred_check
        %p2029 = pneg %p250
      $region70: #{graphsage_forward.2} parent=67 // pred_check_branch
        %2031 = sbr.rel (%p2029) target = $region72
      $region71: #{graphsage_forward.2} parent=67 // pred_region
        %s2032 = smul.u32 24, %s25
        %p2033 = scmp.lt.s32.totalorder %s2032, 47
        %s2034 = scalar_select %p2033, %s2032, 47
        %s2035 = smul.addr %s2034, 4
        %s2036 = scalar_lea.vmem %s8, %s2035
      $region72: #{graphsage_forward.2} parent=67 // pred_fallthru
        _
    $region68: #{graphsage_forward.2} parent=5 // pred_fallthru
      _
  $region6: #{graphsage_forward.2} parent=0 // loop_footer
    %s18 = sadd.s32 1, %s14
  $region7: #{graphsage_forward.2} parent=0 // loop_footer_branch
    %13 = sbr.rel target = $region3
  $region8: #{graphsage_forward.2} parent=0 // loop_exit
    _

// kernel: graphsage_forward.3
$region0: #{graphsage_forward.3}
  #allocation0 [shape = 'u32[]', space=smem, size = 0x4, offset = 0x4, fixed_abs, tag = 'smem constant byte address 0x4 - core index']
  #allocation1 [shape = 'u32[144,128]{1,0:T(1,128)}', space=vmem, size = 0x12000, scoped, tag = 'internal scratch']
  #allocation2 [shape = 'f32[192,32]{1,0:T(8,128)}', space=vmem, size = 0x18000, scoped, tag = 'scratch operand']
  %s0 = inlined_call_operand.vmem [shape: s8[384,384], index: 0, kind: input, shape index: {}]
  %s1 = inlined_call_operand.vmem [shape: bf16[384,32], index: 1, kind: input, shape index: {}, may-alias: {1,2}]
  %s2 = inlined_call_operand.vmem [shape: bf16[384,32], index: 2, kind: input, shape index: {}, may-alias: {1,2}]
  %s3 = inlined_call_operand.vmem [shape: bf16[32,128], index: 3, kind: input, shape index: {}]
  %s4 = inlined_call_operand.vmem [shape: bf16[32,128], index: 4, kind: input, shape index: {}]
  %s5 = inlined_call_operand.vmem [shape: f32[1,128], index: 5, kind: input, shape index: {}]
  %s6 = inlined_call_operand.vmem [shape: f32[384,1], index: 6, kind: input, shape index: {}]
  %s7 = inlined_call_operand.vmem [shape: f32[384,1], index: 7, kind: input, shape index: {}]
  %s8 = inlined_call_operand.vmem [shape: bf16[384,128], index: 8, kind: output, shape index: {}]
  %s9 = sld [smem:[#allocation0]]
  $region73: #{graphsage_forward.3} parent=0
    _
  %s11 = ssub.s32 1, %s9
  %s12 = scalar_select 0, %s11, %s9
  loop: start=0, step=1, limit=4
  $region2: #{graphsage_forward.3} parent=0 // loop_pre_header
    _
  $region3: #{graphsage_forward.3} parent=0 // loop_header
    %s14 = sphi 0, %s18
    %p15 = scmp.ge.s32.totalorder %s14, 4
    %s21 = sphi 0, %s33
    %s22 = sphi 0, %s29
    %s23 = sphi 0, %s21
    %s24 = sphi 0, %s22
    %s25 = sphi 0, %s23
    %s26 = sphi 0, %s24
    %s38 = sphi 0, %s40
    %s41 = sphi 0, %s38
    %s42 = sphi 0, %s41
    %s58 = sphi 0, %s42
    %s64 = sphi 0, %s66
    %s67 = sphi 0, %s64
    %s68 = sphi 0, %s67
    %s84 = sphi 0, %s68
    %s90 = sphi 0, %s92
    %s93 = sphi 0, %s90
    %s94 = sphi 0, %s93
    %s110 = sphi 0, %s94
    %s114 = sphi 0, %s114
    %s116 = sphi 0, %s114
    %s117 = sphi 0, %s116
    %s131 = sphi 0, %s117
    %s135 = sphi 0, %s135
    %s137 = sphi 0, %s135
    %s138 = sphi 0, %s137
    %s152 = sphi 0, %s138
    %s156 = sphi 0, %s156
    %s158 = sphi 0, %s156
    %s159 = sphi 0, %s158
    %s173 = sphi 0, %s159
    %s179 = sphi 0, %s181
    %s182 = sphi 0, %s179
    %s183 = sphi 0, %s182
    %s199 = sphi 0, %s183
    %s205 = sphi 0, %s207
    %s208 = sphi 0, %s205
    %s209 = sphi 0, %s208
    %s225 = sphi 0, %s209
    %s231 = sphi 0, %s233
    %s234 = sphi 0, %s231
    %s235 = sphi 0, %s234
    %s251 = sphi 0, %s235
  $region4: #{graphsage_forward.3} parent=0 // loop_header_branch
    %17 = sbr.rel (%p15) target = $region8
  $region5: #{graphsage_forward.3} parent=0 // loop_body
    %s19 = ssub.s32 %s14, 1
    %s20 = ssub.s32 %s14, 2
    %s27 = sadd.s32 1, %s22
    %p28 = scmp.ge.s32.totalorder %s27, 1
    %s29 = scalar_select %p28, 0, %s27
    %s30 = sadd.s32 1, %s21
    %s31 = scalar_select %p28, %s30, %s21
    %p32 = scmp.ge.s32.totalorder %s31, 2
    %s33 = scalar_select %p32, 0, %s31
    %s34 = ssub.s32 %s21, %s33
    %s35 = ssub.s32 %s22, %s29
    %s36 = sor.u32 %s34, %s35
    %p37 = scmp.eq.s32.totalorder %s36, 0
    %s39 = sadd.s32 %s38, 1
    %s40 = scalar_select %p37, %s38, %s39
    %p43 = pneg %p37
    %p44 = scmp.eq.s32.totalorder %s14, 1
    %p45 = por %p43, %p44
    %p46 = scmp.ne.s32.totalorder %s38, %s41
    %p47 = scmp.eq.s32.totalorder %s14, 0
    %p48 = por %p46, %p47
    %p49 = scmp.ne.s32.totalorder %s38, %s41
    %p50 = scmp.eq.s32.totalorder %s19, 1
    %p51 = por %p49, %p50
    %p52 = scmp.ne.s32.totalorder %s41, %s42
    %p53 = scmp.eq.s32.totalorder %s19, 0
    %p54 = por %p52, %p53
    %p55 = scmp.ne.s32.totalorder %s41, %s42
    %p56 = scmp.eq.s32.totalorder %s20, 1
    %p57 = por %p55, %p56
    %p59 = scmp.ne.s32.totalorder %s42, %s58
    %p60 = scmp.eq.s32.totalorder %s20, 0
    %p61 = por %p59, %p60
    %s62 = ssub.s32 %s22, %s29
    %p63 = scmp.eq.s32.totalorder %s62, 0
    %s65 = sadd.s32 %s64, 1
    %s66 = scalar_select %p63, %s64, %s65
    %p69 = pneg %p63
    %p70 = scmp.eq.s32.totalorder %s14, 1
    %p71 = por %p69, %p70
    %p72 = scmp.ne.s32.totalorder %s64, %s67
    %p73 = scmp.eq.s32.totalorder %s14, 0
    %p74 = por %p72, %p73
    %p75 = scmp.ne.s32.totalorder %s64, %s67
    %p76 = scmp.eq.s32.totalorder %s19, 1
    %p77 = por %p75, %p76
    %p78 = scmp.ne.s32.totalorder %s67, %s68
    %p79 = scmp.eq.s32.totalorder %s19, 0
    %p80 = por %p78, %p79
    %p81 = scmp.ne.s32.totalorder %s67, %s68
    %p82 = scmp.eq.s32.totalorder %s20, 1
    %p83 = por %p81, %p82
    %p85 = scmp.ne.s32.totalorder %s68, %s84
    %p86 = scmp.eq.s32.totalorder %s20, 0
    %p87 = por %p85, %p86
    %s88 = ssub.s32 %s21, %s33
    %p89 = scmp.eq.s32.totalorder %s88, 0
    %s91 = sadd.s32 %s90, 1
    %s92 = scalar_select %p89, %s90, %s91
    %p95 = pneg %p89
    %p96 = scmp.eq.s32.totalorder %s14, 1
    %p97 = por %p95, %p96
    %p98 = scmp.ne.s32.totalorder %s90, %s93
    %p99 = scmp.eq.s32.totalorder %s14, 0
    %p100 = por %p98, %p99
    %p101 = scmp.ne.s32.totalorder %s90, %s93
    %p102 = scmp.eq.s32.totalorder %s19, 1
    %p103 = por %p101, %p102
    %p104 = scmp.ne.s32.totalorder %s93, %s94
    %p105 = scmp.eq.s32.totalorder %s19, 0
    %p106 = por %p104, %p105
    %p107 = scmp.ne.s32.totalorder %s93, %s94
    %p108 = scmp.eq.s32.totalorder %s20, 1
    %p109 = por %p107, %p108
    %p111 = scmp.ne.s32.totalorder %s94, %s110
    %p112 = scmp.eq.s32.totalorder %s20, 0
    %p113 = por %p111, %p112
    %s115 = sadd.s32 %s114, 1
    %p118 = scmp.eq.s32.totalorder %s14, 1
    %p119 = scmp.ne.s32.totalorder %s114, %s116
    %p120 = scmp.eq.s32.totalorder %s14, 0
    %p121 = por %p119, %p120
    %p122 = scmp.ne.s32.totalorder %s114, %s116
    %p123 = scmp.eq.s32.totalorder %s19, 1
    %p124 = por %p122, %p123
    %p125 = scmp.ne.s32.totalorder %s116, %s117
    %p126 = scmp.eq.s32.totalorder %s19, 0
    %p127 = por %p125, %p126
    %p128 = scmp.ne.s32.totalorder %s116, %s117
    %p129 = scmp.eq.s32.totalorder %s20, 1
    %p130 = por %p128, %p129
    %p132 = scmp.ne.s32.totalorder %s117, %s131
    %p133 = scmp.eq.s32.totalorder %s20, 0
    %p134 = por %p132, %p133
    %s136 = sadd.s32 %s135, 1
    %p139 = scmp.eq.s32.totalorder %s14, 1
    %p140 = scmp.ne.s32.totalorder %s135, %s137
    %p141 = scmp.eq.s32.totalorder %s14, 0
    %p142 = por %p140, %p141
    %p143 = scmp.ne.s32.totalorder %s135, %s137
    %p144 = scmp.eq.s32.totalorder %s19, 1
    %p145 = por %p143, %p144
    %p146 = scmp.ne.s32.totalorder %s137, %s138
    %p147 = scmp.eq.s32.totalorder %s19, 0
    %p148 = por %p146, %p147
    %p149 = scmp.ne.s32.totalorder %s137, %s138
    %p150 = scmp.eq.s32.totalorder %s20, 1
    %p151 = por %p149, %p150
    %p153 = scmp.ne.s32.totalorder %s138, %s152
    %p154 = scmp.eq.s32.totalorder %s20, 0
    %p155 = por %p153, %p154
    %s157 = sadd.s32 %s156, 1
    %p160 = scmp.eq.s32.totalorder %s14, 1
    %p161 = scmp.ne.s32.totalorder %s156, %s158
    %p162 = scmp.eq.s32.totalorder %s14, 0
    %p163 = por %p161, %p162
    %p164 = scmp.ne.s32.totalorder %s156, %s158
    %p165 = scmp.eq.s32.totalorder %s19, 1
    %p166 = por %p164, %p165
    %p167 = scmp.ne.s32.totalorder %s158, %s159
    %p168 = scmp.eq.s32.totalorder %s19, 0
    %p169 = por %p167, %p168
    %p170 = scmp.ne.s32.totalorder %s158, %s159
    %p171 = scmp.eq.s32.totalorder %s20, 1
    %p172 = por %p170, %p171
    %p174 = scmp.ne.s32.totalorder %s159, %s173
    %p175 = scmp.eq.s32.totalorder %s20, 0
    %p176 = por %p174, %p175
    %s177 = ssub.s32 %s21, %s33
    %p178 = scmp.eq.s32.totalorder %s177, 0
    %s180 = sadd.s32 %s179, 1
    %s181 = scalar_select %p178, %s179, %s180
    %p184 = pneg %p178
    %p185 = scmp.eq.s32.totalorder %s14, 1
    %p186 = por %p184, %p185
    %p187 = scmp.ne.s32.totalorder %s179, %s182
    %p188 = scmp.eq.s32.totalorder %s14, 0
    %p189 = por %p187, %p188
    %p190 = scmp.ne.s32.totalorder %s179, %s182
    %p191 = scmp.eq.s32.totalorder %s19, 1
    %p192 = por %p190, %p191
    %p193 = scmp.ne.s32.totalorder %s182, %s183
    %p194 = scmp.eq.s32.totalorder %s19, 0
    %p195 = por %p193, %p194
    %p196 = scmp.ne.s32.totalorder %s182, %s183
    %p197 = scmp.eq.s32.totalorder %s20, 1
    %p198 = por %p196, %p197
    %p200 = scmp.ne.s32.totalorder %s183, %s199
    %p201 = scmp.eq.s32.totalorder %s20, 0
    %p202 = por %p200, %p201
    %s203 = ssub.s32 %s21, %s33
    %p204 = scmp.eq.s32.totalorder %s203, 0
    %s206 = sadd.s32 %s205, 1
    %s207 = scalar_select %p204, %s205, %s206
    %p210 = pneg %p204
    %p211 = scmp.eq.s32.totalorder %s14, 1
    %p212 = por %p210, %p211
    %p213 = scmp.ne.s32.totalorder %s205, %s208
    %p214 = scmp.eq.s32.totalorder %s14, 0
    %p215 = por %p213, %p214
    %p216 = scmp.ne.s32.totalorder %s205, %s208
    %p217 = scmp.eq.s32.totalorder %s19, 1
    %p218 = por %p216, %p217
    %p219 = scmp.ne.s32.totalorder %s208, %s209
    %p220 = scmp.eq.s32.totalorder %s19, 0
    %p221 = por %p219, %p220
    %p222 = scmp.ne.s32.totalorder %s208, %s209
    %p223 = scmp.eq.s32.totalorder %s20, 1
    %p224 = por %p222, %p223
    %p226 = scmp.ne.s32.totalorder %s209, %s225
    %p227 = scmp.eq.s32.totalorder %s20, 0
    %p228 = por %p226, %p227
    %s229 = ssub.s32 %s21, %s33
    %p230 = scmp.eq.s32.totalorder %s229, 0
    %s232 = sadd.s32 %s231, 1
    %s233 = scalar_select %p230, %s231, %s232
    %p236 = pneg %p230
    %p237 = scmp.eq.s32.totalorder %s14, 1
    %p238 = por %p236, %p237
    %p239 = scmp.ne.s32.totalorder %s231, %s234
    %p240 = scmp.eq.s32.totalorder %s14, 0
    %p241 = por %p239, %p240
    %p242 = scmp.ne.s32.totalorder %s231, %s234
    %p243 = scmp.eq.s32.totalorder %s19, 1
    %p244 = por %p242, %p243
    %p245 = scmp.ne.s32.totalorder %s234, %s235
    %p246 = scmp.eq.s32.totalorder %s19, 0
    %p247 = por %p245, %p246
    %p248 = scmp.ne.s32.totalorder %s234, %s235
    %p249 = scmp.eq.s32.totalorder %s20, 1
    %p250 = por %p248, %p249
    %p252 = scmp.ne.s32.totalorder %s235, %s251
    %p253 = scmp.eq.s32.totalorder %s20, 0
    %p254 = por %p252, %p253
    %p255 = scmp.le.s32.totalorder 1, %s14
    %p256 = scmp.lt.s32.totalorder %s14, 3
    %p257 = pnand %p255, %p256
    %p258 = pneg %p257
    // Predicated region
    $region9: #{graphsage_forward.3} parent=5 // pred_check
      _
    $region10: #{graphsage_forward.3} parent=5 // pred_check_branch
      %260 = sbr.rel (%p257) target = $region12
    $region11: #{graphsage_forward.3} parent=5 // pred_region
      %s261 = ssub.s32 %s14, 1
      // Predicated region
      $region13: #{graphsage_forward.3} parent=11 // pred_check
        %p262 = pneg %p80
      $region14: #{graphsage_forward.3} parent=11 // pred_check_branch
        %264 = sbr.rel (%p262) target = $region16
      $region15: #{graphsage_forward.3} parent=11 // pred_region
        %s265 = smul.u32 48, %s24
        %p266 = scmp.lt.s32.totalorder %s265, 47
        %s267 = scalar_select %p266, %s265, 47
        %s268 = smul.addr %s267, 4
        %s269 = scalar_lea.vmem %s1, %s268
        %s270 = smul.u32 48, %s24
      $region16: #{graphsage_forward.3} parent=11 // pred_fallthru
        _
      // Predicated region
      $region17: #{graphsage_forward.3} parent=11 // pred_check
        %p271 = pneg %p127
      $region18: #{graphsage_forward.3} parent=11 // pred_check_branch
        %273 = sbr.rel (%p271) target = $region20
      $region19: #{graphsage_forward.3} parent=11 // pred_region
        _
      $region20: #{graphsage_forward.3} parent=11 // pred_fallthru
        _
      // Predicated region
      $region21: #{graphsage_forward.3} parent=11 // pred_check
        %p274 = pneg %p148
      $region22: #{graphsage_forward.3} parent=11 // pred_check_branch
        %276 = sbr.rel (%p274) target = $region24
      $region23: #{graphsage_forward.3} parent=11 // pred_region
        _
      $region24: #{graphsage_forward.3} parent=11 // pred_fallthru
        _
      // Predicated region
      $region25: #{graphsage_forward.3} parent=11 // pred_check
        %p277 = pneg %p169
      $region26: #{graphsage_forward.3} parent=11 // pred_check_branch
        %279 = sbr.rel (%p277) target = $region28
      $region27: #{graphsage_forward.3} parent=11 // pred_region
        _
      $region28: #{graphsage_forward.3} parent=11 // pred_fallthru
        _
    $region12: #{graphsage_forward.3} parent=5 // pred_fallthru
      _
    %p280 = scmp.lt.s32.totalorder %s14, 2
    // Predicated region
    $region29: #{graphsage_forward.3} parent=5 // pred_check
      %p281 = pneg %p280
    $region30: #{graphsage_forward.3} parent=5 // pred_check_branch
      %283 = sbr.rel (%p281) target = $region32
    $region31: #{graphsage_forward.3} parent=5 // pred_region
      // Predicated region
      $region33: #{graphsage_forward.3} parent=31 // pred_check
        %p284 = pneg %p48
      $region34: #{graphsage_forward.3} parent=31 // pred_check_branch
        %286 = sbr.rel (%p284) target = $region36
      $region35: #{graphsage_forward.3} parent=31 // pred_region
        %s287 = smul.u32 6, %s21
        %s288 = smul.u32 3, %s22
        %p289 = scmp.lt.s32.totalorder %s287, 11
        %s290 = scalar_select %p289, %s287, 11
        %p291 = scmp.lt.s32.totalorder %s288, 2
        %s292 = scalar_select %p291, %s288, 2
        %s293 = smul.addr %s290, 3
        %s294 = sadd.s32 %s292, %s293
        %s295 = smul.addr %s294, 8
        %s296 = scalar_lea.vmem %s0, %s295
        %s297 = smul.u32 6, %s21
        %s298 = smul.u32 3, %s22
      $region36: #{graphsage_forward.3} parent=31 // pred_fallthru
        _
      // Predicated region
      $region37: #{graphsage_forward.3} parent=31 // pred_check
        %p299 = pneg %p100
      $region38: #{graphsage_forward.3} parent=31 // pred_check_branch
        %301 = sbr.rel (%p299) target = $region40
      $region39: #{graphsage_forward.3} parent=31 // pred_region
        %s302 = smul.u32 24, %s21
        %p303 = scmp.lt.s32.totalorder %s302, 47
        %s304 = scalar_select %p303, %s302, 47
        %s305 = smul.addr %s304, 4
        %s306 = scalar_lea.vmem %s2, %s305
        %s307 = smul.u32 24, %s21
      $region40: #{graphsage_forward.3} parent=31 // pred_fallthru
        _
      // Predicated region
      $region41: #{graphsage_forward.3} parent=31 // pred_check
        %p308 = pneg %p189
      $region42: #{graphsage_forward.3} parent=31 // pred_check_branch
        %310 = sbr.rel (%p308) target = $region44
      $region43: #{graphsage_forward.3} parent=31 // pred_region
        %s311 = smul.u32 24, %s21
        %p312 = scmp.lt.s32.totalorder %s311, 47
        %s313 = scalar_select %p312, %s311, 47
        %s314 = smul.addr %s313, 8
        %s315 = scalar_lea.vmem %s6, %s314
        %s316 = smul.u32 24, %s21
      $region44: #{graphsage_forward.3} parent=31 // pred_fallthru
        _
      // Predicated region
      $region45: #{graphsage_forward.3} parent=31 // pred_check
        %p317 = pneg %p215
      $region46: #{graphsage_forward.3} parent=31 // pred_check_branch
        %319 = sbr.rel (%p317) target = $region48
      $region47: #{graphsage_forward.3} parent=31 // pred_region
        %s320 = smul.u32 24, %s21
        %p321 = scmp.lt.s32.totalorder %s320, 47
        %s322 = scalar_select %p321, %s320, 47
        %s323 = smul.addr %s322, 8
        %s324 = scalar_lea.vmem %s7, %s323
        %s325 = smul.u32 24, %s21
      $region48: #{graphsage_forward.3} parent=31 // pred_fallthru
        _
    $region32: #{graphsage_forward.3} parent=5 // pred_fallthru
      _
    %p326 = scmp.le.s32.totalorder 1, %s14
    %p327 = scmp.lt.s32.totalorder %s14, 3
    %p328 = pnand %p326, %p327
    %p329 = pneg %p328
    // Predicated region
    $region49: #{graphsage_forward.3} parent=5 // pred_check
      _
    $region50: #{graphsage_forward.3} parent=5 // pred_check_branch
      %331 = sbr.rel (%p328) target = $region52
    $region51: #{graphsage_forward.3} parent=5 // pred_region
      %s332 = ssub.s32 %s14, 1
      %s333 = smul.u32 6, %s23
      %s334 = smul.u32 3, %s24
      %p335 = scmp.lt.s32.totalorder %s333, 11
      %s336 = scalar_select %p335, %s333, 11
      %p337 = scmp.lt.s32.totalorder %s334, 2
      %s338 = scalar_select %p337, %s334, 2
      %s339 = smul.addr %s336, 3
      %s340 = sadd.s32 %s338, %s339
      %s341 = smul.addr %s340, 8
      %s342 = scalar_lea.vmem %s0, %s341
      %p343 = pneg %p54
      %p344 = pneg %p51
      %s345 = smul.u32 48, %s24
      %p346 = scmp.lt.s32.totalorder %s345, 47
      %s347 = scalar_select %p346, %s345, 47
      %s348 = smul.addr %s347, 4
      %s349 = scalar_lea.vmem %s1, %s348
      %p350 = pneg %p80
      %p351 = pneg %p77
      %s352 = smul.u32 24, %s23
      %p353 = scmp.lt.s32.totalorder %s352, 47
      %s354 = scalar_select %p353, %s352, 47
      %s355 = smul.addr %s354, 4
      %s356 = scalar_lea.vmem %s2, %s355
      %p357 = pneg %p106
      %p358 = pneg %p103
      %p359 = pneg %p127
      %p360 = pneg %p124
      %p361 = pneg %p148
      %p362 = pneg %p145
      %p363 = pneg %p169
      %p364 = pneg %p166
      %s365 = smul.u32 24, %s23
      %p366 = scmp.lt.s32.totalorder %s365, 47
      %s367 = scalar_select %p366, %s365, 47
      %s368 = smul.addr %s367, 8
      %s369 = scalar_lea.vmem %s6, %s368
      %p370 = pneg %p195
      %p371 = pneg %p192
      %s372 = smul.u32 24, %s23
      %p373 = scmp.lt.s32.totalorder %s372, 47
      %s374 = scalar_select %p373, %s372, 47
      %s375 = smul.addr %s374, 8
      %s376 = scalar_lea.vmem %s7, %s375
      %p377 = pneg %p221
      %p378 = pneg %p218
      %p379 = pneg %p247
      %p380 = pneg %p244
      %s381 = smul.u32 24, %s23
      %p382 = scmp.lt.s32.totalorder %s381, 47
      %s383 = scalar_select %p382, %s381, 47
      %s384 = smul.addr %s383, 4
      %s385 = scalar_lea.vmem %s8, %s384
      %s386 = smul.u32 6, %s23
      %s387 = smul.u32 3, %s24
      %p388 = scmp.lt.s32.totalorder %s386, 11
      %s389 = scalar_select %p388, %s386, 11
      %p390 = scmp.lt.s32.totalorder %s387, 2
      %s391 = scalar_select %p390, %s387, 2
      %s392 = smul.addr %s389, 3
      %s393 = sadd.s32 %s391, %s392
      %s394 = smul.addr %s393, 8
      %s395 = scalar_lea.vmem %s0, %s394
      %s396 = smul.u32 6, %s23
      %s397 = smul.u32 3, %s24
      %s398 = smul.u32 48, %s24
      %p399 = scmp.lt.s32.totalorder %s398, 47
      %s400 = scalar_select %p399, %s398, 47
      %s401 = smul.addr %s400, 4
      %s402 = scalar_lea.vmem %s1, %s401
      %s403 = smul.u32 48, %s24
      %s404 = smul.u32 24, %s23
      %p405 = scmp.lt.s32.totalorder %s404, 47
      %s406 = scalar_select %p405, %s404, 47
      %s407 = smul.addr %s406, 4
      %s408 = scalar_lea.vmem %s2, %s407
      %s409 = smul.u32 24, %s23
      %s410 = smul.u32 24, %s23
      %p411 = scmp.lt.s32.totalorder %s410, 47
      %s412 = scalar_select %p411, %s410, 47
      %s413 = smul.addr %s412, 8
      %s414 = scalar_lea.vmem %s6, %s413
      %s415 = smul.u32 24, %s23
      %s416 = smul.u32 24, %s23
      %p417 = scmp.lt.s32.totalorder %s416, 47
      %s418 = scalar_select %p417, %s416, 47
      %s419 = smul.addr %s418, 8
      %s420 = scalar_lea.vmem %s7, %s419
      %s421 = smul.u32 24, %s23
      %s422 = smul.u32 24, %s23
      %p423 = scmp.lt.s32.totalorder %s422, 47
      %s424 = scalar_select %p423, %s422, 47
      %s425 = smul.addr %s424, 4
      %s426 = scalar_lea.vmem %s8, %s425
      %s427 = smul.u32 24, %s23
      %p429 = scmp.eq.s32.totalorder %s24, 0
      // Predicated region
      $region53: #{graphsage_forward.3} parent=51 // pred_check
        %p430 = pneg %p429
      $region54: #{graphsage_forward.3} parent=51 // pred_check_branch
        %432 = sbr.rel (%p430) target = $region56
      $region55: #{graphsage_forward.3} parent=51 // pred_region
        %vm433 = vcmask 261120
        %434 = vst.msk [vmem:[#allocation2] sm:$0xff] %vm433, 0.0
        %435 = vst.msk [vmem:[#allocation2 + $0x8] sm:$0xff] %vm433, 0.0
        %436 = vst.msk [vmem:[#allocation2 + $0x10] sm:$0xff] %vm433, 0.0
        %437 = vst.msk [vmem:[#allocation2 + $0x18] sm:$0xff] %vm433, 0.0
        %438 = vst.msk [vmem:[#allocation2 + $0x20] sm:$0xff] %vm433, 0.0
        %439 = vst.msk [vmem:[#allocation2 + $0x28] sm:$0xff] %vm433, 0.0
        %440 = vst.msk [vmem:[#allocation2 + $0x30] sm:$0xff] %vm433, 0.0
        %441 = vst.msk [vmem:[#allocation2 + $0x38] sm:$0xff] %vm433, 0.0
        %442 = vst.msk [vmem:[#allocation2 + $0x40] sm:$0xff] %vm433, 0.0
        %443 = vst.msk [vmem:[#allocation2 + $0x48] sm:$0xff] %vm433, 0.0
        %444 = vst.msk [vmem:[#allocation2 + $0x50] sm:$0xff] %vm433, 0.0
        %445 = vst.msk [vmem:[#allocation2 + $0x58] sm:$0xff] %vm433, 0.0
        %446 = vst.msk [vmem:[#allocation2 + $0x60] sm:$0xff] %vm433, 0.0
        %447 = vst.msk [vmem:[#allocation2 + $0x68] sm:$0xff] %vm433, 0.0
        %448 = vst.msk [vmem:[#allocation2 + $0x70] sm:$0xff] %vm433, 0.0
        %449 = vst.msk [vmem:[#allocation2 + $0x78] sm:$0xff] %vm433, 0.0
        %450 = vst.msk [vmem:[#allocation2 + $0x80] sm:$0xff] %vm433, 0.0
        %451 = vst.msk [vmem:[#allocation2 + $0x88] sm:$0xff] %vm433, 0.0
        %452 = vst.msk [vmem:[#allocation2 + $0x90] sm:$0xff] %vm433, 0.0
        %453 = vst.msk [vmem:[#allocation2 + $0x98] sm:$0xff] %vm433, 0.0
        %454 = vst.msk [vmem:[#allocation2 + $0xa0] sm:$0xff] %vm433, 0.0
        %455 = vst.msk [vmem:[#allocation2 + $0xa8] sm:$0xff] %vm433, 0.0
        %456 = vst.msk [vmem:[#allocation2 + $0xb0] sm:$0xff] %vm433, 0.0
        %457 = vst.msk [vmem:[#allocation2 + $0xb8] sm:$0xff] %vm433, 0.0
      $region56: #{graphsage_forward.3} parent=51 // pred_fallthru
        _
      %v458 = vld [vmem:[%s395] sm:$0xff]
      %v459 = vld [vmem:[%s395 + $0x8] sm:$0xff]
      %v460 = vld [vmem:[%s395 + $0x10] sm:$0xff]
      %v461 = vld [vmem:[%s395 + $0x18] sm:$0xff]
      %v462 = vld [vmem:[%s395 + $0x20] sm:$0xff]
      %v463 = vld [vmem:[%s395 + $0x28] sm:$0xff]
      %v464 = vld [vmem:[%s395 + $0x30] sm:$0xff]
      %v465 = vld [vmem:[%s395 + $0x38] sm:$0xff]
      %v466 = vld [vmem:[%s395 + $0x40] sm:$0xff]
      %v467 = vld [vmem:[%s395 + $0x48] sm:$0xff]
      %v468 = vld [vmem:[%s395 + $0x50] sm:$0xff]
      %v469 = vld [vmem:[%s395 + $0x58] sm:$0xff]
      %v470 = vld [vmem:[%s395 + $0x60] sm:$0xff]
      %v471 = vld [vmem:[%s395 + $0x68] sm:$0xff]
      %v472 = vld [vmem:[%s395 + $0x70] sm:$0xff]
      %v473 = vld [vmem:[%s395 + $0x78] sm:$0xff]
      %v474 = vld [vmem:[%s395 + $0x80] sm:$0xff]
      %v475 = vld [vmem:[%s395 + $0x88] sm:$0xff]
      %v476 = vunpack.c.l.s8.bf16 %v458
      %v477 = vunpack.c.l.s8.bf16 %v459
      %v478 = vunpack.c.l.s8.bf16 %v460
      %v479 = vunpack.c.h.s8.bf16 %v458
      %v480 = vunpack.c.h.s8.bf16 %v459
      %v481 = vunpack.c.h.s8.bf16 %v460
      %v482 = vunpack.c.l.s8.bf16 %v461
      %v483 = vunpack.c.l.s8.bf16 %v462
      %v484 = vunpack.c.l.s8.bf16 %v463
      %v485 = vunpack.c.h.s8.bf16 %v461
      %v486 = vunpack.c.h.s8.bf16 %v462
      %v487 = vunpack.c.h.s8.bf16 %v463
      %v488 = vunpack.c.l.s8.bf16 %v464
      %v489 = vunpack.c.l.s8.bf16 %v465
      %v490 = vunpack.c.l.s8.bf16 %v466
      %v491 = vunpack.c.h.s8.bf16 %v464
      %v492 = vunpack.c.h.s8.bf16 %v465
      %v493 = vunpack.c.h.s8.bf16 %v466
      %v494 = vunpack.c.l.s8.bf16 %v467
      %v495 = vunpack.c.l.s8.bf16 %v468
      %v496 = vunpack.c.l.s8.bf16 %v469
      %v497 = vunpack.c.h.s8.bf16 %v467
      %v498 = vunpack.c.h.s8.bf16 %v468
      %v499 = vunpack.c.h.s8.bf16 %v469
      %v500 = vunpack.c.l.s8.bf16 %v470
      %v501 = vunpack.c.l.s8.bf16 %v471
      %v502 = vunpack.c.l.s8.bf16 %v472
      %v503 = vunpack.c.h.s8.bf16 %v470
      %v504 = vunpack.c.h.s8.bf16 %v471
      %v505 = vunpack.c.h.s8.bf16 %v472
      %v506 = vunpack.c.l.s8.bf16 %v473
      %v507 = vunpack.c.l.s8.bf16 %v474
      %v508 = vunpack.c.l.s8.bf16 %v475
      %v509 = vunpack.c.h.s8.bf16 %v473
      %v510 = vunpack.c.h.s8.bf16 %v474
      %v511 = vunpack.c.h.s8.bf16 %v475
      %v512 = vld [vmem:[#allocation2] sm:$0xff]
      %v513 = vld [vmem:[#allocation2 + $0x8] sm:$0xff]
      %v514 = vld [vmem:[#allocation2 + $0x10] sm:$0xff]
      %v515 = vld [vmem:[#allocation2 + $0x18] sm:$0xff]
      %v516 = vld [vmem:[#allocation2 + $0x20] sm:$0xff]
      %v517 = vld [vmem:[#allocation2 + $0x28] sm:$0xff]
      %v518 = vld [vmem:[#allocation2 + $0x30] sm:$0xff]
      %v519 = vld [vmem:[#allocation2 + $0x38] sm:$0xff]
      %v520 = vld [vmem:[#allocation2 + $0x40] sm:$0xff]
      %v521 = vld [vmem:[#allocation2 + $0x48] sm:$0xff]
      %v522 = vld [vmem:[#allocation2 + $0x50] sm:$0xff]
      %v523 = vld [vmem:[#allocation2 + $0x58] sm:$0xff]
      %v524 = vld [vmem:[#allocation2 + $0x60] sm:$0xff]
      %v525 = vld [vmem:[#allocation2 + $0x68] sm:$0xff]
      %v526 = vld [vmem:[#allocation2 + $0x70] sm:$0xff]
      %v527 = vld [vmem:[#allocation2 + $0x78] sm:$0xff]
      %v528 = vld [vmem:[#allocation2 + $0x80] sm:$0xff]
      %v529 = vld [vmem:[#allocation2 + $0x88] sm:$0xff]
      %v530 = vld [vmem:[#allocation2 + $0x90] sm:$0xff]
      %v531 = vld [vmem:[#allocation2 + $0x98] sm:$0xff]
      %v532 = vld [vmem:[#allocation2 + $0xa0] sm:$0xff]
      %v533 = vld [vmem:[#allocation2 + $0xa8] sm:$0xff]
      %v534 = vld [vmem:[#allocation2 + $0xb0] sm:$0xff]
      %v535 = vld [vmem:[#allocation2 + $0xb8] sm:$0xff]
      %v536 = vld [vmem:[%s402] sm:$0xf]
      %v537 = vld [vmem:[%s402 + $0x4] sm:$0xf]
      %v538 = vld [vmem:[%s402 + $0x8] sm:$0xf]
      %v539 = vld [vmem:[%s402 + $0xc] sm:$0xf]
      %v540 = vld [vmem:[%s402 + $0x10] sm:$0xf]
      %v541 = vld [vmem:[%s402 + $0x14] sm:$0xf]
      %v542 = vld [vmem:[%s402 + $0x18] sm:$0xf]
      %v543 = vld [vmem:[%s402 + $0x1c] sm:$0xf]
      %v544 = vld [vmem:[%s402 + $0x20] sm:$0xf]
      %v545 = vld [vmem:[%s402 + $0x24] sm:$0xf]
      %v546 = vld [vmem:[%s402 + $0x28] sm:$0xf]
      %v547 = vld [vmem:[%s402 + $0x2c] sm:$0xf]
      %v548 = vld [vmem:[%s402 + $0x30] sm:$0xf]
      %v549 = vld [vmem:[%s402 + $0x34] sm:$0xf]
      %v550 = vld [vmem:[%s402 + $0x38] sm:$0xf]
      %v551 = vld [vmem:[%s402 + $0x3c] sm:$0xf]
      %v552 = vld [vmem:[%s402 + $0x40] sm:$0xf]
      %v553 = vld [vmem:[%s402 + $0x44] sm:$0xf]
      %v554 = vld [vmem:[%s402 + $0x48] sm:$0xf]
      %v555 = vld [vmem:[%s402 + $0x4c] sm:$0xf]
      %v556 = vld [vmem:[%s402 + $0x50] sm:$0xf]
      %v557 = vld [vmem:[%s402 + $0x54] sm:$0xf]
      %v558 = vld [vmem:[%s402 + $0x58] sm:$0xf]
      %v559 = vld [vmem:[%s402 + $0x5c] sm:$0xf]
      %v560 = vld [vmem:[%s402 + $0x60] sm:$0xf]
      %v561 = vld [vmem:[%s402 + $0x64] sm:$0xf]
      %v562 = vld [vmem:[%s402 + $0x68] sm:$0xf]
      %v563 = vld [vmem:[%s402 + $0x6c] sm:$0xf]
      %v564 = vld [vmem:[%s402 + $0x70] sm:$0xf]
      %v565 = vld [vmem:[%s402 + $0x74] sm:$0xf]
      %v566 = vld [vmem:[%s402 + $0x78] sm:$0xf]
      %v567 = vld [vmem:[%s402 + $0x7c] sm:$0xf]
      %v568 = vld [vmem:[%s402 + $0x80] sm:$0xf]
      %v569 = vld [vmem:[%s402 + $0x84] sm:$0xf]
      %v570 = vld [vmem:[%s402 + $0x88] sm:$0xf]
      %v571 = vld [vmem:[%s402 + $0x8c] sm:$0xf]
      %v572 = vld [vmem:[%s402 + $0x90] sm:$0xf]
      %v573 = vld [vmem:[%s402 + $0x94] sm:$0xf]
      %v574 = vld [vmem:[%s402 + $0x98] sm:$0xf]
      %v575 = vld [vmem:[%s402 + $0x9c] sm:$0xf]
      %v576 = vld [vmem:[%s402 + $0xa0] sm:$0xf]
      %v577 = vld [vmem:[%s402 + $0xa4] sm:$0xf]
      %v578 = vld [vmem:[%s402 + $0xa8] sm:$0xf]
      %v579 = vld [vmem:[%s402 + $0xac] sm:$0xf]
      %v580 = vld [vmem:[%s402 + $0xb0] sm:$0xf]
      %v581 = vld [vmem:[%s402 + $0xb4] sm:$0xf]
      %v582 = vld [vmem:[%s402 + $0xb8] sm:$0xf]
      %v583 = vld [vmem:[%s402 + $0xbc] sm:$0xf]
      %v632 = vunpack.c.l.b16 %v536
      %v633 = vunpack.c.l.b16 %v537
      %v634 = vunpack.c.l.b16 %v538
      %v635 = vunpack.c.l.b16 %v539
      %v636 = vunpack.c.l.b16 %v540
      %v637 = vunpack.c.l.b16 %v541
      %v638 = vunpack.c.l.b16 %v542
      %v639 = vunpack.c.l.b16 %v543
      %v640 = vunpack.c.l.b16 %v544
      %v641 = vunpack.c.l.b16 %v545
      %v642 = vunpack.c.l.b16 %v546
      %v643 = vunpack.c.l.b16 %v547
      %v644 = vunpack.c.l.b16 %v548
      %v645 = vunpack.c.l.b16 %v549
      %v646 = vunpack.c.l.b16 %v550
      %v647 = vunpack.c.l.b16 %v551
      %v648 = vunpack.c.l.b16 %v552
      %v649 = vunpack.c.l.b16 %v553
      %v650 = vunpack.c.l.b16 %v554
      %v651 = vunpack.c.l.b16 %v555
      %v652 = vunpack.c.l.b16 %v556
      %v653 = vunpack.c.l.b16 %v557
      %v654 = vunpack.c.l.b16 %v558
      %v655 = vunpack.c.l.b16 %v559
      %v656 = vunpack.c.l.b16 %v560
      %v657 = vunpack.c.l.b16 %v561
      %v658 = vunpack.c.l.b16 %v562
      %v659 = vunpack.c.l.b16 %v563
      %v660 = vunpack.c.l.b16 %v564
      %v661 = vunpack.c.l.b16 %v565
      %v662 = vunpack.c.l.b16 %v566
      %v663 = vunpack.c.l.b16 %v567
      %v664 = vunpack.c.l.b16 %v568
      %v665 = vunpack.c.l.b16 %v569
      %v666 = vunpack.c.l.b16 %v570
      %v667 = vunpack.c.l.b16 %v571
      %v668 = vunpack.c.l.b16 %v572
      %v669 = vunpack.c.l.b16 %v573
      %v670 = vunpack.c.l.b16 %v574
      %v671 = vunpack.c.l.b16 %v575
      %v672 = vunpack.c.l.b16 %v576
      %v673 = vunpack.c.l.b16 %v577
      %v674 = vunpack.c.l.b16 %v578
      %v675 = vunpack.c.l.b16 %v579
      %v676 = vunpack.c.l.b16 %v580
      %v677 = vunpack.c.l.b16 %v581
      %v678 = vunpack.c.l.b16 %v582
      %v679 = vunpack.c.l.b16 %v583
      %v680 = vpack.c.b16 %v633, %v632
      %v681 = vpack.c.b16 %v635, %v634
      %v682 = vpack.c.b16 %v637, %v636
      %v683 = vpack.c.b16 %v639, %v638
      %v684 = vpack.c.b16 %v641, %v640
      %v685 = vpack.c.b16 %v643, %v642
      %v686 = vpack.c.b16 %v645, %v644
      %v687 = vpack.c.b16 %v647, %v646
      %v688 = vpack.c.b16 %v649, %v648
      %v689 = vpack.c.b16 %v651, %v650
      %v690 = vpack.c.b16 %v653, %v652
      %v691 = vpack.c.b16 %v655, %v654
      %v692 = vpack.c.b16 %v657, %v656
      %v693 = vpack.c.b16 %v659, %v658
      %v694 = vpack.c.b16 %v661, %v660
      %v695 = vpack.c.b16 %v663, %v662
      %v696 = vpack.c.b16 %v665, %v664
      %v697 = vpack.c.b16 %v667, %v666
      %v698 = vpack.c.b16 %v669, %v668
      %v699 = vpack.c.b16 %v671, %v670
      %v700 = vpack.c.b16 %v673, %v672
      %v701 = vpack.c.b16 %v675, %v674
      %v702 = vpack.c.b16 %v677, %v676
      %v703 = vpack.c.b16 %v679, %v678
      %728 = vmatprep.subr.bf16.mxu0 0
      %729 = vmatpush1.bf16.msra.mxu0 %v680
      %730 = vmatprep.subr.bf16.mxu0 0
      %731 = vmatpush1.bf16.msra.mxu0 %v681
      %732 = vmatprep.subr.bf16.mxu0 0
      %733 = vmatpush1.bf16.msra.mxu0 %v682
      %734 = vmatprep.subr.bf16.mxu0 0
      %735 = vmatpush1.bf16.msra.mxu0 %v683
      %736 = vmatprep.subr.bf16.mxu0 0
      %737 = vmatpush1.bf16.msra.mxu0 %v684
      %738 = vmatprep.subr.bf16.mxu0 0
      %739 = vmatpush1.bf16.msra.mxu0 %v685
      %740 = vmatprep.subr.bf16.mxu0 0
      %741 = vmatpush1.bf16.msra.mxu0 %v686
      %742 = vmatprep.subr.bf16.mxu0 0
      %743 = vmatpush1.bf16.msra.mxu0 %v687
      %744 = vmatprep.subr.bf16.mxu0 0
      %745 = vmatpush1.bf16.msra.mxu0 %v688
      %746 = vmatprep.subr.bf16.mxu0 0
      %747 = vmatpush1.bf16.msra.mxu0 %v689
      %748 = vmatprep.subr.bf16.mxu0 0
      %749 = vmatpush1.bf16.msra.mxu0 %v690
      %750 = vmatprep.subr.bf16.mxu0 0
      %751 = vmatpush1.bf16.msra.mxu0 %v691
      %752 = vmatprep.subr.bf16.mxu0 0
      %753 = vmatpush1.bf16.msra.mxu0 %v692
      %754 = vmatprep.subr.bf16.mxu0 0
      %755 = vmatpush1.bf16.msra.mxu0 %v693
      %756 = vmatprep.subr.bf16.mxu0 0
      %757 = vmatpush1.bf16.msra.mxu0 %v694
      %758 = vmatprep.subr.bf16.mxu0 0
      %759 = vmatpush1.bf16.msra.mxu0 %v695
      %760 = vmatprep.mubr.bf16.mxu0 %v477
      %761 = vmatmul.mubr.bf16.gmra.mrb[0].mxu0 %v476
      %v762 = vpop.f32.mrb[0].mxu0
      %v763 = vadd.f32 0.0, %v762
      %v764 = vpop.f32.mrb[0].mxu0
      %v765 = vpop.f32.mrb[0].mxu0
      %v766 = vadd.f32 0.0, %v765
      %v767 = vpop.f32.mrb[0].mxu0
      %768 = vmatprep.mubr.bf16.mxu0 %v480
      %769 = vmatmul.mubr.bf16.gmra.mrb[0].mxu0 %v479
      %v770 = vpop.f32.mrb[0].mxu0
      %v771 = vadd.f32 0.0, %v770
      %v772 = vpop.f32.mrb[0].mxu0
      %v773 = vpop.f32.mrb[0].mxu0
      %v774 = vadd.f32 0.0, %v773
      %v775 = vpop.f32.mrb[0].mxu0
      %776 = vmatprep.mubr.bf16.mxu0 %v483
      %777 = vmatmul.mubr.bf16.gmra.mrb[0].mxu0 %v482
      %v778 = vpop.f32.mrb[0].mxu0
      %v779 = vadd.f32 0.0, %v778
      %v780 = vpop.f32.mrb[0].mxu0
      %v781 = vpop.f32.mrb[0].mxu0
      %v782 = vadd.f32 0.0, %v781
      %v783 = vpop.f32.mrb[0].mxu0
      %784 = vmatprep.mubr.bf16.mxu0 %v486
      %785 = vmatmul.mubr.bf16.gmra.mrb[0].mxu0 %v485
      %v786 = vpop.f32.mrb[0].mxu0
      %v787 = vadd.f32 0.0, %v786
      %v788 = vpop.f32.mrb[0].mxu0
      %v789 = vpop.f32.mrb[0].mxu0
      %v790 = vadd.f32 0.0, %v789
      %v791 = vpop.f32.mrb[0].mxu0
      %792 = vmatprep.mubr.bf16.mxu0 %v489
      %793 = vmatmul.mubr.bf16.gmra.mrb[0].mxu0 %v488
      %v794 = vpop.f32.mrb[0].mxu0
      %v795 = vadd.f32 0.0, %v794
      %v796 = vpop.f32.mrb[0].mxu0
      %v797 = vpop.f32.mrb[0].mxu0
      %v798 = vadd.f32 0.0, %v797
      %v799 = vpop.f32.mrb[0].mxu0
      %800 = vmatprep.mubr.bf16.mxu0 %v492
      %801 = vmatmul.mubr.bf16.gmra.mrb[0].mxu0 %v491
      %v802 = vpop.f32.mrb[0].mxu0
      %v803 = vadd.f32 0.0, %v802
      %v804 = vpop.f32.mrb[0].mxu0
      %v805 = vpop.f32.mrb[0].mxu0
      %v806 = vadd.f32 0.0, %v805
      %v807 = vpop.f32.mrb[0].mxu0
      %808 = vmatprep.mubr.bf16.mxu0 %v495
      %809 = vmatmul.mubr.bf16.gmra.mrb[0].mxu0 %v494
      %v810 = vpop.f32.mrb[0].mxu0
      %v811 = vadd.f32 0.0, %v810
      %v812 = vpop.f32.mrb[0].mxu0
      %v813 = vpop.f32.mrb[0].mxu0
      %v814 = vadd.f32 0.0, %v813
      %v815 = vpop.f32.mrb[0].mxu0
      %816 = vmatprep.mubr.bf16.mxu0 %v498
      %817 = vmatmul.mubr.bf16.gmra.mrb[0].mxu0 %v497
      %v818 = vpop.f32.mrb[0].mxu0
      %v819 = vadd.f32 0.0, %v818
      %v820 = vpop.f32.mrb[0].mxu0
      %v821 = vpop.f32.mrb[0].mxu0
      %v822 = vadd.f32 0.0, %v821
      %v823 = vpop.f32.mrb[0].mxu0
      %824 = vmatprep.mubr.bf16.mxu0 %v501
      %825 = vmatmul.mubr.bf16.gmra.mrb[0].mxu0 %v500
      %v826 = vpop.f32.mrb[0].mxu0
      %v827 = vadd.f32 0.0, %v826
      %v828 = vpop.f32.mrb[0].mxu0
      %v829 = vpop.f32.mrb[0].mxu0
      %v830 = vadd.f32 0.0, %v829
      %v831 = vpop.f32.mrb[0].mxu0
      %832 = vmatprep.mubr.bf16.mxu0 %v504
      %833 = vmatmul.mubr.bf16.gmra.mrb[0].mxu0 %v503
      %v834 = vpop.f32.mrb[0].mxu0
      %v835 = vadd.f32 0.0, %v834
      %v836 = vpop.f32.mrb[0].mxu0
      %v837 = vpop.f32.mrb[0].mxu0
      %v838 = vadd.f32 0.0, %v837
      %v839 = vpop.f32.mrb[0].mxu0
      %840 = vmatprep.mubr.bf16.mxu0 %v507
      %841 = vmatmul.mubr.bf16.gmra.mrb[0].mxu0 %v506
      %v842 = vpop.f32.mrb[0].mxu0
      %v843 = vadd.f32 0.0, %v842
      %v844 = vpop.f32.mrb[0].mxu0
      %v845 = vpop.f32.mrb[0].mxu0
      %v846 = vadd.f32 0.0, %v845
      %v847 = vpop.f32.mrb[0].mxu0
      %848 = vmatprep.mubr.bf16.mxu0 %v510
      %849 = vmatmul.mubr.bf16.gmra.mrb[0].mxu0 %v509
      %v850 = vpop.f32.mrb[0].mxu0
      %v851 = vadd.f32 0.0, %v850
      %v852 = vpop.f32.mrb[0].mxu0
      %v853 = vpop.f32.mrb[0].mxu0
      %v854 = vadd.f32 0.0, %v853
      %v855 = vpop.f32.mrb[0].mxu0
      %856 = vdwg.mxu0
      %857 = vmatprep.subr.bf16.mxu0 0
      %858 = vmatpush1.bf16.msra.mxu0 %v696
      %859 = vmatprep.subr.bf16.mxu0 0
      %860 = vmatpush1.bf16.msra.mxu0 %v697
      %861 = vmatprep.subr.bf16.mxu0 0
      %862 = vmatpush1.bf16.msra.mxu0 %v698
      %863 = vmatprep.subr.bf16.mxu0 0
      %864 = vmatpush1.bf16.msra.mxu0 %v699
      %865 = vmatprep.subr.bf16.mxu0 0
      %866 = vmatpush1.bf16.msra.mxu0 %v700
      %867 = vmatprep.subr.bf16.mxu0 0
      %868 = vmatpush1.bf16.msra.mxu0 %v701
      %869 = vmatprep.subr.bf16.mxu0 0
      %870 = vmatpush1.bf16.msra.mxu0 %v702
      %871 = vmatprep.subr.bf16.mxu0 0
      %872 = vmatpush1.bf16.msra.mxu0 %v703
      %873 = vmatprep.subr.bf16.mxu0 0
      %874 = vmatpush1.bf16.msra.mxu0 0
      %875 = vmatprep.subr.bf16.mxu0 0
      %876 = vmatpush1.bf16.msra.mxu0 0
      %877 = vmatprep.subr.bf16.mxu0 0
      %878 = vmatpush1.bf16.msra.mxu0 0
      %879 = vmatprep.subr.bf16.mxu0 0
      %880 = vmatpush1.bf16.msra.mxu0 0
      %881 = vmatprep.subr.bf16.mxu0 0
      %882 = vmatpush1.bf16.msra.mxu0 0
      %883 = vmatprep.subr.bf16.mxu0 0
      %884 = vmatpush1.bf16.msra.mxu0 0
      %885 = vmatprep.subr.bf16.mxu0 0
      %886 = vmatpush1.bf16.msra.mxu0 0
      %887 = vmatprep.subr.bf16.mxu0 0
      %888 = vmatpush1.bf16.msra.mxu0 0
      %889 = vmatprep.mubr.bf16.mxu0 0
      %890 = vmatmul.mubr.bf16.gmra.mrb[0].mxu0 %v478
      %v891 = vpop.f32.mrb[0].mxu0
      %v892 = vadd.f32 %v763, %v891
      %v893 = vpop.f32.mrb[0].mxu0
      %v894 = vpop.f32.mrb[0].mxu0
      %v895 = vadd.f32 %v766, %v894
      %v896 = vpop.f32.mrb[0].mxu0
      %897 = vmatprep.mubr.bf16.mxu0 0
      %898 = vmatmul.mubr.bf16.gmra.mrb[0].mxu0 %v481
      %v899 = vpop.f32.mrb[0].mxu0
      %v900 = vadd.f32 %v771, %v899
      %v901 = vpop.f32.mrb[0].mxu0
      %v902 = vpop.f32.mrb[0].mxu0
      %v903 = vadd.f32 %v774, %v902
      %v904 = vpop.f32.mrb[0].mxu0
      %905 = vmatprep.mubr.bf16.mxu0 0
      %906 = vmatmul.mubr.bf16.gmra.mrb[0].mxu0 %v484
      %v907 = vpop.f32.mrb[0].mxu0
      %v908 = vadd.f32 %v779, %v907
      %v909 = vpop.f32.mrb[0].mxu0
      %v910 = vpop.f32.mrb[0].mxu0
      %v911 = vadd.f32 %v782, %v910
      %v912 = vpop.f32.mrb[0].mxu0
      %913 = vmatprep.mubr.bf16.mxu0 0
      %914 = vmatmul.mubr.bf16.gmra.mrb[0].mxu0 %v487
      %v915 = vpop.f32.mrb[0].mxu0
      %v916 = vadd.f32 %v787, %v915
      %v917 = vpop.f32.mrb[0].mxu0
      %v918 = vpop.f32.mrb[0].mxu0
      %v919 = vadd.f32 %v790, %v918
      %v920 = vpop.f32.mrb[0].mxu0
      %921 = vmatprep.mubr.bf16.mxu0 0
      %922 = vmatmul.mubr.bf16.gmra.mrb[0].mxu0 %v490
      %v923 = vpop.f32.mrb[0].mxu0
      %v924 = vadd.f32 %v795, %v923
      %v925 = vpop.f32.mrb[0].mxu0
      %v926 = vpop.f32.mrb[0].mxu0
      %v927 = vadd.f32 %v798, %v926
      %v928 = vpop.f32.mrb[0].mxu0
      %929 = vmatprep.mubr.bf16.mxu0 0
      %930 = vmatmul.mubr.bf16.gmra.mrb[0].mxu0 %v493
      %v931 = vpop.f32.mrb[0].mxu0
      %v932 = vadd.f32 %v803, %v931
      %v933 = vpop.f32.mrb[0].mxu0
      %v934 = vpop.f32.mrb[0].mxu0
      %v935 = vadd.f32 %v806, %v934
      %v936 = vpop.f32.mrb[0].mxu0
      %937 = vmatprep.mubr.bf16.mxu0 0
      %938 = vmatmul.mubr.bf16.gmra.mrb[0].mxu0 %v496
      %v939 = vpop.f32.mrb[0].mxu0
      %v940 = vadd.f32 %v811, %v939
      %v941 = vpop.f32.mrb[0].mxu0
      %v942 = vpop.f32.mrb[0].mxu0
      %v943 = vadd.f32 %v814, %v942
      %v944 = vpop.f32.mrb[0].mxu0
      %945 = vmatprep.mubr.bf16.mxu0 0
      %946 = vmatmul.mubr.bf16.gmra.mrb[0].mxu0 %v499
      %v947 = vpop.f32.mrb[0].mxu0
      %v948 = vadd.f32 %v819, %v947
      %v949 = vpop.f32.mrb[0].mxu0
      %v950 = vpop.f32.mrb[0].mxu0
      %v951 = vadd.f32 %v822, %v950
      %v952 = vpop.f32.mrb[0].mxu0
      %953 = vmatprep.mubr.bf16.mxu0 0
      %954 = vmatmul.mubr.bf16.gmra.mrb[0].mxu0 %v502
      %v955 = vpop.f32.mrb[0].mxu0
      %v956 = vadd.f32 %v827, %v955
      %v957 = vpop.f32.mrb[0].mxu0
      %v958 = vpop.f32.mrb[0].mxu0
      %v959 = vadd.f32 %v830, %v958
      %v960 = vpop.f32.mrb[0].mxu0
      %961 = vmatprep.mubr.bf16.mxu0 0
      %962 = vmatmul.mubr.bf16.gmra.mrb[0].mxu0 %v505
      %v963 = vpop.f32.mrb[0].mxu0
      %v964 = vadd.f32 %v835, %v963
      %v965 = vpop.f32.mrb[0].mxu0
      %v966 = vpop.f32.mrb[0].mxu0
      %v967 = vadd.f32 %v838, %v966
      %v968 = vpop.f32.mrb[0].mxu0
      %969 = vmatprep.mubr.bf16.mxu0 0
      %970 = vmatmul.mubr.bf16.gmra.mrb[0].mxu0 %v508
      %v971 = vpop.f32.mrb[0].mxu0
      %v972 = vadd.f32 %v843, %v971
      %v973 = vpop.f32.mrb[0].mxu0
      %v974 = vpop.f32.mrb[0].mxu0
      %v975 = vadd.f32 %v846, %v974
      %v976 = vpop.f32.mrb[0].mxu0
      %977 = vmatprep.mubr.bf16.mxu0 0
      %978 = vmatmul.mubr.bf16.gmra.mrb[0].mxu0 %v511
      %v979 = vpop.f32.mrb[0].mxu0
      %v980 = vadd.f32 %v851, %v979
      %v981 = vpop.f32.mrb[0].mxu0
      %v982 = vpop.f32.mrb[0].mxu0
      %v983 = vadd.f32 %v854, %v982
      %v984 = vpop.f32.mrb[0].mxu0
      %985 = vdwg.mxu0
      %v986 = vadd.f32 %v512, %v892
      %v987 = vadd.f32 %v513, %v895
      %v988 = vadd.f32 %v514, %v900
      %v989 = vadd.f32 %v515, %v903
      %v990 = vadd.f32 %v516, %v908
      %v991 = vadd.f32 %v517, %v911
      %v992 = vadd.f32 %v518, %v916
      %v993 = vadd.f32 %v519, %v919
      %v994 = vadd.f32 %v520, %v924
      %v995 = vadd.f32 %v521, %v927
      %v996 = vadd.f32 %v522, %v932
      %v997 = vadd.f32 %v523, %v935
      %v998 = vadd.f32 %v524, %v940
      %v999 = vadd.f32 %v525, %v943
      %v1000 = vadd.f32 %v526, %v948
      %v1001 = vadd.f32 %v527, %v951
      %v1002 = vadd.f32 %v528, %v956
      %v1003 = vadd.f32 %v529, %v959
      %v1004 = vadd.f32 %v530, %v964
      %v1005 = vadd.f32 %v531, %v967
      %v1006 = vadd.f32 %v532, %v972
      %v1007 = vadd.f32 %v533, %v975
      %v1008 = vadd.f32 %v534, %v980
      %v1009 = vadd.f32 %v535, %v983
      %vm1010 = vcmask 261120
      %1011 = vst.msk [vmem:[#allocation2] sm:$0xff] %vm1010, %v986
      %1012 = vst.msk [vmem:[#allocation2 + $0x8] sm:$0xff] %vm1010, %v987
      %1013 = vst.msk [vmem:[#allocation2 + $0x10] sm:$0xff] %vm1010, %v988
      %1014 = vst.msk [vmem:[#allocation2 + $0x18] sm:$0xff] %vm1010, %v989
      %1015 = vst.msk [vmem:[#allocation2 + $0x20] sm:$0xff] %vm1010, %v990
      %1016 = vst.msk [vmem:[#allocation2 + $0x28] sm:$0xff] %vm1010, %v991
      %1017 = vst.msk [vmem:[#allocation2 + $0x30] sm:$0xff] %vm1010, %v992
      %1018 = vst.msk [vmem:[#allocation2 + $0x38] sm:$0xff] %vm1010, %v993
      %1019 = vst.msk [vmem:[#allocation2 + $0x40] sm:$0xff] %vm1010, %v994
      %1020 = vst.msk [vmem:[#allocation2 + $0x48] sm:$0xff] %vm1010, %v995
      %1021 = vst.msk [vmem:[#allocation2 + $0x50] sm:$0xff] %vm1010, %v996
      %1022 = vst.msk [vmem:[#allocation2 + $0x58] sm:$0xff] %vm1010, %v997
      %1023 = vst.msk [vmem:[#allocation2 + $0x60] sm:$0xff] %vm1010, %v998
      %1024 = vst.msk [vmem:[#allocation2 + $0x68] sm:$0xff] %vm1010, %v999
      %1025 = vst.msk [vmem:[#allocation2 + $0x70] sm:$0xff] %vm1010, %v1000
      %1026 = vst.msk [vmem:[#allocation2 + $0x78] sm:$0xff] %vm1010, %v1001
      %1027 = vst.msk [vmem:[#allocation2 + $0x80] sm:$0xff] %vm1010, %v1002
      %1028 = vst.msk [vmem:[#allocation2 + $0x88] sm:$0xff] %vm1010, %v1003
      %1029 = vst.msk [vmem:[#allocation2 + $0x90] sm:$0xff] %vm1010, %v1004
      %1030 = vst.msk [vmem:[#allocation2 + $0x98] sm:$0xff] %vm1010, %v1005
      %1031 = vst.msk [vmem:[#allocation2 + $0xa0] sm:$0xff] %vm1010, %v1006
      %1032 = vst.msk [vmem:[#allocation2 + $0xa8] sm:$0xff] %vm1010, %v1007
      %1033 = vst.msk [vmem:[#allocation2 + $0xb0] sm:$0xff] %vm1010, %v1008
      %1034 = vst.msk [vmem:[#allocation2 + $0xb8] sm:$0xff] %vm1010, %v1009
      // Predicated region
      $region57: #{graphsage_forward.3} parent=51 // pred_check
        %p1035 = pneg %p429
      $region58: #{graphsage_forward.3} parent=51 // pred_check_branch
        %1037 = sbr.rel (%p1035) target = $region60
      $region59: #{graphsage_forward.3} parent=51 // pred_region
        %v1038 = vld [vmem:[#allocation2] sm:$0xff]
        %v1039 = vld [vmem:[#allocation2 + $0x8] sm:$0xff]
        %v1040 = vld [vmem:[#allocation2 + $0x10] sm:$0xff]
        %v1041 = vld [vmem:[#allocation2 + $0x18] sm:$0xff]
        %v1042 = vld [vmem:[#allocation2 + $0x20] sm:$0xff]
        %v1043 = vld [vmem:[#allocation2 + $0x28] sm:$0xff]
        %v1044 = vld [vmem:[#allocation2 + $0x30] sm:$0xff]
        %v1045 = vld [vmem:[#allocation2 + $0x38] sm:$0xff]
        %v1046 = vld [vmem:[#allocation2 + $0x40] sm:$0xff]
        %v1047 = vld [vmem:[#allocation2 + $0x48] sm:$0xff]
        %v1048 = vld [vmem:[#allocation2 + $0x50] sm:$0xff]
        %v1049 = vld [vmem:[#allocation2 + $0x58] sm:$0xff]
        %v1050 = vld [vmem:[#allocation2 + $0x60] sm:$0xff]
        %v1051 = vld [vmem:[#allocation2 + $0x68] sm:$0xff]
        %v1052 = vld [vmem:[#allocation2 + $0x70] sm:$0xff]
        %v1053 = vld [vmem:[#allocation2 + $0x78] sm:$0xff]
        %v1054 = vld [vmem:[#allocation2 + $0x80] sm:$0xff]
        %v1055 = vld [vmem:[#allocation2 + $0x88] sm:$0xff]
        %v1056 = vld [vmem:[#allocation2 + $0x90] sm:$0xff]
        %v1057 = vld [vmem:[#allocation2 + $0x98] sm:$0xff]
        %v1058 = vld [vmem:[#allocation2 + $0xa0] sm:$0xff]
        %v1059 = vld [vmem:[#allocation2 + $0xa8] sm:$0xff]
        %v1060 = vld [vmem:[#allocation2 + $0xb0] sm:$0xff]
        %v1061 = vld [vmem:[#allocation2 + $0xb8] sm:$0xff]
        %v1062 = vld [vmem:[%s414] sm:$0xff]
        %v1063 = vld [vmem:[%s414 + $0x8] sm:$0xff]
        %v1064 = vld [vmem:[%s414 + $0x10] sm:$0xff]
        %v1065 = vld [vmem:[%s414 + $0x18] sm:$0xff]
        %v1066 = vld [vmem:[%s414 + $0x20] sm:$0xff]
        %v1067 = vld [vmem:[%s414 + $0x28] sm:$0xff]
        %v1068 = vld [vmem:[%s414 + $0x30] sm:$0xff]
        %v1069 = vld [vmem:[%s414 + $0x38] sm:$0xff]
        %v1070 = vld [vmem:[%s414 + $0x40] sm:$0xff]
        %v1071 = vld [vmem:[%s414 + $0x48] sm:$0xff]
        %v1072 = vld [vmem:[%s414 + $0x50] sm:$0xff]
        %v1073 = vld [vmem:[%s414 + $0x58] sm:$0xff]
        %v1074 = vld [vmem:[%s414 + $0x60] sm:$0xff]
        %v1075 = vld [vmem:[%s414 + $0x68] sm:$0xff]
        %v1076 = vld [vmem:[%s414 + $0x70] sm:$0xff]
        %v1077 = vld [vmem:[%s414 + $0x78] sm:$0xff]
        %v1078 = vld [vmem:[%s414 + $0x80] sm:$0xff]
        %v1079 = vld [vmem:[%s414 + $0x88] sm:$0xff]
        %v1080 = vld [vmem:[%s414 + $0x90] sm:$0xff]
        %v1081 = vld [vmem:[%s414 + $0x98] sm:$0xff]
        %v1082 = vld [vmem:[%s414 + $0xa0] sm:$0xff]
        %v1083 = vld [vmem:[%s414 + $0xa8] sm:$0xff]
        %v1084 = vld [vmem:[%s414 + $0xb0] sm:$0xff]
        %v1085 = vld [vmem:[%s414 + $0xb8] sm:$0xff]
        %1087 = vset.pattern.permute.xlu0 0
        %1088 = vperm.xlu0 %1087, %v1062
        %v1089 = vpop.permute.xlu0 %1088
        %1092 = vset.pattern.permute.xlu0 0
        %1093 = vperm.xlu0 %1092, %v1063
        %v1094 = vpop.permute.xlu0 %1093
        %1097 = vset.pattern.permute.xlu0 0
        %1098 = vperm.xlu0 %1097, %v1064
        %v1099 = vpop.permute.xlu0 %1098
        %1102 = vset.pattern.permute.xlu0 0
        %1103 = vperm.xlu0 %1102, %v1065
        %v1104 = vpop.permute.xlu0 %1103
        %1107 = vset.pattern.permute.xlu0 0
        %1108 = vperm.xlu0 %1107, %v1066
        %v1109 = vpop.permute.xlu0 %1108
        %1112 = vset.pattern.permute.xlu0 0
        %1113 = vperm.xlu0 %1112, %v1067
        %v1114 = vpop.permute.xlu0 %1113
        %1117 = vset.pattern.permute.xlu0 0
        %1118 = vperm.xlu0 %1117, %v1068
        %v1119 = vpop.permute.xlu0 %1118
        %1122 = vset.pattern.permute.xlu0 0
        %1123 = vperm.xlu0 %1122, %v1069
        %v1124 = vpop.permute.xlu0 %1123
        %1127 = vset.pattern.permute.xlu0 0
        %1128 = vperm.xlu0 %1127, %v1070
        %v1129 = vpop.permute.xlu0 %1128
        %1132 = vset.pattern.permute.xlu0 0
        %1133 = vperm.xlu0 %1132, %v1071
        %v1134 = vpop.permute.xlu0 %1133
        %1137 = vset.pattern.permute.xlu0 0
        %1138 = vperm.xlu0 %1137, %v1072
        %v1139 = vpop.permute.xlu0 %1138
        %1142 = vset.pattern.permute.xlu0 0
        %1143 = vperm.xlu0 %1142, %v1073
        %v1144 = vpop.permute.xlu0 %1143
        %1147 = vset.pattern.permute.xlu0 0
        %1148 = vperm.xlu0 %1147, %v1074
        %v1149 = vpop.permute.xlu0 %1148
        %1152 = vset.pattern.permute.xlu0 0
        %1153 = vperm.xlu0 %1152, %v1075
        %v1154 = vpop.permute.xlu0 %1153
        %1157 = vset.pattern.permute.xlu0 0
        %1158 = vperm.xlu0 %1157, %v1076
        %v1159 = vpop.permute.xlu0 %1158
        %1162 = vset.pattern.permute.xlu0 0
        %1163 = vperm.xlu0 %1162, %v1077
        %v1164 = vpop.permute.xlu0 %1163
        %1167 = vset.pattern.permute.xlu0 0
        %1168 = vperm.xlu0 %1167, %v1078
        %v1169 = vpop.permute.xlu0 %1168
        %1172 = vset.pattern.permute.xlu0 0
        %1173 = vperm.xlu0 %1172, %v1079
        %v1174 = vpop.permute.xlu0 %1173
        %1177 = vset.pattern.permute.xlu0 0
        %1178 = vperm.xlu0 %1177, %v1080
        %v1179 = vpop.permute.xlu0 %1178
        %1182 = vset.pattern.permute.xlu0 0
        %1183 = vperm.xlu0 %1182, %v1081
        %v1184 = vpop.permute.xlu0 %1183
        %1187 = vset.pattern.permute.xlu0 0
        %1188 = vperm.xlu0 %1187, %v1082
        %v1189 = vpop.permute.xlu0 %1188
        %1192 = vset.pattern.permute.xlu0 0
        %1193 = vperm.xlu0 %1192, %v1083
        %v1194 = vpop.permute.xlu0 %1193
        %1197 = vset.pattern.permute.xlu0 0
        %1198 = vperm.xlu0 %1197, %v1084
        %v1199 = vpop.permute.xlu0 %1198
        %1202 = vset.pattern.permute.xlu0 0
        %1203 = vperm.xlu0 %1202, %v1085
        %v1204 = vpop.permute.xlu0 %1203
        %v1206 = vmul.f32 %v1038, %v1089
        %v1207 = vmul.f32 %v1039, %v1094
        %v1208 = vmul.f32 %v1040, %v1099
        %v1209 = vmul.f32 %v1041, %v1104
        %v1210 = vmul.f32 %v1042, %v1109
        %v1211 = vmul.f32 %v1043, %v1114
        %v1212 = vmul.f32 %v1044, %v1119
        %v1213 = vmul.f32 %v1045, %v1124
        %v1214 = vmul.f32 %v1046, %v1129
        %v1215 = vmul.f32 %v1047, %v1134
        %v1216 = vmul.f32 %v1048, %v1139
        %v1217 = vmul.f32 %v1049, %v1144
        %v1218 = vmul.f32 %v1050, %v1149
        %v1219 = vmul.f32 %v1051, %v1154
        %v1220 = vmul.f32 %v1052, %v1159
        %v1221 = vmul.f32 %v1053, %v1164
        %v1222 = vmul.f32 %v1054, %v1169
        %v1223 = vmul.f32 %v1055, %v1174
        %v1224 = vmul.f32 %v1056, %v1179
        %v1225 = vmul.f32 %v1057, %v1184
        %v1226 = vmul.f32 %v1058, %v1189
        %v1227 = vmul.f32 %v1059, %v1194
        %v1228 = vmul.f32 %v1060, %v1199
        %v1229 = vmul.f32 %v1061, %v1204
        %v1230 = vpack.c.bf16 %v1207, %v1206
        %v1231 = vpack.c.bf16 %v1209, %v1208
        %v1232 = vpack.c.bf16 %v1211, %v1210
        %v1233 = vpack.c.bf16 %v1213, %v1212
        %v1234 = vpack.c.bf16 %v1215, %v1214
        %v1235 = vpack.c.bf16 %v1217, %v1216
        %v1236 = vpack.c.bf16 %v1219, %v1218
        %v1237 = vpack.c.bf16 %v1221, %v1220
        %v1238 = vpack.c.bf16 %v1223, %v1222
        %v1239 = vpack.c.bf16 %v1225, %v1224
        %v1240 = vpack.c.bf16 %v1227, %v1226
        %v1241 = vpack.c.bf16 %v1229, %v1228
        %v1242 = vld [vmem:[%s3] sm:$0xf]
        %v1243 = vld [vmem:[%s3 + $0x4] sm:$0xf]
        %v1244 = vld [vmem:[%s3 + $0x8] sm:$0xf]
        %v1245 = vld [vmem:[%s3 + $0xc] sm:$0xf]
        %v1246 = vld [vmem:[%s408] sm:$0xf]
        %v1247 = vld [vmem:[%s408 + $0x4] sm:$0xf]
        %v1248 = vld [vmem:[%s408 + $0x8] sm:$0xf]
        %v1249 = vld [vmem:[%s408 + $0xc] sm:$0xf]
        %v1250 = vld [vmem:[%s408 + $0x10] sm:$0xf]
        %v1251 = vld [vmem:[%s408 + $0x14] sm:$0xf]
        %v1252 = vld [vmem:[%s408 + $0x18] sm:$0xf]
        %v1253 = vld [vmem:[%s408 + $0x1c] sm:$0xf]
        %v1254 = vld [vmem:[%s408 + $0x20] sm:$0xf]
        %v1255 = vld [vmem:[%s408 + $0x24] sm:$0xf]
        %v1256 = vld [vmem:[%s408 + $0x28] sm:$0xf]
        %v1257 = vld [vmem:[%s408 + $0x2c] sm:$0xf]
        %v1258 = vld [vmem:[%s408 + $0x30] sm:$0xf]
        %v1259 = vld [vmem:[%s408 + $0x34] sm:$0xf]
        %v1260 = vld [vmem:[%s408 + $0x38] sm:$0xf]
        %v1261 = vld [vmem:[%s408 + $0x3c] sm:$0xf]
        %v1262 = vld [vmem:[%s408 + $0x40] sm:$0xf]
        %v1263 = vld [vmem:[%s408 + $0x44] sm:$0xf]
        %v1264 = vld [vmem:[%s408 + $0x48] sm:$0xf]
        %v1265 = vld [vmem:[%s408 + $0x4c] sm:$0xf]
        %v1266 = vld [vmem:[%s408 + $0x50] sm:$0xf]
        %v1267 = vld [vmem:[%s408 + $0x54] sm:$0xf]
        %v1268 = vld [vmem:[%s408 + $0x58] sm:$0xf]
        %v1269 = vld [vmem:[%s408 + $0x5c] sm:$0xf]
        %v1270 = vld [vmem:[%s4] sm:$0xf]
        %v1271 = vld [vmem:[%s4 + $0x4] sm:$0xf]
        %v1272 = vld [vmem:[%s4 + $0x8] sm:$0xf]
        %v1273 = vld [vmem:[%s4 + $0xc] sm:$0xf]
        %v1298 = vunpack.c.l.b16 %v1246
        %v1299 = vunpack.c.l.b16 %v1247
        %v1300 = vunpack.c.l.b16 %v1248
        %v1301 = vunpack.c.l.b16 %v1249
        %v1302 = vunpack.c.l.b16 %v1250
        %v1303 = vunpack.c.l.b16 %v1251
        %v1304 = vunpack.c.l.b16 %v1252
        %v1305 = vunpack.c.l.b16 %v1253
        %v1306 = vunpack.c.l.b16 %v1254
        %v1307 = vunpack.c.l.b16 %v1255
        %v1308 = vunpack.c.l.b16 %v1256
        %v1309 = vunpack.c.l.b16 %v1257
        %v1310 = vunpack.c.l.b16 %v1258
        %v1311 = vunpack.c.l.b16 %v1259
        %v1312 = vunpack.c.l.b16 %v1260
        %v1313 = vunpack.c.l.b16 %v1261
        %v1314 = vunpack.c.l.b16 %v1262
        %v1315 = vunpack.c.l.b16 %v1263
        %v1316 = vunpack.c.l.b16 %v1264
        %v1317 = vunpack.c.l.b16 %v1265
        %v1318 = vunpack.c.l.b16 %v1266
        %v1319 = vunpack.c.l.b16 %v1267
        %v1320 = vunpack.c.l.b16 %v1268
        %v1321 = vunpack.c.l.b16 %v1269
        %v1322 = vpack.c.b16 %v1299, %v1298
        %v1323 = vpack.c.b16 %v1301, %v1300
        %v1324 = vpack.c.b16 %v1303, %v1302
        %v1325 = vpack.c.b16 %v1305, %v1304
        %v1326 = vpack.c.b16 %v1307, %v1306
        %v1327 = vpack.c.b16 %v1309, %v1308
        %v1328 = vpack.c.b16 %v1311, %v1310
        %v1329 = vpack.c.b16 %v1313, %v1312
        %v1330 = vpack.c.b16 %v1315, %v1314
        %v1331 = vpack.c.b16 %v1317, %v1316
        %v1332 = vpack.c.b16 %v1319, %v1318
        %v1333 = vpack.c.b16 %v1321, %v1320
        %v1338 = vunpack.c.l.b16 %v1270
        %v1339 = vunpack.c.l.b16 %v1271
        %v1340 = vunpack.c.l.b16 %v1272
        %v1341 = vunpack.c.l.b16 %v1273
        %v1342 = vpack.c.b16 %v1339, %v1338
        %v1343 = vpack.c.b16 %v1341, %v1340
        %v1347 = vsel %vm1010, %v1322, 0
        %v1350 = vsel %vm1010, %v1323, 0
        %v1353 = vsel %vm1010, %v1324, 0
        %v1356 = vsel %vm1010, %v1325, 0
        %v1359 = vsel %vm1010, %v1326, 0
        %v1362 = vsel %vm1010, %v1327, 0
        %v1365 = vsel %vm1010, %v1328, 0
        %v1368 = vsel %vm1010, %v1329, 0
        %v1371 = vsel %vm1010, %v1330, 0
        %v1374 = vsel %vm1010, %v1331, 0
        %v1377 = vsel %vm1010, %v1332, 0
        %v1380 = vsel %vm1010, %v1333, 0
        %1382 = vmatprep.subr.bf16.mxu0 0
        %1383 = vmatpush1.bf16.msra.mxu0 %v1342
        %1384 = vmatprep.subr.bf16.mxu0 0
        %1385 = vmatpush1.bf16.msra.mxu0 %v1343
        %1386 = vmatprep.subr.bf16.mxu0 0
        %1387 = vmatpush1.bf16.msra.mxu0 0
        %1388 = vmatprep.subr.bf16.mxu0 0
        %1389 = vmatpush1.bf16.msra.mxu0 0
        %1390 = vmatprep.subr.bf16.mxu0 0
        %1391 = vmatpush1.bf16.msra.mxu0 0
        %1392 = vmatprep.subr.bf16.mxu0 0
        %1393 = vmatpush1.bf16.msra.mxu0 0
        %1394 = vmatprep.subr.bf16.mxu0 0
        %1395 = vmatpush1.bf16.msra.mxu0 0
        %1396 = vmatprep.subr.bf16.mxu0 0
        %1397 = vmatpush1.bf16.msra.mxu0 0
        %1398 = vmatprep.subr.bf16.mxu0 0
        %1399 = vmatpush1.bf16.msra.mxu0 0
        %1400 = vmatprep.subr.bf16.mxu0 0
        %1401 = vmatpush1.bf16.msra.mxu0 0
        %1402 = vmatprep.subr.bf16.mxu0 0
        %1403 = vmatpush1.bf16.msra.mxu0 0
        %1404 = vmatprep.subr.bf16.mxu0 0
        %1405 = vmatpush1.bf16.msra.mxu0 0
        %1406 = vmatprep.subr.bf16.mxu0 0
        %1407 = vmatpush1.bf16.msra.mxu0 0
        %1408 = vmatprep.subr.bf16.mxu0 0
        %1409 = vmatpush1.bf16.msra.mxu0 0
        %1410 = vmatprep.subr.bf16.mxu0 0
        %1411 = vmatpush1.bf16.msra.mxu0 0
        %1412 = vmatprep.subr.bf16.mxu0 0
        %1413 = vmatpush1.bf16.msra.mxu0 0
        %1414 = vmatprep.mubr.bf16.mxu0 0
        %1415 = vmatmul.mubr.bf16.gmra.mrb[0].mxu0 %v1347
        %v1416 = vpop.f32.mrb[0].mxu0
        %v1417 = vadd.f32 0.0, %v1416
        %v1418 = vpop.f32.mrb[0].mxu0
        %v1419 = vpop.f32.mrb[0].mxu0
        %v1420 = vadd.f32 0.0, %v1419
        %v1421 = vpop.f32.mrb[0].mxu0
        %1422 = vmatprep.mubr.bf16.mxu0 0
        %1423 = vmatmul.mubr.bf16.gmra.mrb[0].mxu0 %v1350
        %v1424 = vpop.f32.mrb[0].mxu0
        %v1425 = vadd.f32 0.0, %v1424
        %v1426 = vpop.f32.mrb[0].mxu0
        %v1427 = vpop.f32.mrb[0].mxu0
        %v1428 = vadd.f32 0.0, %v1427
        %v1429 = vpop.f32.mrb[0].mxu0
        %1430 = vmatprep.mubr.bf16.mxu0 0
        %1431 = vmatmul.mubr.bf16.gmra.mrb[0].mxu0 %v1353
        %v1432 = vpop.f32.mrb[0].mxu0
        %v1433 = vadd.f32 0.0, %v1432
        %v1434 = vpop.f32.mrb[0].mxu0
        %v1435 = vpop.f32.mrb[0].mxu0
        %v1436 = vadd.f32 0.0, %v1435
        %v1437 = vpop.f32.mrb[0].mxu0
        %1438 = vmatprep.mubr.bf16.mxu0 0
        %1439 = vmatmul.mubr.bf16.gmra.mrb[0].mxu0 %v1356
        %v1440 = vpop.f32.mrb[0].mxu0
        %v1441 = vadd.f32 0.0, %v1440
        %v1442 = vpop.f32.mrb[0].mxu0
        %v1443 = vpop.f32.mrb[0].mxu0
        %v1444 = vadd.f32 0.0, %v1443
        %v1445 = vpop.f32.mrb[0].mxu0
        %1446 = vmatprep.mubr.bf16.mxu0 0
        %1447 = vmatmul.mubr.bf16.gmra.mrb[0].mxu0 %v1359
        %v1448 = vpop.f32.mrb[0].mxu0
        %v1449 = vadd.f32 0.0, %v1448
        %v1450 = vpop.f32.mrb[0].mxu0
        %v1451 = vpop.f32.mrb[0].mxu0
        %v1452 = vadd.f32 0.0, %v1451
        %v1453 = vpop.f32.mrb[0].mxu0
        %1454 = vmatprep.mubr.bf16.mxu0 0
        %1455 = vmatmul.mubr.bf16.gmra.mrb[0].mxu0 %v1362
        %v1456 = vpop.f32.mrb[0].mxu0
        %v1457 = vadd.f32 0.0, %v1456
        %v1458 = vpop.f32.mrb[0].mxu0
        %v1459 = vpop.f32.mrb[0].mxu0
        %v1460 = vadd.f32 0.0, %v1459
        %v1461 = vpop.f32.mrb[0].mxu0
        %1462 = vmatprep.mubr.bf16.mxu0 0
        %1463 = vmatmul.mubr.bf16.gmra.mrb[0].mxu0 %v1365
        %v1464 = vpop.f32.mrb[0].mxu0
        %v1465 = vadd.f32 0.0, %v1464
        %v1466 = vpop.f32.mrb[0].mxu0
        %v1467 = vpop.f32.mrb[0].mxu0
        %v1468 = vadd.f32 0.0, %v1467
        %v1469 = vpop.f32.mrb[0].mxu0
        %1470 = vmatprep.mubr.bf16.mxu0 0
        %1471 = vmatmul.mubr.bf16.gmra.mrb[0].mxu0 %v1368
        %v1472 = vpop.f32.mrb[0].mxu0
        %v1473 = vadd.f32 0.0, %v1472
        %v1474 = vpop.f32.mrb[0].mxu0
        %v1475 = vpop.f32.mrb[0].mxu0
        %v1476 = vadd.f32 0.0, %v1475
        %v1477 = vpop.f32.mrb[0].mxu0
        %1478 = vmatprep.mubr.bf16.mxu0 0
        %1479 = vmatmul.mubr.bf16.gmra.mrb[0].mxu0 %v1371
        %v1480 = vpop.f32.mrb[0].mxu0
        %v1481 = vadd.f32 0.0, %v1480
        %v1482 = vpop.f32.mrb[0].mxu0
        %v1483 = vpop.f32.mrb[0].mxu0
        %v1484 = vadd.f32 0.0, %v1483
        %v1485 = vpop.f32.mrb[0].mxu0
        %1486 = vmatprep.mubr.bf16.mxu0 0
        %1487 = vmatmul.mubr.bf16.gmra.mrb[0].mxu0 %v1374
        %v1488 = vpop.f32.mrb[0].mxu0
        %v1489 = vadd.f32 0.0, %v1488
        %v1490 = vpop.f32.mrb[0].mxu0
        %v1491 = vpop.f32.mrb[0].mxu0
        %v1492 = vadd.f32 0.0, %v1491
        %v1493 = vpop.f32.mrb[0].mxu0
        %1494 = vmatprep.mubr.bf16.mxu0 0
        %1495 = vmatmul.mubr.bf16.gmra.mrb[0].mxu0 %v1377
        %v1496 = vpop.f32.mrb[0].mxu0
        %v1497 = vadd.f32 0.0, %v1496
        %v1498 = vpop.f32.mrb[0].mxu0
        %v1499 = vpop.f32.mrb[0].mxu0
        %v1500 = vadd.f32 0.0, %v1499
        %v1501 = vpop.f32.mrb[0].mxu0
        %1502 = vmatprep.mubr.bf16.mxu0 0
        %1503 = vmatmul.mubr.bf16.gmra.mrb[0].mxu0 %v1380
        %v1504 = vpop.f32.mrb[0].mxu0
        %v1505 = vadd.f32 0.0, %v1504
        %v1506 = vpop.f32.mrb[0].mxu0
        %v1507 = vpop.f32.mrb[0].mxu0
        %v1508 = vadd.f32 0.0, %v1507
        %v1509 = vpop.f32.mrb[0].mxu0
        %1510 = vdwg.mxu0
        %v1515 = vunpack.c.l.b16 %v1242
        %v1516 = vunpack.c.l.b16 %v1243
        %v1517 = vunpack.c.l.b16 %v1244
        %v1518 = vunpack.c.l.b16 %v1245
        %v1519 = vpack.c.b16 %v1516, %v1515
        %v1520 = vpack.c.b16 %v1518, %v1517
        %v1524 = vsel %vm1010, %v1230, 0
        %v1527 = vsel %vm1010, %v1231, 0
        %v1530 = vsel %vm1010, %v1232, 0
        %v1533 = vsel %vm1010, %v1233, 0
        %v1536 = vsel %vm1010, %v1234, 0
        %v1539 = vsel %vm1010, %v1235, 0
        %v1542 = vsel %vm1010, %v1236, 0
        %v1545 = vsel %vm1010, %v1237, 0
        %v1548 = vsel %vm1010, %v1238, 0
        %v1551 = vsel %vm1010, %v1239, 0
        %v1554 = vsel %vm1010, %v1240, 0
        %v1557 = vsel %vm1010, %v1241, 0
        %1559 = vmatprep.subr.bf16.mxu0 0
        %1560 = vmatpush1.bf16.msra.mxu0 %v1519
        %1561 = vmatprep.subr.bf16.mxu0 0
        %1562 = vmatpush1.bf16.msra.mxu0 %v1520
        %1563 = vmatprep.subr.bf16.mxu0 0
        %1564 = vmatpush1.bf16.msra.mxu0 0
        %1565 = vmatprep.subr.bf16.mxu0 0
        %1566 = vmatpush1.bf16.msra.mxu0 0
        %1567 = vmatprep.subr.bf16.mxu0 0
        %1568 = vmatpush1.bf16.msra.mxu0 0
        %1569 = vmatprep.subr.bf16.mxu0 0
        %1570 = vmatpush1.bf16.msra.mxu0 0
        %1571 = vmatprep.subr.bf16.mxu0 0
        %1572 = vmatpush1.bf16.msra.mxu0 0
        %1573 = vmatprep.subr.bf16.mxu0 0
        %1574 = vmatpush1.bf16.msra.mxu0 0
        %1575 = vmatprep.subr.bf16.mxu0 0
        %1576 = vmatpush1.bf16.msra.mxu0 0
        %1577 = vmatprep.subr.bf16.mxu0 0
        %1578 = vmatpush1.bf16.msra.mxu0 0
        %1579 = vmatprep.subr.bf16.mxu0 0
        %1580 = vmatpush1.bf16.msra.mxu0 0
        %1581 = vmatprep.subr.bf16.mxu0 0
        %1582 = vmatpush1.bf16.msra.mxu0 0
        %1583 = vmatprep.subr.bf16.mxu0 0
        %1584 = vmatpush1.bf16.msra.mxu0 0
        %1585 = vmatprep.subr.bf16.mxu0 0
        %1586 = vmatpush1.bf16.msra.mxu0 0
        %1587 = vmatprep.subr.bf16.mxu0 0
        %1588 = vmatpush1.bf16.msra.mxu0 0
        %1589 = vmatprep.subr.bf16.mxu0 0
        %1590 = vmatpush1.bf16.msra.mxu0 0
        %1591 = vmatprep.mubr.bf16.mxu0 0
        %1592 = vmatmul.mubr.bf16.gmra.mrb[0].mxu0 %v1524
        %v1593 = vpop.f32.mrb[0].mxu0
        %v1594 = vadd.f32 %v1417, %v1593
        %v1595 = vpop.f32.mrb[0].mxu0
        %v1596 = vpop.f32.mrb[0].mxu0
        %v1597 = vadd.f32 %v1420, %v1596
        %v1598 = vpop.f32.mrb[0].mxu0
        %1599 = vmatprep.mubr.bf16.mxu0 0
        %1600 = vmatmul.mubr.bf16.gmra.mrb[0].mxu0 %v1527
        %v1601 = vpop.f32.mrb[0].mxu0
        %v1602 = vadd.f32 %v1425, %v1601
        %v1603 = vpop.f32.mrb[0].mxu0
        %v1604 = vpop.f32.mrb[0].mxu0
        %v1605 = vadd.f32 %v1428, %v1604
        %v1606 = vpop.f32.mrb[0].mxu0
        %1607 = vmatprep.mubr.bf16.mxu0 0
        %1608 = vmatmul.mubr.bf16.gmra.mrb[0].mxu0 %v1530
        %v1609 = vpop.f32.mrb[0].mxu0
        %v1610 = vadd.f32 %v1433, %v1609
        %v1611 = vpop.f32.mrb[0].mxu0
        %v1612 = vpop.f32.mrb[0].mxu0
        %v1613 = vadd.f32 %v1436, %v1612
        %v1614 = vpop.f32.mrb[0].mxu0
        %1615 = vmatprep.mubr.bf16.mxu0 0
        %1616 = vmatmul.mubr.bf16.gmra.mrb[0].mxu0 %v1533
        %v1617 = vpop.f32.mrb[0].mxu0
        %v1618 = vadd.f32 %v1441, %v1617
        %v1619 = vpop.f32.mrb[0].mxu0
        %v1620 = vpop.f32.mrb[0].mxu0
        %v1621 = vadd.f32 %v1444, %v1620
        %v1622 = vpop.f32.mrb[0].mxu0
        %1623 = vmatprep.mubr.bf16.mxu0 0
        %1624 = vmatmul.mubr.bf16.gmra.mrb[0].mxu0 %v1536
        %v1625 = vpop.f32.mrb[0].mxu0
        %v1626 = vadd.f32 %v1449, %v1625
        %v1627 = vpop.f32.mrb[0].mxu0
        %v1628 = vpop.f32.mrb[0].mxu0
        %v1629 = vadd.f32 %v1452, %v1628
        %v1630 = vpop.f32.mrb[0].mxu0
        %1631 = vmatprep.mubr.bf16.mxu0 0
        %1632 = vmatmul.mubr.bf16.gmra.mrb[0].mxu0 %v1539
        %v1633 = vpop.f32.mrb[0].mxu0
        %v1634 = vadd.f32 %v1457, %v1633
        %v1635 = vpop.f32.mrb[0].mxu0
        %v1636 = vpop.f32.mrb[0].mxu0
        %v1637 = vadd.f32 %v1460, %v1636
        %v1638 = vpop.f32.mrb[0].mxu0
        %1639 = vmatprep.mubr.bf16.mxu0 0
        %1640 = vmatmul.mubr.bf16.gmra.mrb[0].mxu0 %v1542
        %v1641 = vpop.f32.mrb[0].mxu0
        %v1642 = vadd.f32 %v1465, %v1641
        %v1643 = vpop.f32.mrb[0].mxu0
        %v1644 = vpop.f32.mrb[0].mxu0
        %v1645 = vadd.f32 %v1468, %v1644
        %v1646 = vpop.f32.mrb[0].mxu0
        %1647 = vmatprep.mubr.bf16.mxu0 0
        %1648 = vmatmul.mubr.bf16.gmra.mrb[0].mxu0 %v1545
        %v1649 = vpop.f32.mrb[0].mxu0
        %v1650 = vadd.f32 %v1473, %v1649
        %v1651 = vpop.f32.mrb[0].mxu0
        %v1652 = vpop.f32.mrb[0].mxu0
        %v1653 = vadd.f32 %v1476, %v1652
        %v1654 = vpop.f32.mrb[0].mxu0
        %1655 = vmatprep.mubr.bf16.mxu0 0
        %1656 = vmatmul.mubr.bf16.gmra.mrb[0].mxu0 %v1548
        %v1657 = vpop.f32.mrb[0].mxu0
        %v1658 = vadd.f32 %v1481, %v1657
        %v1659 = vpop.f32.mrb[0].mxu0
        %v1660 = vpop.f32.mrb[0].mxu0
        %v1661 = vadd.f32 %v1484, %v1660
        %v1662 = vpop.f32.mrb[0].mxu0
        %1663 = vmatprep.mubr.bf16.mxu0 0
        %1664 = vmatmul.mubr.bf16.gmra.mrb[0].mxu0 %v1551
        %v1665 = vpop.f32.mrb[0].mxu0
        %v1666 = vadd.f32 %v1489, %v1665
        %v1667 = vpop.f32.mrb[0].mxu0
        %v1668 = vpop.f32.mrb[0].mxu0
        %v1669 = vadd.f32 %v1492, %v1668
        %v1670 = vpop.f32.mrb[0].mxu0
        %1671 = vmatprep.mubr.bf16.mxu0 0
        %1672 = vmatmul.mubr.bf16.gmra.mrb[0].mxu0 %v1554
        %v1673 = vpop.f32.mrb[0].mxu0
        %v1674 = vadd.f32 %v1497, %v1673
        %v1675 = vpop.f32.mrb[0].mxu0
        %v1676 = vpop.f32.mrb[0].mxu0
        %v1677 = vadd.f32 %v1500, %v1676
        %v1678 = vpop.f32.mrb[0].mxu0
        %1679 = vmatprep.mubr.bf16.mxu0 0
        %1680 = vmatmul.mubr.bf16.gmra.mrb[0].mxu0 %v1557
        %v1681 = vpop.f32.mrb[0].mxu0
        %v1682 = vadd.f32 %v1505, %v1681
        %v1683 = vpop.f32.mrb[0].mxu0
        %v1684 = vpop.f32.mrb[0].mxu0
        %v1685 = vadd.f32 %v1508, %v1684
        %v1686 = vpop.f32.mrb[0].mxu0
        %1687 = vdwg.mxu0
        %v1688 = vld [vmem:[%s5] sm:$0x1]
        %v1690 = vlaneseq
        %v1691 = vshrl.u32 %v1690, 7
        %v1692 = vsub.s32 0, %v1691
        %v1693 = vrot.slane %v1688, %v1692
        %v1695 = vadd.f32 %v1594, %v1693
        %v1696 = vadd.f32 %v1597, %v1693
        %v1697 = vadd.f32 %v1602, %v1693
        %v1698 = vadd.f32 %v1605, %v1693
        %v1699 = vadd.f32 %v1610, %v1693
        %v1700 = vadd.f32 %v1613, %v1693
        %v1701 = vadd.f32 %v1618, %v1693
        %v1702 = vadd.f32 %v1621, %v1693
        %v1703 = vadd.f32 %v1626, %v1693
        %v1704 = vadd.f32 %v1629, %v1693
        %v1705 = vadd.f32 %v1634, %v1693
        %v1706 = vadd.f32 %v1637, %v1693
        %v1707 = vadd.f32 %v1642, %v1693
        %v1708 = vadd.f32 %v1645, %v1693
        %v1709 = vadd.f32 %v1650, %v1693
        %v1710 = vadd.f32 %v1653, %v1693
        %v1711 = vadd.f32 %v1658, %v1693
        %v1712 = vadd.f32 %v1661, %v1693
        %v1713 = vadd.f32 %v1666, %v1693
        %v1714 = vadd.f32 %v1669, %v1693
        %v1715 = vadd.f32 %v1674, %v1693
        %v1716 = vadd.f32 %v1677, %v1693
        %v1717 = vadd.f32 %v1682, %v1693
        %v1718 = vadd.f32 %v1685, %v1693
        %v1719 = vmax.f32 %v1695, 0.0
        %v1720 = vmax.f32 %v1696, 0.0
        %v1721 = vmax.f32 %v1697, 0.0
        %v1722 = vmax.f32 %v1698, 0.0
        %v1723 = vmax.f32 %v1699, 0.0
        %v1724 = vmax.f32 %v1700, 0.0
        %v1725 = vmax.f32 %v1701, 0.0
        %v1726 = vmax.f32 %v1702, 0.0
        %v1727 = vmax.f32 %v1703, 0.0
        %v1728 = vmax.f32 %v1704, 0.0
        %v1729 = vmax.f32 %v1705, 0.0
        %v1730 = vmax.f32 %v1706, 0.0
        %v1731 = vmax.f32 %v1707, 0.0
        %v1732 = vmax.f32 %v1708, 0.0
        %v1733 = vmax.f32 %v1709, 0.0
        %v1734 = vmax.f32 %v1710, 0.0
        %v1735 = vmax.f32 %v1711, 0.0
        %v1736 = vmax.f32 %v1712, 0.0
        %v1737 = vmax.f32 %v1713, 0.0
        %v1738 = vmax.f32 %v1714, 0.0
        %v1739 = vmax.f32 %v1715, 0.0
        %v1740 = vmax.f32 %v1716, 0.0
        %v1741 = vmax.f32 %v1717, 0.0
        %v1742 = vmax.f32 %v1718, 0.0
        %v1743 = vld [vmem:[%s420] sm:$0xff]
        %v1744 = vld [vmem:[%s420 + $0x8] sm:$0xff]
        %v1745 = vld [vmem:[%s420 + $0x10] sm:$0xff]
        %v1746 = vld [vmem:[%s420 + $0x18] sm:$0xff]
        %v1747 = vld [vmem:[%s420 + $0x20] sm:$0xff]
        %v1748 = vld [vmem:[%s420 + $0x28] sm:$0xff]
        %v1749 = vld [vmem:[%s420 + $0x30] sm:$0xff]
        %v1750 = vld [vmem:[%s420 + $0x38] sm:$0xff]
        %v1751 = vld [vmem:[%s420 + $0x40] sm:$0xff]
        %v1752 = vld [vmem:[%s420 + $0x48] sm:$0xff]
        %v1753 = vld [vmem:[%s420 + $0x50] sm:$0xff]
        %v1754 = vld [vmem:[%s420 + $0x58] sm:$0xff]
        %v1755 = vld [vmem:[%s420 + $0x60] sm:$0xff]
        %v1756 = vld [vmem:[%s420 + $0x68] sm:$0xff]
        %v1757 = vld [vmem:[%s420 + $0x70] sm:$0xff]
        %v1758 = vld [vmem:[%s420 + $0x78] sm:$0xff]
        %v1759 = vld [vmem:[%s420 + $0x80] sm:$0xff]
        %v1760 = vld [vmem:[%s420 + $0x88] sm:$0xff]
        %v1761 = vld [vmem:[%s420 + $0x90] sm:$0xff]
        %v1762 = vld [vmem:[%s420 + $0x98] sm:$0xff]
        %v1763 = vld [vmem:[%s420 + $0xa0] sm:$0xff]
        %v1764 = vld [vmem:[%s420 + $0xa8] sm:$0xff]
        %v1765 = vld [vmem:[%s420 + $0xb0] sm:$0xff]
        %v1766 = vld [vmem:[%s420 + $0xb8] sm:$0xff]
        %1768 = vset.pattern.permute.xlu0 0
        %1769 = vperm.xlu0 %1768, %v1743
        %v1770 = vpop.permute.xlu0 %1769
        %1773 = vset.pattern.permute.xlu0 0
        %1774 = vperm.xlu0 %1773, %v1744
        %v1775 = vpop.permute.xlu0 %1774
        %1778 = vset.pattern.permute.xlu0 0
        %1779 = vperm.xlu0 %1778, %v1745
        %v1780 = vpop.permute.xlu0 %1779
        %1783 = vset.pattern.permute.xlu0 0
        %1784 = vperm.xlu0 %1783, %v1746
        %v1785 = vpop.permute.xlu0 %1784
        %1788 = vset.pattern.permute.xlu0 0
        %1789 = vperm.xlu0 %1788, %v1747
        %v1790 = vpop.permute.xlu0 %1789
        %1793 = vset.pattern.permute.xlu0 0
        %1794 = vperm.xlu0 %1793, %v1748
        %v1795 = vpop.permute.xlu0 %1794
        %1798 = vset.pattern.permute.xlu0 0
        %1799 = vperm.xlu0 %1798, %v1749
        %v1800 = vpop.permute.xlu0 %1799
        %1803 = vset.pattern.permute.xlu0 0
        %1804 = vperm.xlu0 %1803, %v1750
        %v1805 = vpop.permute.xlu0 %1804
        %1808 = vset.pattern.permute.xlu0 0
        %1809 = vperm.xlu0 %1808, %v1751
        %v1810 = vpop.permute.xlu0 %1809
        %1813 = vset.pattern.permute.xlu0 0
        %1814 = vperm.xlu0 %1813, %v1752
        %v1815 = vpop.permute.xlu0 %1814
        %1818 = vset.pattern.permute.xlu0 0
        %1819 = vperm.xlu0 %1818, %v1753
        %v1820 = vpop.permute.xlu0 %1819
        %1823 = vset.pattern.permute.xlu0 0
        %1824 = vperm.xlu0 %1823, %v1754
        %v1825 = vpop.permute.xlu0 %1824
        %1828 = vset.pattern.permute.xlu0 0
        %1829 = vperm.xlu0 %1828, %v1755
        %v1830 = vpop.permute.xlu0 %1829
        %1833 = vset.pattern.permute.xlu0 0
        %1834 = vperm.xlu0 %1833, %v1756
        %v1835 = vpop.permute.xlu0 %1834
        %1838 = vset.pattern.permute.xlu0 0
        %1839 = vperm.xlu0 %1838, %v1757
        %v1840 = vpop.permute.xlu0 %1839
        %1843 = vset.pattern.permute.xlu0 0
        %1844 = vperm.xlu0 %1843, %v1758
        %v1845 = vpop.permute.xlu0 %1844
        %1848 = vset.pattern.permute.xlu0 0
        %1849 = vperm.xlu0 %1848, %v1759
        %v1850 = vpop.permute.xlu0 %1849
        %1853 = vset.pattern.permute.xlu0 0
        %1854 = vperm.xlu0 %1853, %v1760
        %v1855 = vpop.permute.xlu0 %1854
        %1858 = vset.pattern.permute.xlu0 0
        %1859 = vperm.xlu0 %1858, %v1761
        %v1860 = vpop.permute.xlu0 %1859
        %1863 = vset.pattern.permute.xlu0 0
        %1864 = vperm.xlu0 %1863, %v1762
        %v1865 = vpop.permute.xlu0 %1864
        %1868 = vset.pattern.permute.xlu0 0
        %1869 = vperm.xlu0 %1868, %v1763
        %v1870 = vpop.permute.xlu0 %1869
        %1873 = vset.pattern.permute.xlu0 0
        %1874 = vperm.xlu0 %1873, %v1764
        %v1875 = vpop.permute.xlu0 %1874
        %1878 = vset.pattern.permute.xlu0 0
        %1879 = vperm.xlu0 %1878, %v1765
        %v1880 = vpop.permute.xlu0 %1879
        %1883 = vset.pattern.permute.xlu0 0
        %1884 = vperm.xlu0 %1883, %v1766
        %v1885 = vpop.permute.xlu0 %1884
        %v1887 = vmul.f32 %v1719, %v1770
        %v1888 = vmul.f32 %v1720, %v1775
        %v1889 = vmul.f32 %v1721, %v1780
        %v1890 = vmul.f32 %v1722, %v1785
        %v1891 = vmul.f32 %v1723, %v1790
        %v1892 = vmul.f32 %v1724, %v1795
        %v1893 = vmul.f32 %v1725, %v1800
        %v1894 = vmul.f32 %v1726, %v1805
        %v1895 = vmul.f32 %v1727, %v1810
        %v1896 = vmul.f32 %v1728, %v1815
        %v1897 = vmul.f32 %v1729, %v1820
        %v1898 = vmul.f32 %v1730, %v1825
        %v1899 = vmul.f32 %v1731, %v1830
        %v1900 = vmul.f32 %v1732, %v1835
        %v1901 = vmul.f32 %v1733, %v1840
        %v1902 = vmul.f32 %v1734, %v1845
        %v1903 = vmul.f32 %v1735, %v1850
        %v1904 = vmul.f32 %v1736, %v1855
        %v1905 = vmul.f32 %v1737, %v1860
        %v1906 = vmul.f32 %v1738, %v1865
        %v1907 = vmul.f32 %v1739, %v1870
        %v1908 = vmul.f32 %v1740, %v1875
        %v1909 = vmul.f32 %v1741, %v1880
        %v1910 = vmul.f32 %v1742, %v1885
        %v1911 = vpack.c.bf16 %v1888, %v1887
        %v1912 = vpack.c.bf16 %v1890, %v1889
        %v1913 = vpack.c.bf16 %v1892, %v1891
        %v1914 = vpack.c.bf16 %v1894, %v1893
        %v1915 = vpack.c.bf16 %v1896, %v1895
        %v1916 = vpack.c.bf16 %v1898, %v1897
        %v1917 = vpack.c.bf16 %v1900, %v1899
        %v1918 = vpack.c.bf16 %v1902, %v1901
        %v1919 = vpack.c.bf16 %v1904, %v1903
        %v1920 = vpack.c.bf16 %v1906, %v1905
        %v1921 = vpack.c.bf16 %v1908, %v1907
        %v1922 = vpack.c.bf16 %v1910, %v1909
        %v1935 = vunpack.c.l.b16 %v1911
        %v1936 = vunpack.c.h.b16 %v1911
        %v1937 = vunpack.c.l.b16 %v1912
        %v1938 = vunpack.c.h.b16 %v1912
        %v1939 = vunpack.c.l.b16 %v1913
        %v1940 = vunpack.c.h.b16 %v1913
        %v1941 = vunpack.c.l.b16 %v1914
        %v1942 = vunpack.c.h.b16 %v1914
        %v1943 = vunpack.c.l.b16 %v1915
        %v1944 = vunpack.c.h.b16 %v1915
        %v1945 = vunpack.c.l.b16 %v1916
        %v1946 = vunpack.c.h.b16 %v1916
        %v1947 = vunpack.c.l.b16 %v1917
        %v1948 = vunpack.c.h.b16 %v1917
        %v1949 = vunpack.c.l.b16 %v1918
        %v1950 = vunpack.c.h.b16 %v1918
        %v1951 = vunpack.c.l.b16 %v1919
        %v1952 = vunpack.c.h.b16 %v1919
        %v1953 = vunpack.c.l.b16 %v1920
        %v1954 = vunpack.c.h.b16 %v1920
        %v1955 = vunpack.c.l.b16 %v1921
        %v1956 = vunpack.c.h.b16 %v1921
        %v1957 = vunpack.c.l.b16 %v1922
        %v1958 = vunpack.c.h.b16 %v1922
        %v1959 = vpack.c.b16 %v1935, %v1935
        %v1960 = vpack.c.b16 %v1936, %v1936
        %v1961 = vpack.c.b16 %v1937, %v1937
        %v1962 = vpack.c.b16 %v1938, %v1938
        %v1963 = vpack.c.b16 %v1939, %v1939
        %v1964 = vpack.c.b16 %v1940, %v1940
        %v1965 = vpack.c.b16 %v1941, %v1941
        %v1966 = vpack.c.b16 %v1942, %v1942
        %v1967 = vpack.c.b16 %v1943, %v1943
        %v1968 = vpack.c.b16 %v1944, %v1944
        %v1969 = vpack.c.b16 %v1945, %v1945
        %v1970 = vpack.c.b16 %v1946, %v1946
        %v1971 = vpack.c.b16 %v1947, %v1947
        %v1972 = vpack.c.b16 %v1948, %v1948
        %v1973 = vpack.c.b16 %v1949, %v1949
        %v1974 = vpack.c.b16 %v1950, %v1950
        %v1975 = vpack.c.b16 %v1951, %v1951
        %v1976 = vpack.c.b16 %v1952, %v1952
        %v1977 = vpack.c.b16 %v1953, %v1953
        %v1978 = vpack.c.b16 %v1954, %v1954
        %v1979 = vpack.c.b16 %v1955, %v1955
        %v1980 = vpack.c.b16 %v1956, %v1956
        %v1981 = vpack.c.b16 %v1957, %v1957
        %v1982 = vpack.c.b16 %v1958, %v1958
        %2007 = vst [vmem:[%s426] sm:$0xf] %v1959
        %2008 = vst [vmem:[%s426 + $0x4] sm:$0xf] %v1960
        %2009 = vst [vmem:[%s426 + $0x8] sm:$0xf] %v1961
        %2010 = vst [vmem:[%s426 + $0xc] sm:$0xf] %v1962
        %2011 = vst [vmem:[%s426 + $0x10] sm:$0xf] %v1963
        %2012 = vst [vmem:[%s426 + $0x14] sm:$0xf] %v1964
        %2013 = vst [vmem:[%s426 + $0x18] sm:$0xf] %v1965
        %2014 = vst [vmem:[%s426 + $0x1c] sm:$0xf] %v1966
        %2015 = vst [vmem:[%s426 + $0x20] sm:$0xf] %v1967
        %2016 = vst [vmem:[%s426 + $0x24] sm:$0xf] %v1968
        %2017 = vst [vmem:[%s426 + $0x28] sm:$0xf] %v1969
        %2018 = vst [vmem:[%s426 + $0x2c] sm:$0xf] %v1970
        %2019 = vst [vmem:[%s426 + $0x30] sm:$0xf] %v1971
        %2020 = vst [vmem:[%s426 + $0x34] sm:$0xf] %v1972
        %2021 = vst [vmem:[%s426 + $0x38] sm:$0xf] %v1973
        %2022 = vst [vmem:[%s426 + $0x3c] sm:$0xf] %v1974
        %2023 = vst [vmem:[%s426 + $0x40] sm:$0xf] %v1975
        %2024 = vst [vmem:[%s426 + $0x44] sm:$0xf] %v1976
        %2025 = vst [vmem:[%s426 + $0x48] sm:$0xf] %v1977
        %2026 = vst [vmem:[%s426 + $0x4c] sm:$0xf] %v1978
        %2027 = vst [vmem:[%s426 + $0x50] sm:$0xf] %v1979
        %2028 = vst [vmem:[%s426 + $0x54] sm:$0xf] %v1980
        %2029 = vst [vmem:[%s426 + $0x58] sm:$0xf] %v1981
        %2030 = vst [vmem:[%s426 + $0x5c] sm:$0xf] %v1982
      $region60: #{graphsage_forward.3} parent=51 // pred_fallthru
        _
      %s2031 = smul.u32 24, %s23
      %p2032 = scmp.lt.s32.totalorder %s2031, 47
      %s2033 = scalar_select %p2032, %s2031, 47
      %s2034 = smul.addr %s2033, 4
      %s2035 = scalar_lea.vmem %s8, %s2034
      // Predicated region
      $region61: #{graphsage_forward.3} parent=51 // pred_check
        %p2036 = pneg %p244
      $region62: #{graphsage_forward.3} parent=51 // pred_check_branch
        %2038 = sbr.rel (%p2036) target = $region64
      $region63: #{graphsage_forward.3} parent=51 // pred_region
        %s2039 = smul.u32 24, %s23
      $region64: #{graphsage_forward.3} parent=51 // pred_fallthru
        _
    $region52: #{graphsage_forward.3} parent=5 // pred_fallthru
      _
    %p2040 = scmp.le.s32.totalorder 2, %s14
    // Predicated region
    $region65: #{graphsage_forward.3} parent=5 // pred_check
      %p2041 = pneg %p2040
    $region66: #{graphsage_forward.3} parent=5 // pred_check_branch
      %2043 = sbr.rel (%p2041) target = $region68
    $region67: #{graphsage_forward.3} parent=5 // pred_region
      %s2044 = ssub.s32 %s14, 2
      // Predicated region
      $region69: #{graphsage_forward.3} parent=67 // pred_check
        %p2045 = pneg %p250
      $region70: #{graphsage_forward.3} parent=67 // pred_check_branch
        %2047 = sbr.rel (%p2045) target = $region72
      $region71: #{graphsage_forward.3} parent=67 // pred_region
        %s2048 = smul.u32 24, %s25
        %p2049 = scmp.lt.s32.totalorder %s2048, 47
        %s2050 = scalar_select %p2049, %s2048, 47
        %s2051 = smul.addr %s2050, 4
        %s2052 = scalar_lea.vmem %s8, %s2051
      $region72: #{graphsage_forward.3} parent=67 // pred_fallthru
        _
    $region68: #{graphsage_forward.3} parent=5 // pred_fallthru
      _
  $region6: #{graphsage_forward.3} parent=0 // loop_footer
    %s18 = sadd.s32 1, %s14
  $region7: #{graphsage_forward.3} parent=0 // loop_footer_branch
    %13 = sbr.rel target = $region3
  $region8: #{graphsage_forward.3} parent=0 // loop_exit
    _

</llo_original>
